<compile_context>
chip_gen: v6e
topology: v6e:2x2x1
jax: 0.10.0
libtpu: 0.0.40
codegen_flags: <defaults>
</compile_context>

<pallas_src>
import jax
import jax.numpy as jnp
from jax import lax
from jax.experimental import pallas as pl
from jax.experimental.pallas import tpu as pltpu

_EPS_NORM = 1e-12  # F.normalize default eps
_VMEM = pl.BlockSpec(memory_space=pltpu.MemorySpace.VMEM)
_OUT_LANES = 128   # lane-dense packed output width


# ----------------------------------------------------------------------------
# Fused kernel
# ----------------------------------------------------------------------------
def _joint_kernel(hidden_ref, sub_feats_ref, loc_feats_ref, rel_feats_ref,
                  sub_emb_ref, loc_emb_ref, rel_emb_ref, masks_ref,
                  w1_sub_ref, b1_sub_ref, w1_lr_ref, b1_lr_ref,
                  w2_vis_ref, b2_vis_ref,
                  w1_lang_ref, b1_lang_ref, w2_lang_ref, b2_lang_ref,
                  wfc_ref, bfc_ref,
                  out_ref):
    n = hidden_ref.shape[0]
    m = masks_ref.shape[1]
    j = w2_lang_ref.shape[0]          # jemb_dim

    def dotf(a, b):
        return jnp.dot(a, b, preferred_element_type=jnp.float32)

    def l2n(x):
        nrm = jnp.sqrt(jnp.sum(x * x, axis=-1, keepdims=True))
        return x / jnp.maximum(nrm, _EPS_NORM)

    def unpack_heads(y, bias, row_blocks):
        # y is a packed matmul result: head h owns columns [h*j, (h+1)*j) and
        # the h-th contiguous row block.  Return row-stacked per-head slices
        # with each head's (folded-BN) bias added.
        pieces, r0 = [], 0
        for h, rows in enumerate(row_blocks):
            c0 = h * j
            pieces.append(y[r0:r0 + rows, c0:c0 + j] + bias[:, c0:c0 + j])
            r0 += rows
        return jnp.concatenate(pieces, axis=0)

    # ---- language branches (sub | loc | rel): one packed dot per layer -----
    # rel lang runs once per phrase (n rows), not n*m — dedup vs the torch code
    # which expands lang_input before the MLP (mathematically identical).
    x_lang = jnp.concatenate(
        [sub_emb_ref[...], loc_emb_ref[...], rel_emb_ref[...]], axis=0)   # (3n,L)
    h_lang = unpack_heads(dotf(x_lang, w1_lang_ref[...]),
                          b1_lang_ref[...], (n, n, n))
    h_lang = jnp.maximum(h_lang, 0.0)                 # ReLU; Dropout = id (eval)
    lang = l2n(unpack_heads(dotf(h_lang, w2_lang_ref[...]),
                            b2_lang_ref[...], (n, n, n)))
    sub_lang, loc_lang, rel_lang = lang[0:n], lang[n:2 * n], lang[2 * n:3 * n]

    # ---- visual branches: sub alone (64-d input), loc|rel packed -----------
    h_sub = dotf(sub_feats_ref[...], w1_sub_ref[...]) + b1_sub_ref[...]    # (n,j)
    x_lr = jnp.concatenate([loc_feats_ref[...], rel_feats_ref[...]], axis=0)
    y_lr = dotf(x_lr, w1_lr_ref[...])                                      # ((1+m)n,2j)
    h_loc = y_lr[0:n, 0:j] + b1_lr_ref[:, 0:j]
    h_rel = y_lr[n:(1 + m) * n, j:2 * j] + b1_lr_ref[:, j:2 * j]
    h_vis = jnp.maximum(jnp.concatenate([h_sub, h_loc, h_rel], axis=0), 0.0)
    vis = l2n(unpack_heads(dotf(h_vis, w2_vis_ref[...]),
                           b2_vis_ref[...], (n, n, m * n)))
    sub_vis, loc_vis, rel_vis = vis[0:n], vis[n:2 * n], vis[2 * n:]

    # ---- cosine similarities ------------------------------------------------
    sub_s = jnp.sum(sub_vis * sub_lang, axis=-1, keepdims=True)
    loc_s = jnp.sum(loc_vis * loc_lang, axis=-1, keepdims=True)

    # rel_vis rows are ordered (candidate c, batch i) -> row c*n + i.
    # Running masked max + argmax; first occurrence wins ties (like the
    # previous version).  masks*cos before max is inherited torch behavior.
    best = masks_ref[:, 0:1] * jnp.sum(rel_vis[0:n] * rel_lang,
                                       axis=-1, keepdims=True)
    best_ix = jnp.zeros((n, 1), jnp.float32)
    for c in range(1, m):
        cand = masks_ref[:, c:c + 1] * jnp.sum(
            rel_vis[c * n:(c + 1) * n] * rel_lang, axis=-1, keepdims=True)
        take = cand > best
        best = jnp.where(take, cand, best)
        best_ix = jnp.where(take, jnp.float32(c), best_ix)
    rel_s = best

    # ---- weight_fc + softmax + weighted combination -------------------------
    logits = dotf(hidden_ref[...], wfc_ref[...]) + bfc_ref[...]            # (n,3)
    z = logits - jnp.max(logits, axis=1, keepdims=True)
    e = jnp.exp(z)
    w = e / jnp.sum(e, axis=1, keepdims=True)
    w0, w1, w2 = w[:, 0:1], w[:, 1:2], w[:, 2:3]
    scores = w0 * sub_s + w1 * loc_s + w2 * rel_s

    # ---- lane-dense packed output: one (n,128) slab, one unmasked store -----
    col = lax.broadcasted_iota(jnp.int32, (n, out_ref.shape[1]), 1)
    out = jnp.where(col == 0, scores, 0.0)
    out = jnp.where(col == 1, sub_s, out)
    out = jnp.where(col == 2, loc_s, out)
    out = jnp.where(col == 3, rel_s, out)
    out = jnp.where(col == 4, best_ix, out)
    out = jnp.where(col == 5, w0, out)
    out = jnp.where(col == 6, w1, out)
    out = jnp.where(col == 7, w2, out)
    out_ref[...] = out


# ----------------------------------------------------------------------------
# Parameter folding / packing (done once, outside the kernel)
# ----------------------------------------------------------------------------
def _fold_bn(w, b, scale, shift):
    # (x@w + b)*scale + shift == x@(w*scale) + (b*scale + shift)
    return w * scale, b * scale + shift


def _fold_branch(branch):
    w1, b1, s1, sh1, w2, b2, s2, sh2 = branch
    w1, b1 = _fold_bn(w1, b1, s1, sh1)
    w2, b2 = _fold_bn(w2, b2, s2, sh2)
    return w1, b1, w2, b2


def pack_joint_params(params):
    sub_v, sub_l = params["sub_matching"]
    loc_v, loc_l = params["loc_matching"]
    rel_v, rel_l = params["rel_matching"]
    sv, lv, rv = _fold_branch(sub_v), _fold_branch(loc_v), _fold_branch(rel_v)
    sl, ll, rl = _fold_branch(sub_l), _fold_branch(loc_l), _fold_branch(rel_l)

    w1_sub, b1_sub = sv[0], sv[1]                                  # (64,32),(1,32)
    w1_lr = jnp.concatenate([lv[0], rv[0]], axis=1)                # (32,64)
    b1_lr = jnp.concatenate([lv[1], rv[1]], axis=1)                # (1,64)
    w2_vis = jnp.concatenate([sv[2], lv[2], rv[2]], axis=1)        # (32,96)
    b2_vis = jnp.concatenate([sv[3], lv[3], rv[3]], axis=1)        # (1,96)
    w1_lang = jnp.concatenate([sl[0], ll[0], rl[0]], axis=1)       # (32,96)
    b1_lang = jnp.concatenate([sl[1], ll[1], rl[1]], axis=1)       # (1,96)
    w2_lang = jnp.concatenate([sl[2], ll[2], rl[2]], axis=1)       # (32,96)
    b2_lang = jnp.concatenate([sl[3], ll[3], rl[3]], axis=1)       # (1,96)
    wfc, bfc = params["weight_fc"]
    return (w1_sub, b1_sub, w1_lr, b1_lr, w2_vis, b2_vis,
            w1_lang, b1_lang, w2_lang, b2_lang, wfc, bfc)


# ----------------------------------------------------------------------------
# Wrapper
# ----------------------------------------------------------------------------
@jax.jit
def joint_matching_forward(hidden, sub_feats, sub_phrase_emb,
                           loc_feats, loc_phrase_emb,
                           rel_feats, rel_phrase_emb, masks, packed_params):
    """JointMatching.forward given encoder/attention outputs (see TODO above)."""
    n, m, dv = rel_feats.shape
    # (n, m, dv) -> (m*n, dv), candidate-major: each candidate's n rows form a
    # contiguous, 8-aligned sublane block inside the kernel.
    rel_flat = jnp.transpose(rel_feats, (1, 0, 2)).reshape(m * n, dv)

    args = (hidden, sub_feats, loc_feats, rel_flat,
            sub_phrase_emb, loc_phrase_emb, rel_phrase_emb, masks) \
        + tuple(packed_params)

    out = pl.pallas_call(
        _joint_kernel,
        out_shape=jax.ShapeDtypeStruct((n, _OUT_LANES), jnp.float32),
        in_specs=[_VMEM] * len(args),
        out_specs=_VMEM,
    )(*args)

    scores = out[:, 0]
    sub_s, loc_s, rel_s = out[:, 1:2], out[:, 2:3], out[:, 3:4]
    rel_ixs = out[:, 4].astype(jnp.int32)
    weights = out[:, 5:8]
    return scores, sub_s, loc_s, rel_s, rel_ixs, weights


# ----------------------------------------------------------------------------
# Deterministic parameter init (synthetic; shapes follow the module __init__)
# ----------------------------------------------------------------------------
def _init_linear(key, din, dout):
    k1, k2 = jax.random.split(key)
    bound = 1.0 / (din ** 0.5)
    w = jax.random.uniform(k1, (din, dout), jnp.float32, -bound, bound)
    b = jax.random.uniform(k2, (1, dout), jnp.float32, -bound, bound)
    return w, b


def _init_bn_folded(key, dim, eps=1e-5):
    k1, k2, k3, k4 = jax.random.split(key, 4)
    gamma = 1.0 + 0.1 * jax.random.normal(k1, (1, dim), jnp.float32)
    beta = 0.1 * jax.random.normal(k2, (1, dim), jnp.float32)
    rmean = 0.1 * jax.random.normal(k3, (1, dim), jnp.float32)
    rvar = 0.5 + jax.random.uniform(k4, (1, dim), jnp.float32)
    scale = gamma / jnp.sqrt(rvar + eps)     # eval-mode BN as scale/shift
    shift = beta - rmean * scale
    return scale, shift


def _init_branch(key, din, jemb):
    k = jax.random.split(key, 4)
    w1, b1 = _init_linear(k[0], din, jemb)
    s1, sh1 = _init_bn_folded(k[1], jemb)
    w2, b2 = _init_linear(k[2], jemb, jemb)
    s2, sh2 = _init_bn_folded(k[3], jemb)
    return (w1, b1, s1, sh1, w2, b2, s2, sh2)


def _init_matching(key, vis_dim, lang_dim, jemb):
    kv, kl = jax.random.split(key)
    return (_init_branch(kv, vis_dim, jemb), _init_branch(kl, lang_dim, jemb))


# ----------------------------------------------------------------------------
# Pure-JAX reference (for correctness check; uses the UNfolded params)
# ----------------------------------------------------------------------------
def _branch_ref(x, p):
    w1, b1, s1, sh1, w2, b2, s2, sh2 = p
    h = x @ w1 + b1
    h = h * s1 + sh1
    h = jnp.maximum(h, 0.0)
    h = h @ w2 + b2
    return h * s2 + sh2


def _matching_ref(vis, lang, pv, pl_):
    ve = _branch_ref(vis, pv)
    le = _branch_ref(lang, pl_)
    ve = ve / jnp.maximum(jnp.linalg.norm(ve, axis=1, keepdims=True), _EPS_NORM)
    le = le / jnp.maximum(jnp.linalg.norm(le, axis=1, keepdims=True), _EPS_NORM)
    return jnp.sum(ve * le, axis=1, keepdims=True)


def _forward_ref(hidden, sub_f, sub_e, loc_f, loc_e, rel_f, rel_e, masks, params):
    n, m, dv = rel_f.shape
    sub_s = _matching_ref(sub_f, sub_e, *params["sub_matching"])
    loc_s = _matching_ref(loc_f, loc_e, *params["loc_matching"])
    rel_lang = jnp.broadcast_to(rel_e[:, None, :], (n, m, rel_e.shape[1]))
    rel_cos = _matching_ref(rel_f.reshape(n * m, dv),
                            rel_lang.reshape(n * m, -1),
                            *params["rel_matching"]).reshape(n, m)
    masked = masks * rel_cos
    rel_s = jnp.max(masked, axis=1, keepdims=True)
    rel_ix = jnp.argmax(masked, axis=1)
    wfc, bfc = params["weight_fc"]
    weights = jax.nn.softmax(hidden @ wfc + bfc, axis=1)
    scores = jnp.sum(weights * jnp.concatenate([sub_s, loc_s, rel_s], 1), axis=1)
    return scores, sub_s, loc_s, rel_s, rel_ix, weights


# ----------------------------------------------------------------------------
if __name__ == "__main__":
    # Small config consistent with the module's __init__:
    # jemb_dim=32, word_vec_size=32, rnn_hidden_size=16, num_layers=1, bidir.
    N, M = 8, 5
    JEMB, WORD_VEC = 32, 32
    HIDDEN = 1 * 2 * 16  # num_layers * num_dirs * rnn_hidden_size

    root = jax.random.PRNGKey(0)
    kp, kx = jax.random.split(root)
    kps = jax.random.split(kp, 4)
    params = {
        "sub_matching": _init_matching(kps[0], JEMB * 2, WORD_VEC, JEMB),
        "loc_matching": _init_matching(kps[1], JEMB, WORD_VEC, JEMB),
        "rel_matching": _init_matching(kps[2], JEMB, WORD_VEC, JEMB),
        "weight_fc": _init_linear(kps[3], HIDDEN, 3),
    }

    kxs = jax.random.split(kx, 8)
    hidden = jax.random.normal(kxs[0], (N, HIDDEN), jnp.float32)
    sub_feats = jax.random.normal(kxs[1], (N, JEMB * 2), jnp.float32)
    sub_phrase_emb = jax.random.normal(kxs[2], (N, WORD_VEC), jnp.float32)
    loc_feats = jax.random.normal(kxs[3], (N, JEMB), jnp.float32)
    loc_phrase_emb = jax.random.normal(kxs[4], (N, WORD_VEC), jnp.float32)
    rel_feats = jax.random.normal(kxs[5], (N, M, JEMB), jnp.float32)
    rel_phrase_emb = jax.random.normal(kxs[6], (N, WORD_VEC), jnp.float32)
    masks = jax.random.bernoulli(kxs[7], 0.7, (N, M)).astype(jnp.float32)
    masks = masks.at[:, 0].set(1.0)  # each candidate set non-empty

    # Pin both the kernel's and the reference's f32 matmuls to full precision
    # so the self-test can use tight tolerances.
    with jax.default_matmul_precision("float32"):
        packed = pack_joint_params(params)
        scores, sub_s, loc_s, rel_s, rel_ixs, weights = jax.block_until_ready(
            joint_matching_forward(hidden, sub_feats, sub_phrase_emb,
                                   loc_feats, loc_phrase_emb,
                                   rel_feats, rel_phrase_emb, masks, packed))
        (ref_scores, ref_sub, ref_loc, ref_rel,
         ref_ix, ref_w) = _forward_ref(hidden, sub_feats, sub_phrase_emb,
                                       loc_feats, loc_phrase_emb,
                                       rel_feats, rel_phrase_emb, masks, params)

    assert scores.shape == (N,) and weights.shape == (N, 3)
    assert rel_ixs.shape == (N,) and rel_s.shape == (N, 1)
    tol = dict(atol=1e-4, rtol=1e-4)
    assert jnp.allclose(scores, ref_scores, **tol)
    assert jnp.allclose(sub_s, ref_sub, **tol)
    assert jnp.allclose(loc_s, ref_loc, **tol)
    assert jnp.allclose(rel_s, ref_rel, **tol)
    assert jnp.allclose(weights, ref_w, **tol)
    assert jnp.array_equal(rel_ixs, ref_ix.astype(jnp.int32))
    print("KERNEL_OK")
</pallas_src>

<mosaic_0001>
module attributes {stable_mosaic.version = 11 : i64} {
  func.func @_joint_kernel(%arg0: memref<8x32xf32, #tpu.memory_space<vmem>>, %arg1: memref<8x64xf32, #tpu.memory_space<vmem>>, %arg2: memref<8x32xf32, #tpu.memory_space<vmem>>, %arg3: memref<40x32xf32, #tpu.memory_space<vmem>>, %arg4: memref<8x32xf32, #tpu.memory_space<vmem>>, %arg5: memref<8x32xf32, #tpu.memory_space<vmem>>, %arg6: memref<8x32xf32, #tpu.memory_space<vmem>>, %arg7: memref<8x5xf32, #tpu.memory_space<vmem>>, %arg8: memref<64x32xf32, #tpu.memory_space<vmem>>, %arg9: memref<1x32xf32, #tpu.memory_space<vmem>>, %arg10: memref<32x64xf32, #tpu.memory_space<vmem>>, %arg11: memref<1x64xf32, #tpu.memory_space<vmem>>, %arg12: memref<32x96xf32, #tpu.memory_space<vmem>>, %arg13: memref<1x96xf32, #tpu.memory_space<vmem>>, %arg14: memref<32x96xf32, #tpu.memory_space<vmem>>, %arg15: memref<1x96xf32, #tpu.memory_space<vmem>>, %arg16: memref<32x96xf32, #tpu.memory_space<vmem>>, %arg17: memref<1x96xf32, #tpu.memory_space<vmem>>, %arg18: memref<32x3xf32, #tpu.memory_space<vmem>>, %arg19: memref<1x3xf32, #tpu.memory_space<vmem>>, %arg20: memref<8x128xf32, #tpu.memory_space<vmem>>) attributes {dimension_semantics = [], scalar_prefetch = 0 : i64, scratch_operands = 0 : i64, tpu.core_type = #tpu.core_type<tc>} {
    %c0 = arith.constant 0 : index
    %c0_0 = arith.constant 0 : index
    %0 = vector.load %arg4[%c0, %c0_0] : memref<8x32xf32, #tpu.memory_space<vmem>>, vector<8x32xf32>
    %c0_1 = arith.constant 0 : index
    %c0_2 = arith.constant 0 : index
    %1 = vector.load %arg5[%c0_1, %c0_2] : memref<8x32xf32, #tpu.memory_space<vmem>>, vector<8x32xf32>
    %c0_3 = arith.constant 0 : index
    %c0_4 = arith.constant 0 : index
    %2 = vector.load %arg6[%c0_3, %c0_4] : memref<8x32xf32, #tpu.memory_space<vmem>>, vector<8x32xf32>
    %3 = tpu.concatenate %0, %1, %2 in 0 : vector<8x32xf32>, vector<8x32xf32>, vector<8x32xf32> -> vector<24x32xf32>
    %c0_5 = arith.constant 0 : index
    %c0_6 = arith.constant 0 : index
    %4 = vector.load %arg14[%c0_5, %c0_6] : memref<32x96xf32, #tpu.memory_space<vmem>>, vector<32x96xf32>
    %cst = arith.constant dense<0.000000e+00> : vector<24x96xf32>
    %5 = tpu.matmul %3, %4, %cst {dimension_numbers = #tpu.dot_dimension_numbers<[1], [0], [0], [1], [0, 0, 1, 1], [], []>, precision = #tpu.contract_precision<fp32>} : vector<24x32xf32>, vector<32x96xf32>, vector<24x96xf32> -> vector<24x96xf32>
    %c0_7 = arith.constant 0 : index
    %c0_8 = arith.constant 0 : index
    %6 = vector.load %arg15[%c0_7, %c0_8] : memref<1x96xf32, #tpu.memory_space<vmem>>, vector<1x96xf32>
    %7 = vector.extract_strided_slice %5 {offsets = [0, 0], sizes = [8, 32], strides = [1, 1]} : vector<24x96xf32> to vector<8x32xf32>
    %8 = vector.extract_strided_slice %6 {offsets = [0, 0], sizes = [1, 32], strides = [1, 1]} : vector<1x96xf32> to vector<1x32xf32>
    %9 = vector.broadcast %8 : vector<1x32xf32> to vector<8x32xf32>
    %10 = arith.addf %7, %9 : vector<8x32xf32>
    %11 = vector.extract_strided_slice %5 {offsets = [8, 32], sizes = [8, 32], strides = [1, 1]} : vector<24x96xf32> to vector<8x32xf32>
    %12 = vector.extract_strided_slice %6 {offsets = [0, 32], sizes = [1, 32], strides = [1, 1]} : vector<1x96xf32> to vector<1x32xf32>
    %13 = vector.broadcast %12 : vector<1x32xf32> to vector<8x32xf32>
    %14 = arith.addf %11, %13 : vector<8x32xf32>
    %15 = vector.extract_strided_slice %5 {offsets = [16, 64], sizes = [8, 32], strides = [1, 1]} : vector<24x96xf32> to vector<8x32xf32>
    %16 = vector.extract_strided_slice %6 {offsets = [0, 64], sizes = [1, 32], strides = [1, 1]} : vector<1x96xf32> to vector<1x32xf32>
    %17 = vector.broadcast %16 : vector<1x32xf32> to vector<8x32xf32>
    %18 = arith.addf %15, %17 : vector<8x32xf32>
    %19 = tpu.concatenate %10, %14, %18 in 0 : vector<8x32xf32>, vector<8x32xf32>, vector<8x32xf32> -> vector<24x32xf32>
    %cst_9 = arith.constant 0.000000e+00 : f32
    %20 = vector.broadcast %cst_9 : f32 to vector<24x32xf32>
    %21 = arith.maximumf %19, %20 : vector<24x32xf32>
    %c0_10 = arith.constant 0 : index
    %c0_11 = arith.constant 0 : index
    %22 = vector.load %arg16[%c0_10, %c0_11] : memref<32x96xf32, #tpu.memory_space<vmem>>, vector<32x96xf32>
    %cst_12 = arith.constant dense<0.000000e+00> : vector<24x96xf32>
    %23 = tpu.matmul %21, %22, %cst_12 {dimension_numbers = #tpu.dot_dimension_numbers<[1], [0], [0], [1], [0, 0, 1, 1], [], []>, precision = #tpu.contract_precision<fp32>} : vector<24x32xf32>, vector<32x96xf32>, vector<24x96xf32> -> vector<24x96xf32>
    %c0_13 = arith.constant 0 : index
    %c0_14 = arith.constant 0 : index
    %24 = vector.load %arg17[%c0_13, %c0_14] : memref<1x96xf32, #tpu.memory_space<vmem>>, vector<1x96xf32>
    %25 = vector.extract_strided_slice %23 {offsets = [0, 0], sizes = [8, 32], strides = [1, 1]} : vector<24x96xf32> to vector<8x32xf32>
    %26 = vector.extract_strided_slice %24 {offsets = [0, 0], sizes = [1, 32], strides = [1, 1]} : vector<1x96xf32> to vector<1x32xf32>
    %27 = vector.broadcast %26 : vector<1x32xf32> to vector<8x32xf32>
    %28 = arith.addf %25, %27 : vector<8x32xf32>
    %29 = vector.extract_strided_slice %23 {offsets = [8, 32], sizes = [8, 32], strides = [1, 1]} : vector<24x96xf32> to vector<8x32xf32>
    %30 = vector.extract_strided_slice %24 {offsets = [0, 32], sizes = [1, 32], strides = [1, 1]} : vector<1x96xf32> to vector<1x32xf32>
    %31 = vector.broadcast %30 : vector<1x32xf32> to vector<8x32xf32>
    %32 = arith.addf %29, %31 : vector<8x32xf32>
    %33 = vector.extract_strided_slice %23 {offsets = [16, 64], sizes = [8, 32], strides = [1, 1]} : vector<24x96xf32> to vector<8x32xf32>
    %34 = vector.extract_strided_slice %24 {offsets = [0, 64], sizes = [1, 32], strides = [1, 1]} : vector<1x96xf32> to vector<1x32xf32>
    %35 = vector.broadcast %34 : vector<1x32xf32> to vector<8x32xf32>
    %36 = arith.addf %33, %35 : vector<8x32xf32>
    %37 = tpu.concatenate %28, %32, %36 in 0 : vector<8x32xf32>, vector<8x32xf32>, vector<8x32xf32> -> vector<24x32xf32>
    %38 = arith.mulf %37, %37 : vector<24x32xf32>
    %cst_15 = arith.constant dense<0.000000e+00> : vector<24xf32>
    %39 = vector.multi_reduction <add>, %38, %cst_15 [1] : vector<24x32xf32> to vector<24xf32>
    %40 = vector.shape_cast %39 : vector<24xf32> to vector<24x1xf32>
    %41 = math.sqrt %40 : vector<24x1xf32>
    %cst_16 = arith.constant 9.99999996E-13 : f32
    %42 = vector.broadcast %cst_16 : f32 to vector<24x1xf32>
    %43 = arith.maximumf %41, %42 : vector<24x1xf32>
    %44 = vector.broadcast %43 : vector<24x1xf32> to vector<24x32xf32>
    %45 = arith.divf %37, %44 : vector<24x32xf32>
    %46 = vector.extract_strided_slice %45 {offsets = [0, 0], sizes = [8, 32], strides = [1, 1]} : vector<24x32xf32> to vector<8x32xf32>
    %47 = vector.extract_strided_slice %45 {offsets = [8, 0], sizes = [8, 32], strides = [1, 1]} : vector<24x32xf32> to vector<8x32xf32>
    %48 = vector.extract_strided_slice %45 {offsets = [16, 0], sizes = [8, 32], strides = [1, 1]} : vector<24x32xf32> to vector<8x32xf32>
    %c0_17 = arith.constant 0 : index
    %c0_18 = arith.constant 0 : index
    %49 = vector.load %arg1[%c0_17, %c0_18] : memref<8x64xf32, #tpu.memory_space<vmem>>, vector<8x64xf32>
    %c0_19 = arith.constant 0 : index
    %c0_20 = arith.constant 0 : index
    %50 = vector.load %arg8[%c0_19, %c0_20] : memref<64x32xf32, #tpu.memory_space<vmem>>, vector<64x32xf32>
    %cst_21 = arith.constant dense<0.000000e+00> : vector<8x32xf32>
    %51 = tpu.matmul %49, %50, %cst_21 {dimension_numbers = #tpu.dot_dimension_numbers<[1], [0], [0], [1], [0, 0, 1, 1], [], []>, precision = #tpu.contract_precision<fp32>} : vector<8x64xf32>, vector<64x32xf32>, vector<8x32xf32> -> vector<8x32xf32>
    %c0_22 = arith.constant 0 : index
    %c0_23 = arith.constant 0 : index
    %52 = vector.load %arg9[%c0_22, %c0_23] : memref<1x32xf32, #tpu.memory_space<vmem>>, vector<1x32xf32>
    %53 = vector.broadcast %52 : vector<1x32xf32> to vector<8x32xf32>
    %54 = arith.addf %51, %53 : vector<8x32xf32>
    %c0_24 = arith.constant 0 : index
    %c0_25 = arith.constant 0 : index
    %55 = vector.load %arg2[%c0_24, %c0_25] : memref<8x32xf32, #tpu.memory_space<vmem>>, vector<8x32xf32>
    %c0_26 = arith.constant 0 : index
    %c0_27 = arith.constant 0 : index
    %56 = vector.load %arg3[%c0_26, %c0_27] : memref<40x32xf32, #tpu.memory_space<vmem>>, vector<40x32xf32>
    %57 = tpu.concatenate %55, %56 in 0 : vector<8x32xf32>, vector<40x32xf32> -> vector<48x32xf32>
    %c0_28 = arith.constant 0 : index
    %c0_29 = arith.constant 0 : index
    %58 = vector.load %arg10[%c0_28, %c0_29] : memref<32x64xf32, #tpu.memory_space<vmem>>, vector<32x64xf32>
    %cst_30 = arith.constant dense<0.000000e+00> : vector<48x64xf32>
    %59 = tpu.matmul %57, %58, %cst_30 {dimension_numbers = #tpu.dot_dimension_numbers<[1], [0], [0], [1], [0, 0, 1, 1], [], []>, precision = #tpu.contract_precision<fp32>} : vector<48x32xf32>, vector<32x64xf32>, vector<48x64xf32> -> vector<48x64xf32>
    %60 = vector.extract_strided_slice %59 {offsets = [0, 0], sizes = [8, 32], strides = [1, 1]} : vector<48x64xf32> to vector<8x32xf32>
    %c0_31 = arith.constant 0 : index
    %c0_32 = arith.constant 0 : index
    %61 = vector.load %arg11[%c0_31, %c0_32] : memref<1x64xf32, #tpu.memory_space<vmem>>, vector<1x32xf32>
    %62 = vector.broadcast %61 : vector<1x32xf32> to vector<8x32xf32>
    %63 = arith.addf %60, %62 : vector<8x32xf32>
    %64 = vector.extract_strided_slice %59 {offsets = [8, 32], sizes = [40, 32], strides = [1, 1]} : vector<48x64xf32> to vector<40x32xf32>
    %c0_33 = arith.constant 0 : index
    %c32 = arith.constant 32 : index
    %65 = vector.load %arg11[%c0_33, %c32] : memref<1x64xf32, #tpu.memory_space<vmem>>, vector<1x32xf32>
    %66 = vector.broadcast %65 : vector<1x32xf32> to vector<40x32xf32>
    %67 = arith.addf %64, %66 : vector<40x32xf32>
    %68 = tpu.concatenate %54, %63, %67 in 0 : vector<8x32xf32>, vector<8x32xf32>, vector<40x32xf32> -> vector<56x32xf32>
    %cst_34 = arith.constant 0.000000e+00 : f32
    %69 = vector.broadcast %cst_34 : f32 to vector<56x32xf32>
    %70 = arith.maximumf %68, %69 : vector<56x32xf32>
    %c0_35 = arith.constant 0 : index
    %c0_36 = arith.constant 0 : index
    %71 = vector.load %arg12[%c0_35, %c0_36] : memref<32x96xf32, #tpu.memory_space<vmem>>, vector<32x96xf32>
    %cst_37 = arith.constant dense<0.000000e+00> : vector<56x96xf32>
    %72 = tpu.matmul %70, %71, %cst_37 {dimension_numbers = #tpu.dot_dimension_numbers<[1], [0], [0], [1], [0, 0, 1, 1], [], []>, precision = #tpu.contract_precision<fp32>} : vector<56x32xf32>, vector<32x96xf32>, vector<56x96xf32> -> vector<56x96xf32>
    %c0_38 = arith.constant 0 : index
    %c0_39 = arith.constant 0 : index
    %73 = vector.load %arg13[%c0_38, %c0_39] : memref<1x96xf32, #tpu.memory_space<vmem>>, vector<1x96xf32>
    %74 = vector.extract_strided_slice %72 {offsets = [0, 0], sizes = [8, 32], strides = [1, 1]} : vector<56x96xf32> to vector<8x32xf32>
    %75 = vector.extract_strided_slice %73 {offsets = [0, 0], sizes = [1, 32], strides = [1, 1]} : vector<1x96xf32> to vector<1x32xf32>
    %76 = vector.broadcast %75 : vector<1x32xf32> to vector<8x32xf32>
    %77 = arith.addf %74, %76 : vector<8x32xf32>
    %78 = vector.extract_strided_slice %72 {offsets = [8, 32], sizes = [8, 32], strides = [1, 1]} : vector<56x96xf32> to vector<8x32xf32>
    %79 = vector.extract_strided_slice %73 {offsets = [0, 32], sizes = [1, 32], strides = [1, 1]} : vector<1x96xf32> to vector<1x32xf32>
    %80 = vector.broadcast %79 : vector<1x32xf32> to vector<8x32xf32>
    %81 = arith.addf %78, %80 : vector<8x32xf32>
    %82 = vector.extract_strided_slice %72 {offsets = [16, 64], sizes = [40, 32], strides = [1, 1]} : vector<56x96xf32> to vector<40x32xf32>
    %83 = vector.extract_strided_slice %73 {offsets = [0, 64], sizes = [1, 32], strides = [1, 1]} : vector<1x96xf32> to vector<1x32xf32>
    %84 = vector.broadcast %83 : vector<1x32xf32> to vector<40x32xf32>
    %85 = arith.addf %82, %84 : vector<40x32xf32>
    %86 = tpu.concatenate %77, %81, %85 in 0 : vector<8x32xf32>, vector<8x32xf32>, vector<40x32xf32> -> vector<56x32xf32>
    %87 = arith.mulf %86, %86 : vector<56x32xf32>
    %cst_40 = arith.constant dense<0.000000e+00> : vector<56xf32>
    %88 = vector.multi_reduction <add>, %87, %cst_40 [1] : vector<56x32xf32> to vector<56xf32>
    %89 = vector.shape_cast %88 : vector<56xf32> to vector<56x1xf32>
    %90 = math.sqrt %89 : vector<56x1xf32>
    %cst_41 = arith.constant 9.99999996E-13 : f32
    %91 = vector.broadcast %cst_41 : f32 to vector<56x1xf32>
    %92 = arith.maximumf %90, %91 : vector<56x1xf32>
    %93 = vector.broadcast %92 : vector<56x1xf32> to vector<56x32xf32>
    %94 = arith.divf %86, %93 : vector<56x32xf32>
    %95 = vector.extract_strided_slice %94 {offsets = [0, 0], sizes = [8, 32], strides = [1, 1]} : vector<56x32xf32> to vector<8x32xf32>
    %96 = vector.extract_strided_slice %94 {offsets = [8, 0], sizes = [8, 32], strides = [1, 1]} : vector<56x32xf32> to vector<8x32xf32>
    %97 = vector.extract_strided_slice %94 {offsets = [16, 0], sizes = [40, 32], strides = [1, 1]} : vector<56x32xf32> to vector<40x32xf32>
    %98 = arith.mulf %95, %46 : vector<8x32xf32>
    %cst_42 = arith.constant dense<0.000000e+00> : vector<8xf32>
    %99 = vector.multi_reduction <add>, %98, %cst_42 [1] : vector<8x32xf32> to vector<8xf32>
    %100 = vector.shape_cast %99 : vector<8xf32> to vector<8x1xf32>
    %101 = arith.mulf %96, %47 : vector<8x32xf32>
    %cst_43 = arith.constant dense<0.000000e+00> : vector<8xf32>
    %102 = vector.multi_reduction <add>, %101, %cst_43 [1] : vector<8x32xf32> to vector<8xf32>
    %103 = vector.shape_cast %102 : vector<8xf32> to vector<8x1xf32>
    %c0_44 = arith.constant 0 : index
    %c0_45 = arith.constant 0 : index
    %104 = vector.load %arg7[%c0_44, %c0_45] : memref<8x5xf32, #tpu.memory_space<vmem>>, vector<8x1xf32>
    %105 = vector.extract_strided_slice %97 {offsets = [0, 0], sizes = [8, 32], strides = [1, 1]} : vector<40x32xf32> to vector<8x32xf32>
    %106 = arith.mulf %105, %48 : vector<8x32xf32>
    %cst_46 = arith.constant dense<0.000000e+00> : vector<8xf32>
    %107 = vector.multi_reduction <add>, %106, %cst_46 [1] : vector<8x32xf32> to vector<8xf32>
    %108 = vector.shape_cast %107 : vector<8xf32> to vector<8x1xf32>
    %109 = arith.mulf %104, %108 : vector<8x1xf32>
    %cst_47 = arith.constant 0.000000e+00 : f32
    %110 = vector.broadcast %cst_47 : f32 to vector<8x1xf32>
    %c0_48 = arith.constant 0 : index
    %c1 = arith.constant 1 : index
    %111 = vector.load %arg7[%c0_48, %c1] : memref<8x5xf32, #tpu.memory_space<vmem>>, vector<8x1xf32>
    %112 = vector.extract_strided_slice %97 {offsets = [8, 0], sizes = [8, 32], strides = [1, 1]} : vector<40x32xf32> to vector<8x32xf32>
    %113 = arith.mulf %112, %48 : vector<8x32xf32>
    %cst_49 = arith.constant dense<0.000000e+00> : vector<8xf32>
    %114 = vector.multi_reduction <add>, %113, %cst_49 [1] : vector<8x32xf32> to vector<8xf32>
    %115 = vector.shape_cast %114 : vector<8xf32> to vector<8x1xf32>
    %116 = arith.mulf %111, %115 : vector<8x1xf32>
    %117 = arith.cmpf ogt, %116, %109 : vector<8x1xf32>
    %118 = arith.select %117, %116, %109 : vector<8x1xi1>, vector<8x1xf32>
    %cst_50 = arith.constant 1.000000e+00 : f32
    %119 = vector.broadcast %cst_50 : f32 to vector<8x1xf32>
    %120 = arith.select %117, %119, %110 : vector<8x1xi1>, vector<8x1xf32>
    %c0_51 = arith.constant 0 : index
    %c2 = arith.constant 2 : index
    %121 = vector.load %arg7[%c0_51, %c2] : memref<8x5xf32, #tpu.memory_space<vmem>>, vector<8x1xf32>
    %122 = vector.extract_strided_slice %97 {offsets = [16, 0], sizes = [8, 32], strides = [1, 1]} : vector<40x32xf32> to vector<8x32xf32>
    %123 = arith.mulf %122, %48 : vector<8x32xf32>
    %cst_52 = arith.constant dense<0.000000e+00> : vector<8xf32>
    %124 = vector.multi_reduction <add>, %123, %cst_52 [1] : vector<8x32xf32> to vector<8xf32>
    %125 = vector.shape_cast %124 : vector<8xf32> to vector<8x1xf32>
    %126 = arith.mulf %121, %125 : vector<8x1xf32>
    %127 = arith.cmpf ogt, %126, %118 : vector<8x1xf32>
    %128 = arith.select %127, %126, %118 : vector<8x1xi1>, vector<8x1xf32>
    %cst_53 = arith.constant 2.000000e+00 : f32
    %129 = vector.broadcast %cst_53 : f32 to vector<8x1xf32>
    %130 = arith.select %127, %129, %120 : vector<8x1xi1>, vector<8x1xf32>
    %c0_54 = arith.constant 0 : index
    %c3 = arith.constant 3 : index
    %131 = vector.load %arg7[%c0_54, %c3] : memref<8x5xf32, #tpu.memory_space<vmem>>, vector<8x1xf32>
    %132 = vector.extract_strided_slice %97 {offsets = [24, 0], sizes = [8, 32], strides = [1, 1]} : vector<40x32xf32> to vector<8x32xf32>
    %133 = arith.mulf %132, %48 : vector<8x32xf32>
    %cst_55 = arith.constant dense<0.000000e+00> : vector<8xf32>
    %134 = vector.multi_reduction <add>, %133, %cst_55 [1] : vector<8x32xf32> to vector<8xf32>
    %135 = vector.shape_cast %134 : vector<8xf32> to vector<8x1xf32>
    %136 = arith.mulf %131, %135 : vector<8x1xf32>
    %137 = arith.cmpf ogt, %136, %128 : vector<8x1xf32>
    %138 = arith.select %137, %136, %128 : vector<8x1xi1>, vector<8x1xf32>
    %cst_56 = arith.constant 3.000000e+00 : f32
    %139 = vector.broadcast %cst_56 : f32 to vector<8x1xf32>
    %140 = arith.select %137, %139, %130 : vector<8x1xi1>, vector<8x1xf32>
    %c0_57 = arith.constant 0 : index
    %c4 = arith.constant 4 : index
    %141 = vector.load %arg7[%c0_57, %c4] : memref<8x5xf32, #tpu.memory_space<vmem>>, vector<8x1xf32>
    %142 = vector.extract_strided_slice %97 {offsets = [32, 0], sizes = [8, 32], strides = [1, 1]} : vector<40x32xf32> to vector<8x32xf32>
    %143 = arith.mulf %142, %48 : vector<8x32xf32>
    %cst_58 = arith.constant dense<0.000000e+00> : vector<8xf32>
    %144 = vector.multi_reduction <add>, %143, %cst_58 [1] : vector<8x32xf32> to vector<8xf32>
    %145 = vector.shape_cast %144 : vector<8xf32> to vector<8x1xf32>
    %146 = arith.mulf %141, %145 : vector<8x1xf32>
    %147 = arith.cmpf ogt, %146, %138 : vector<8x1xf32>
    %148 = arith.select %147, %146, %138 : vector<8x1xi1>, vector<8x1xf32>
    %cst_59 = arith.constant 4.000000e+00 : f32
    %149 = vector.broadcast %cst_59 : f32 to vector<8x1xf32>
    %150 = arith.select %147, %149, %140 : vector<8x1xi1>, vector<8x1xf32>
    %c0_60 = arith.constant 0 : index
    %c0_61 = arith.constant 0 : index
    %151 = vector.load %arg0[%c0_60, %c0_61] : memref<8x32xf32, #tpu.memory_space<vmem>>, vector<8x32xf32>
    %c0_62 = arith.constant 0 : index
    %c0_63 = arith.constant 0 : index
    %152 = vector.load %arg18[%c0_62, %c0_63] : memref<32x3xf32, #tpu.memory_space<vmem>>, vector<32x3xf32>
    %cst_64 = arith.constant dense<0.000000e+00> : vector<8x3xf32>
    %153 = tpu.matmul %151, %152, %cst_64 {dimension_numbers = #tpu.dot_dimension_numbers<[1], [0], [0], [1], [0, 0, 1, 1], [], []>, precision = #tpu.contract_precision<fp32>} : vector<8x32xf32>, vector<32x3xf32>, vector<8x3xf32> -> vector<8x3xf32>
    %c0_65 = arith.constant 0 : index
    %c0_66 = arith.constant 0 : index
    %154 = vector.load %arg19[%c0_65, %c0_66] : memref<1x3xf32, #tpu.memory_space<vmem>>, vector<1x3xf32>
    %155 = vector.broadcast %154 : vector<1x3xf32> to vector<8x3xf32>
    %156 = arith.addf %153, %155 : vector<8x3xf32>
    %cst_67 = arith.constant dense<0xFF800000> : vector<8xf32>
    %157 = vector.multi_reduction <maximumf>, %156, %cst_67 [1] : vector<8x3xf32> to vector<8xf32>
    %158 = vector.shape_cast %157 : vector<8xf32> to vector<8x1xf32>
    %159 = vector.broadcast %158 : vector<8x1xf32> to vector<8x3xf32>
    %160 = arith.subf %156, %159 : vector<8x3xf32>
    %161 = math.exp %160 : vector<8x3xf32>
    %cst_68 = arith.constant dense<0.000000e+00> : vector<8xf32>
    %162 = vector.multi_reduction <add>, %161, %cst_68 [1] : vector<8x3xf32> to vector<8xf32>
    %163 = vector.shape_cast %162 : vector<8xf32> to vector<8x1xf32>
    %164 = vector.broadcast %163 : vector<8x1xf32> to vector<8x3xf32>
    %165 = arith.divf %161, %164 : vector<8x3xf32>
    %166 = vector.extract_strided_slice %165 {offsets = [0, 0], sizes = [8, 1], strides = [1, 1]} : vector<8x3xf32> to vector<8x1xf32>
    %167 = vector.extract_strided_slice %165 {offsets = [0, 1], sizes = [8, 1], strides = [1, 1]} : vector<8x3xf32> to vector<8x1xf32>
    %168 = vector.extract_strided_slice %165 {offsets = [0, 2], sizes = [8, 1], strides = [1, 1]} : vector<8x3xf32> to vector<8x1xf32>
    %169 = arith.mulf %166, %100 : vector<8x1xf32>
    %170 = arith.mulf %167, %103 : vector<8x1xf32>
    %171 = arith.addf %169, %170 : vector<8x1xf32>
    %172 = arith.mulf %168, %148 : vector<8x1xf32>
    %173 = arith.addf %171, %172 : vector<8x1xf32>
    %174 = tpu.iota {dimensions = array<i32: 1>} : vector<8x128xi32>
    %c0_i32 = arith.constant 0 : i32
    %175 = vector.broadcast %c0_i32 : i32 to vector<8x128xi32>
    %176 = arith.cmpi eq, %174, %175 : vector<8x128xi32>
    %cst_69 = arith.constant 0.000000e+00 : f32
    %177 = vector.shape_cast %173 : vector<8x1xf32> to vector<8x1xf32>
    %178 = vector.broadcast %177 : vector<8x1xf32> to vector<8x128xf32>
    %179 = vector.broadcast %cst_69 : f32 to vector<8x128xf32>
    %180 = arith.select %176, %178, %179 : vector<8x128xi1>, vector<8x128xf32>
    %c1_i32 = arith.constant 1 : i32
    %181 = vector.broadcast %c1_i32 : i32 to vector<8x128xi32>
    %182 = arith.cmpi eq, %174, %181 : vector<8x128xi32>
    %183 = vector.shape_cast %100 : vector<8x1xf32> to vector<8x1xf32>
    %184 = vector.broadcast %183 : vector<8x1xf32> to vector<8x128xf32>
    %185 = arith.select %182, %184, %180 : vector<8x128xi1>, vector<8x128xf32>
    %c2_i32 = arith.constant 2 : i32
    %186 = vector.broadcast %c2_i32 : i32 to vector<8x128xi32>
    %187 = arith.cmpi eq, %174, %186 : vector<8x128xi32>
    %188 = vector.shape_cast %103 : vector<8x1xf32> to vector<8x1xf32>
    %189 = vector.broadcast %188 : vector<8x1xf32> to vector<8x128xf32>
    %190 = arith.select %187, %189, %185 : vector<8x128xi1>, vector<8x128xf32>
    %c3_i32 = arith.constant 3 : i32
    %191 = vector.broadcast %c3_i32 : i32 to vector<8x128xi32>
    %192 = arith.cmpi eq, %174, %191 : vector<8x128xi32>
    %193 = vector.shape_cast %148 : vector<8x1xf32> to vector<8x1xf32>
    %194 = vector.broadcast %193 : vector<8x1xf32> to vector<8x128xf32>
    %195 = arith.select %192, %194, %190 : vector<8x128xi1>, vector<8x128xf32>
    %c4_i32 = arith.constant 4 : i32
    %196 = vector.broadcast %c4_i32 : i32 to vector<8x128xi32>
    %197 = arith.cmpi eq, %174, %196 : vector<8x128xi32>
    %198 = vector.shape_cast %150 : vector<8x1xf32> to vector<8x1xf32>
    %199 = vector.broadcast %198 : vector<8x1xf32> to vector<8x128xf32>
    %200 = arith.select %197, %199, %195 : vector<8x128xi1>, vector<8x128xf32>
    %c5_i32 = arith.constant 5 : i32
    %201 = vector.broadcast %c5_i32 : i32 to vector<8x128xi32>
    %202 = arith.cmpi eq, %174, %201 : vector<8x128xi32>
    %203 = vector.shape_cast %166 : vector<8x1xf32> to vector<8x1xf32>
    %204 = vector.broadcast %203 : vector<8x1xf32> to vector<8x128xf32>
    %205 = arith.select %202, %204, %200 : vector<8x128xi1>, vector<8x128xf32>
    %c6_i32 = arith.constant 6 : i32
    %206 = vector.broadcast %c6_i32 : i32 to vector<8x128xi32>
    %207 = arith.cmpi eq, %174, %206 : vector<8x128xi32>
    %208 = vector.shape_cast %167 : vector<8x1xf32> to vector<8x1xf32>
    %209 = vector.broadcast %208 : vector<8x1xf32> to vector<8x128xf32>
    %210 = arith.select %207, %209, %205 : vector<8x128xi1>, vector<8x128xf32>
    %c7_i32 = arith.constant 7 : i32
    %211 = vector.broadcast %c7_i32 : i32 to vector<8x128xi32>
    %212 = arith.cmpi eq, %174, %211 : vector<8x128xi32>
    %213 = vector.shape_cast %168 : vector<8x1xf32> to vector<8x1xf32>
    %214 = vector.broadcast %213 : vector<8x1xf32> to vector<8x128xf32>
    %215 = arith.select %212, %214, %210 : vector<8x128xi1>, vector<8x128xf32>
    %c0_70 = arith.constant 0 : index
    %c0_71 = arith.constant 0 : index
    %216 = vector.load %arg20[%c0_70, %c0_71] : memref<8x128xf32, #tpu.memory_space<vmem>>, vector<8x128xf32>
    tpu.vector_store %arg20[%c0_70, %c0_71], %215 {strides = array<i32>} : memref<8x128xf32, #tpu.memory_space<vmem>>, vector<8x128xf32>,
    return
  }
}

</mosaic_0001>

<llo_original>
// kernel: joint_matching_forward.1
$region0: #{joint_matching_forward.1}
  #allocation0 [shape = 'u32[]', space=smem, size = 0x4, offset = 0x4, fixed_abs, tag = 'smem constant byte address 0x4 - core index']
  #allocation1 [shape = 'u32[144,128]{1,0:T(1,128)}', space=vmem, size = 0x12000, scoped, tag = 'internal scratch']
  %s0 = inlined_call_operand.hbm [shape: f32[8,32], index: 0, kind: input, shape index: {}]
  %s1 = inlined_call_operand.hbm [shape: f32[8,64], index: 1, kind: input, shape index: {}]
  %s2 = inlined_call_operand.hbm [shape: f32[8,32], index: 2, kind: input, shape index: {}]
  %s3 = inlined_call_operand.vmem [shape: f32[40,32], index: 3, kind: input, shape index: {}]
  %s4 = inlined_call_operand.hbm [shape: f32[8,32], index: 4, kind: input, shape index: {}]
  %s5 = inlined_call_operand.hbm [shape: f32[8,32], index: 5, kind: input, shape index: {}]
  %s6 = inlined_call_operand.vmem [shape: f32[8,32], index: 6, kind: input, shape index: {}]
  %s7 = inlined_call_operand.hbm [shape: f32[8,5], index: 7, kind: input, shape index: {}]
  %s8 = inlined_call_operand.vmem [shape: f32[64,32], index: 8, kind: input, shape index: {}]
  %s9 = inlined_call_operand.vmem [shape: f32[1,32], index: 9, kind: input, shape index: {}]
  %s10 = inlined_call_operand.vmem [shape: f32[32,64], index: 10, kind: input, shape index: {}]
  %s11 = inlined_call_operand.vmem [shape: f32[1,64], index: 11, kind: input, shape index: {}]
  %s12 = inlined_call_operand.vmem [shape: f32[32,96], index: 12, kind: input, shape index: {}]
  %s13 = inlined_call_operand.vmem [shape: f32[1,96], index: 13, kind: input, shape index: {}]
  %s14 = inlined_call_operand.vmem [shape: f32[32,96], index: 14, kind: input, shape index: {}]
  %s15 = inlined_call_operand.vmem [shape: f32[1,96], index: 15, kind: input, shape index: {}]
  %s16 = inlined_call_operand.hbm [shape: f32[32,96], index: 16, kind: input, shape index: {}]
  %s17 = inlined_call_operand.vmem [shape: f32[1,96], index: 17, kind: input, shape index: {}]
  %s18 = inlined_call_operand.vmem [shape: f32[32,3], index: 18, kind: input, shape index: {}]
  %s19 = inlined_call_operand.vmem [shape: f32[1,3], index: 19, kind: input, shape index: {}]
  %s20 = inlined_call_operand.vmem [shape: f32[8,128], index: 20, kind: output, shape index: {}]
  %s21 = sld [smem:[#allocation0]]
  $region118: #{joint_matching_forward.1} parent=0
    _
  %s23 = ssub.s32 1, %s21
  %s24 = scalar_select 0, %s23, %s21
  $region1: #{joint_matching_forward.1} parent=0
    #allocation2 [shape = 'u8[4096]{0}', space=vmem, size = 0x1000, scoped, tag = 'input window, operand 0, single buffered']
    #allocation3 [shape = 's32[1]{0}', space=sflag, size = 0x4, scoped, tag = 'scoped memory for joint_matching_forward.1']
    #allocation4 [shape = 'u8[4096]{0}', space=vmem, size = 0x1000, scoped, tag = 'input window, operand 1, single buffered']
    #allocation5 [shape = 's32[1]{0}', space=sflag, size = 0x4, scoped, tag = 'scoped memory for joint_matching_forward.1']
    #allocation6 [shape = 'u8[4096]{0}', space=vmem, size = 0x1000, scoped, tag = 'input window, operand 2, single buffered']
    #allocation7 [shape = 'u8[4096]{0}', space=vmem, size = 0x1000, scoped, tag = 'input window, operand 4, single buffered']
    #allocation8 [shape = 's32[1]{0}', space=sflag, size = 0x4, scoped, tag = 'scoped memory for joint_matching_forward.1']
    #allocation9 [shape = 'u8[4096]{0}', space=vmem, size = 0x1000, scoped, tag = 'input window, operand 5, single buffered']
    #allocation10 [shape = 'u8[4096]{0}', space=vmem, size = 0x1000, scoped, tag = 'input window, operand 7, single buffered']
    #allocation11 [shape = 's32[1]{0}', space=sflag, size = 0x4, scoped, tag = 'scoped memory for joint_matching_forward.1']
    #allocation12 [shape = 'u8[16384]{0}', space=vmem, size = 0x4000, scoped, tag = 'input window, operand 16, single buffered']
    %25 = vsyncpa [#allocation3], 0
    %26 = vsyncpa [#allocation5], 0
    %27 = vsyncpa [#allocation8], 0
    %28 = vsyncpa [#allocation11], 0
    // Predicated region
    $region2: #{joint_matching_forward.1} parent=1 // pred_check
      _
    $region3: #{joint_matching_forward.1} parent=1 // pred_check_branch
      %30 = sbr.rel (0) target = $region5
    $region4: #{joint_matching_forward.1} parent=1 // pred_region
      %s32 = ssub.s32 128, 128
      %33 = vsyncadd [#allocation3], %s32
      %s35 = sshll.u32 [#allocation2], 4
      %s36 = int_to_ptr.vmem [resolvable:$true] %s35
      %38 = dma.hbm_to_vmem [thread:$0]  %s0, 128, %s36, [#allocation3]
    $region5: #{joint_matching_forward.1} parent=1 // pred_fallthru
      _
    // Predicated region
    $region6: #{joint_matching_forward.1} parent=1 // pred_check
      _
    $region7: #{joint_matching_forward.1} parent=1 // pred_check_branch
      %40 = sbr.rel (0) target = $region9
    $region8: #{joint_matching_forward.1} parent=1 // pred_region
      %s42 = ssub.s32 128, 128
      %43 = vsyncadd [#allocation5], %s42
      %s45 = sshll.u32 [#allocation4], 4
      %s46 = int_to_ptr.vmem [resolvable:$true] %s45
      %48 = dma.hbm_to_vmem [thread:$0]  %s1, 128, %s46, [#allocation5]
    $region9: #{joint_matching_forward.1} parent=1 // pred_fallthru
      _
    // Predicated region
    $region10: #{joint_matching_forward.1} parent=1 // pred_check
      _
    $region11: #{joint_matching_forward.1} parent=1 // pred_check_branch
      %50 = sbr.rel (0) target = $region13
    $region12: #{joint_matching_forward.1} parent=1 // pred_region
      %s52 = ssub.s32 128, 128
      %53 = vsyncadd [#allocation5], %s52
      %s55 = sshll.u32 [#allocation6], 4
      %s56 = int_to_ptr.vmem [resolvable:$true] %s55
      %58 = dma.hbm_to_vmem [thread:$0]  %s2, 128, %s56, [#allocation5]
    $region13: #{joint_matching_forward.1} parent=1 // pred_fallthru
      _
    // Predicated region
    $region14: #{joint_matching_forward.1} parent=1 // pred_check
      _
    $region15: #{joint_matching_forward.1} parent=1 // pred_check_branch
      %60 = sbr.rel (0) target = $region17
    $region16: #{joint_matching_forward.1} parent=1 // pred_region
      _
    $region17: #{joint_matching_forward.1} parent=1 // pred_fallthru
      _
    // Predicated region
    $region18: #{joint_matching_forward.1} parent=1 // pred_check
      _
    $region19: #{joint_matching_forward.1} parent=1 // pred_check_branch
      %62 = sbr.rel (0) target = $region21
    $region20: #{joint_matching_forward.1} parent=1 // pred_region
      %s64 = ssub.s32 128, 128
      %65 = vsyncadd [#allocation8], %s64
      %s67 = sshll.u32 [#allocation7], 4
      %s68 = int_to_ptr.vmem [resolvable:$true] %s67
      %70 = dma.hbm_to_vmem [thread:$0]  %s4, 128, %s68, [#allocation8]
    $region21: #{joint_matching_forward.1} parent=1 // pred_fallthru
      _
    // Predicated region
    $region22: #{joint_matching_forward.1} parent=1 // pred_check
      _
    $region23: #{joint_matching_forward.1} parent=1 // pred_check_branch
      %72 = sbr.rel (0) target = $region25
    $region24: #{joint_matching_forward.1} parent=1 // pred_region
      %s74 = ssub.s32 128, 128
      %75 = vsyncadd [#allocation8], %s74
      %s77 = sshll.u32 [#allocation9], 4
      %s78 = int_to_ptr.vmem [resolvable:$true] %s77
      %80 = dma.hbm_to_vmem [thread:$0]  %s5, 128, %s78, [#allocation8]
    $region25: #{joint_matching_forward.1} parent=1 // pred_fallthru
      _
    // Predicated region
    $region26: #{joint_matching_forward.1} parent=1 // pred_check
      _
    $region27: #{joint_matching_forward.1} parent=1 // pred_check_branch
      %82 = sbr.rel (0) target = $region29
    $region28: #{joint_matching_forward.1} parent=1 // pred_region
      _
    $region29: #{joint_matching_forward.1} parent=1 // pred_fallthru
      _
    // Predicated region
    $region30: #{joint_matching_forward.1} parent=1 // pred_check
      _
    $region31: #{joint_matching_forward.1} parent=1 // pred_check_branch
      %84 = sbr.rel (0) target = $region33
    $region32: #{joint_matching_forward.1} parent=1 // pred_region
      %s86 = ssub.s32 128, 128
      %87 = vsyncadd [#allocation11], %s86
      %s89 = sshll.u32 [#allocation10], 4
      %s90 = int_to_ptr.vmem [resolvable:$true] %s89
      %92 = dma.hbm_to_vmem [thread:$0]  %s7, 128, %s90, [#allocation11]
    $region33: #{joint_matching_forward.1} parent=1 // pred_fallthru
      _
    // Predicated region
    $region34: #{joint_matching_forward.1} parent=1 // pred_check
      _
    $region35: #{joint_matching_forward.1} parent=1 // pred_check_branch
      %94 = sbr.rel (0) target = $region37
    $region36: #{joint_matching_forward.1} parent=1 // pred_region
      _
    $region37: #{joint_matching_forward.1} parent=1 // pred_fallthru
      _
    // Predicated region
    $region38: #{joint_matching_forward.1} parent=1 // pred_check
      _
    $region39: #{joint_matching_forward.1} parent=1 // pred_check_branch
      %96 = sbr.rel (0) target = $region41
    $region40: #{joint_matching_forward.1} parent=1 // pred_region
      _
    $region41: #{joint_matching_forward.1} parent=1 // pred_fallthru
      _
    // Predicated region
    $region42: #{joint_matching_forward.1} parent=1 // pred_check
      _
    $region43: #{joint_matching_forward.1} parent=1 // pred_check_branch
      %98 = sbr.rel (0) target = $region45
    $region44: #{joint_matching_forward.1} parent=1 // pred_region
      _
    $region45: #{joint_matching_forward.1} parent=1 // pred_fallthru
      _
    // Predicated region
    $region46: #{joint_matching_forward.1} parent=1 // pred_check
      _
    $region47: #{joint_matching_forward.1} parent=1 // pred_check_branch
      %100 = sbr.rel (0) target = $region49
    $region48: #{joint_matching_forward.1} parent=1 // pred_region
      _
    $region49: #{joint_matching_forward.1} parent=1 // pred_fallthru
      _
    // Predicated region
    $region50: #{joint_matching_forward.1} parent=1 // pred_check
      _
    $region51: #{joint_matching_forward.1} parent=1 // pred_check_branch
      %102 = sbr.rel (0) target = $region53
    $region52: #{joint_matching_forward.1} parent=1 // pred_region
      _
    $region53: #{joint_matching_forward.1} parent=1 // pred_fallthru
      _
    // Predicated region
    $region54: #{joint_matching_forward.1} parent=1 // pred_check
      _
    $region55: #{joint_matching_forward.1} parent=1 // pred_check_branch
      %104 = sbr.rel (0) target = $region57
    $region56: #{joint_matching_forward.1} parent=1 // pred_region
      _
    $region57: #{joint_matching_forward.1} parent=1 // pred_fallthru
      _
    // Predicated region
    $region58: #{joint_matching_forward.1} parent=1 // pred_check
      _
    $region59: #{joint_matching_forward.1} parent=1 // pred_check_branch
      %106 = sbr.rel (0) target = $region61
    $region60: #{joint_matching_forward.1} parent=1 // pred_region
      _
    $region61: #{joint_matching_forward.1} parent=1 // pred_fallthru
      _
    // Predicated region
    $region62: #{joint_matching_forward.1} parent=1 // pred_check
      _
    $region63: #{joint_matching_forward.1} parent=1 // pred_check_branch
      %108 = sbr.rel (0) target = $region65
    $region64: #{joint_matching_forward.1} parent=1 // pred_region
      _
    $region65: #{joint_matching_forward.1} parent=1 // pred_fallthru
      _
    // Predicated region
    $region66: #{joint_matching_forward.1} parent=1 // pred_check
      _
    $region67: #{joint_matching_forward.1} parent=1 // pred_check_branch
      %110 = sbr.rel (0) target = $region69
    $region68: #{joint_matching_forward.1} parent=1 // pred_region
      %s112 = ssub.s32 512, 512
      %113 = vsyncadd [#allocation11], %s112
      %s114 = sshll.u32 [#allocation12], 4
      %s115 = int_to_ptr.vmem [resolvable:$true] %s114
      %120 = dma.hbm_to_vmem [thread:$0]  %s16, 512, %s115, [#allocation11], 128, 128, 8
    $region69: #{joint_matching_forward.1} parent=1 // pred_fallthru
      _
    // Predicated region
    $region70: #{joint_matching_forward.1} parent=1 // pred_check
      _
    $region71: #{joint_matching_forward.1} parent=1 // pred_check_branch
      %122 = sbr.rel (0) target = $region73
    $region72: #{joint_matching_forward.1} parent=1 // pred_region
      _
    $region73: #{joint_matching_forward.1} parent=1 // pred_fallthru
      _
    // Predicated region
    $region74: #{joint_matching_forward.1} parent=1 // pred_check
      _
    $region75: #{joint_matching_forward.1} parent=1 // pred_check_branch
      %124 = sbr.rel (0) target = $region77
    $region76: #{joint_matching_forward.1} parent=1 // pred_region
      _
    $region77: #{joint_matching_forward.1} parent=1 // pred_fallthru
      _
    // Predicated region
    $region78: #{joint_matching_forward.1} parent=1 // pred_check
      _
    $region79: #{joint_matching_forward.1} parent=1 // pred_check_branch
      %126 = sbr.rel (0) target = $region81
    $region80: #{joint_matching_forward.1} parent=1 // pred_region
      _
    $region81: #{joint_matching_forward.1} parent=1 // pred_fallthru
      _
    // Predicated region
    $region82: #{joint_matching_forward.1} parent=1 // pred_check
      _
    $region83: #{joint_matching_forward.1} parent=1 // pred_check_branch
      %128 = sbr.rel (0) target = $region85
    $region84: #{joint_matching_forward.1} parent=1 // pred_region
      %129 = dma.done [#allocation3], 128
    $region85: #{joint_matching_forward.1} parent=1 // pred_fallthru
      _
    // Predicated region
    $region86: #{joint_matching_forward.1} parent=1 // pred_check
      _
    $region87: #{joint_matching_forward.1} parent=1 // pred_check_branch
      %131 = sbr.rel (0) target = $region89
    $region88: #{joint_matching_forward.1} parent=1 // pred_region
      %132 = dma.done [#allocation5], 128
    $region89: #{joint_matching_forward.1} parent=1 // pred_fallthru
      _
    // Predicated region
    $region90: #{joint_matching_forward.1} parent=1 // pred_check
      _
    $region91: #{joint_matching_forward.1} parent=1 // pred_check_branch
      %134 = sbr.rel (0) target = $region93
    $region92: #{joint_matching_forward.1} parent=1 // pred_region
      %135 = dma.done [#allocation5], 128
    $region93: #{joint_matching_forward.1} parent=1 // pred_fallthru
      _
    // Predicated region
    $region94: #{joint_matching_forward.1} parent=1 // pred_check
      _
    $region95: #{joint_matching_forward.1} parent=1 // pred_check_branch
      %137 = sbr.rel (0) target = $region97
    $region96: #{joint_matching_forward.1} parent=1 // pred_region
      %138 = dma.done [#allocation8], 128
    $region97: #{joint_matching_forward.1} parent=1 // pred_fallthru
      _
    // Predicated region
    $region98: #{joint_matching_forward.1} parent=1 // pred_check
      _
    $region99: #{joint_matching_forward.1} parent=1 // pred_check_branch
      %140 = sbr.rel (0) target = $region101
    $region100: #{joint_matching_forward.1} parent=1 // pred_region
      %141 = dma.done [#allocation8], 128
    $region101: #{joint_matching_forward.1} parent=1 // pred_fallthru
      _
    // Predicated region
    $region102: #{joint_matching_forward.1} parent=1 // pred_check
      _
    $region103: #{joint_matching_forward.1} parent=1 // pred_check_branch
      %143 = sbr.rel (0) target = $region105
    $region104: #{joint_matching_forward.1} parent=1 // pred_region
      %144 = dma.done [#allocation11], 128
    $region105: #{joint_matching_forward.1} parent=1 // pred_fallthru
      _
    // Predicated region
    $region106: #{joint_matching_forward.1} parent=1 // pred_check
      _
    $region107: #{joint_matching_forward.1} parent=1 // pred_check_branch
      %146 = sbr.rel (0) target = $region109
    $region108: #{joint_matching_forward.1} parent=1 // pred_region
      %147 = dma.done [#allocation11], 512
    $region109: #{joint_matching_forward.1} parent=1 // pred_fallthru
      _
    %v148 = vld [vmem:[#allocation7] sm:$0xff]
    %v149 = vld [vmem:[#allocation9] sm:$0xff]
    %v150 = vld [vmem:[%s6] sm:$0xff]
    %v151 = vld [vmem:[%s14] sm:$0xff]
    %v152 = vld [vmem:[%s14 + $0x8] sm:$0xff]
    %v153 = vld [vmem:[%s14 + $0x10] sm:$0xff]
    %v154 = vld [vmem:[%s14 + $0x18] sm:$0xff]
    %vm155 = vcmask 261120
    %v157 = vsel %vm155, %v148, 0
    %v160 = vsel %vm155, %v149, 0
    %v163 = vsel %vm155, %v150, 0
    %165 = vmatprep.subr.mxu0 0.0
    %166 = vmatpush1.msra.mxu0 0.0
    %167 = vmatprep.subr.mxu0 0.0
    %168 = vmatpush1.msra.mxu0 0.0
    %169 = vmatprep.subr.mxu0 0.0
    %170 = vmatpush1.msra.mxu0 0.0
    %171 = vmatprep.subr.mxu0 0.0
    %172 = vmatpush1.msra.mxu0 0.0
    %173 = vmatprep.subr.mxu0 0.0
    %174 = vmatpush1.msra.mxu0 0.0
    %175 = vmatprep.subr.mxu0 0.0
    %176 = vmatpush1.msra.mxu0 0.0
    %177 = vmatprep.subr.mxu0 0.0
    %178 = vmatpush1.msra.mxu0 0.0
    %179 = vmatprep.subr.mxu0 0.0
    %180 = vmatpush1.msra.mxu0 0.0
    %181 = vmatprep.subr.mxu0 0.0
    %182 = vmatpush1.msra.mxu0 0.0
    %183 = vmatprep.subr.mxu0 0.0
    %184 = vmatpush1.msra.mxu0 0.0
    %185 = vmatprep.subr.mxu0 0.0
    %186 = vmatpush1.msra.mxu0 0.0
    %187 = vmatprep.subr.mxu0 0.0
    %188 = vmatpush1.msra.mxu0 0.0
    %189 = vmatprep.subr.mxu0 0.0
    %v190 = vand.u32 %v154, 4294901760
    %191 = vmatpush1.msra.mxu0 %v190
    %192 = vmatprep.subr.mxu0 0.0
    %v193 = vand.u32 %v153, 4294901760
    %194 = vmatpush1.msra.mxu0 %v193
    %195 = vmatprep.subr.mxu0 0.0
    %v196 = vand.u32 %v152, 4294901760
    %197 = vmatpush1.msra.mxu0 %v196
    %198 = vmatprep.subr.mxu0 0.0
    %v199 = vand.u32 %v151, 4294901760
    %200 = vmatpush1.msra.mxu0 %v199
    %201 = vmatprep.subr.mxu0 0.0
    %202 = vmatpush2.msra.mxu0 0.0
    %203 = vmatprep.subr.mxu0 0.0
    %204 = vmatpush2.msra.mxu0 0.0
    %205 = vmatprep.subr.mxu0 0.0
    %206 = vmatpush2.msra.mxu0 0.0
    %207 = vmatprep.subr.mxu0 0.0
    %208 = vmatpush2.msra.mxu0 0.0
    %209 = vmatprep.subr.mxu0 0.0
    %210 = vmatpush2.msra.mxu0 0.0
    %211 = vmatprep.subr.mxu0 0.0
    %212 = vmatpush2.msra.mxu0 0.0
    %213 = vmatprep.subr.mxu0 0.0
    %214 = vmatpush2.msra.mxu0 0.0
    %215 = vmatprep.subr.mxu0 0.0
    %216 = vmatpush2.msra.mxu0 0.0
    %217 = vmatprep.subr.mxu0 0.0
    %218 = vmatpush2.msra.mxu0 0.0
    %219 = vmatprep.subr.mxu0 0.0
    %220 = vmatpush2.msra.mxu0 0.0
    %221 = vmatprep.subr.mxu0 0.0
    %222 = vmatpush2.msra.mxu0 0.0
    %223 = vmatprep.subr.mxu0 0.0
    %224 = vmatpush2.msra.mxu0 0.0
    %225 = vmatprep.subr.mxu0 0.0
    %226 = vmatpush2.msra.mxu0 0.0
    %227 = vmatprep.subr.mxu0 0.0
    %228 = vmatpush2.msra.mxu0 0.0
    %229 = vmatprep.subr.mxu0 0.0
    %230 = vmatpush2.msra.mxu0 0.0
    %231 = vmatprep.subr.mxu0 0.0
    %232 = vmatpush2.msra.mxu0 0.0
    %233 = vmatprep.mubr.f32.mxu0 0.0
    %v234 = vand.u32 %v157, 4294901760
    %v235 = vsub.f32 %v157, %v234
    %v236 = vand.u32 %v235, 4294901760
    %v237 = vsub.f32 %v235, %v236
    %v238 = vand.u32 %v237, 4294901760
    %239 = vmatmul.mubr.f32.gmra.mxu0 %v238
    %v240 = vpop.f32.mrf.mxu0
    %v241 = vadd.f32 0.0, %v240
    %v242 = vpop.f32.mrf.mxu0
    %243 = vmatprep.mubr.f32.mxu0 0.0
    %v244 = vand.u32 %v160, 4294901760
    %v245 = vsub.f32 %v160, %v244
    %v246 = vand.u32 %v245, 4294901760
    %v247 = vsub.f32 %v245, %v246
    %v248 = vand.u32 %v247, 4294901760
    %249 = vmatmul.mubr.f32.gmra.mxu0 %v248
    %v250 = vpop.f32.mrf.mxu0
    %v251 = vadd.f32 0.0, %v250
    %v252 = vpop.f32.mrf.mxu0
    %253 = vmatprep.mubr.f32.mxu0 0.0
    %v254 = vand.u32 %v163, 4294901760
    %v255 = vsub.f32 %v163, %v254
    %v256 = vand.u32 %v255, 4294901760
    %v257 = vsub.f32 %v255, %v256
    %v258 = vand.u32 %v257, 4294901760
    %259 = vmatmul.mubr.f32.gmra.mxu0 %v258
    %v260 = vpop.f32.mrf.mxu0
    %v261 = vadd.f32 0.0, %v260
    %v262 = vpop.f32.mrf.mxu0
    %263 = vdwg.mxu0
    %264 = vmatprep.subr.mxu0 0.0
    %265 = vmatpush1.msra.mxu0 0.0
    %266 = vmatprep.subr.mxu0 0.0
    %267 = vmatpush1.msra.mxu0 0.0
    %268 = vmatprep.subr.mxu0 0.0
    %269 = vmatpush1.msra.mxu0 0.0
    %270 = vmatprep.subr.mxu0 0.0
    %271 = vmatpush1.msra.mxu0 0.0
    %272 = vmatprep.subr.mxu0 0.0
    %273 = vmatpush1.msra.mxu0 0.0
    %274 = vmatprep.subr.mxu0 0.0
    %275 = vmatpush1.msra.mxu0 0.0
    %276 = vmatprep.subr.mxu0 0.0
    %277 = vmatpush1.msra.mxu0 0.0
    %278 = vmatprep.subr.mxu0 0.0
    %279 = vmatpush1.msra.mxu0 0.0
    %280 = vmatprep.subr.mxu0 0.0
    %281 = vmatpush1.msra.mxu0 0.0
    %282 = vmatprep.subr.mxu0 0.0
    %283 = vmatpush1.msra.mxu0 0.0
    %284 = vmatprep.subr.mxu0 0.0
    %285 = vmatpush1.msra.mxu0 0.0
    %286 = vmatprep.subr.mxu0 0.0
    %287 = vmatpush1.msra.mxu0 0.0
    %288 = vmatprep.subr.mxu0 0.0
    %v289 = vand.u32 %v154, 4294901760
    %v290 = vsub.f32 %v154, %v289
    %v291 = vand.u32 %v290, 4294901760
    %v292 = vsub.f32 %v290, %v291
    %v293 = vand.u32 %v292, 4294901760
    %294 = vmatpush1.msra.mxu0 %v293
    %295 = vmatprep.subr.mxu0 0.0
    %v296 = vand.u32 %v153, 4294901760
    %v297 = vsub.f32 %v153, %v296
    %v298 = vand.u32 %v297, 4294901760
    %v299 = vsub.f32 %v297, %v298
    %v300 = vand.u32 %v299, 4294901760
    %301 = vmatpush1.msra.mxu0 %v300
    %302 = vmatprep.subr.mxu0 0.0
    %v303 = vand.u32 %v152, 4294901760
    %v304 = vsub.f32 %v152, %v303
    %v305 = vand.u32 %v304, 4294901760
    %v306 = vsub.f32 %v304, %v305
    %v307 = vand.u32 %v306, 4294901760
    %308 = vmatpush1.msra.mxu0 %v307
    %309 = vmatprep.subr.mxu0 0.0
    %v310 = vand.u32 %v151, 4294901760
    %v311 = vsub.f32 %v151, %v310
    %v312 = vand.u32 %v311, 4294901760
    %v313 = vsub.f32 %v311, %v312
    %v314 = vand.u32 %v313, 4294901760
    %315 = vmatpush1.msra.mxu0 %v314
    %316 = vmatprep.subr.mxu0 0.0
    %317 = vmatpush2.msra.mxu0 0.0
    %318 = vmatprep.subr.mxu0 0.0
    %319 = vmatpush2.msra.mxu0 0.0
    %320 = vmatprep.subr.mxu0 0.0
    %321 = vmatpush2.msra.mxu0 0.0
    %322 = vmatprep.subr.mxu0 0.0
    %323 = vmatpush2.msra.mxu0 0.0
    %324 = vmatprep.subr.mxu0 0.0
    %325 = vmatpush2.msra.mxu0 0.0
    %326 = vmatprep.subr.mxu0 0.0
    %327 = vmatpush2.msra.mxu0 0.0
    %328 = vmatprep.subr.mxu0 0.0
    %329 = vmatpush2.msra.mxu0 0.0
    %330 = vmatprep.subr.mxu0 0.0
    %331 = vmatpush2.msra.mxu0 0.0
    %332 = vmatprep.subr.mxu0 0.0
    %333 = vmatpush2.msra.mxu0 0.0
    %334 = vmatprep.subr.mxu0 0.0
    %335 = vmatpush2.msra.mxu0 0.0
    %336 = vmatprep.subr.mxu0 0.0
    %337 = vmatpush2.msra.mxu0 0.0
    %338 = vmatprep.subr.mxu0 0.0
    %339 = vmatpush2.msra.mxu0 0.0
    %340 = vmatprep.subr.mxu0 0.0
    %341 = vmatpush2.msra.mxu0 0.0
    %342 = vmatprep.subr.mxu0 0.0
    %343 = vmatpush2.msra.mxu0 0.0
    %344 = vmatprep.subr.mxu0 0.0
    %345 = vmatpush2.msra.mxu0 0.0
    %346 = vmatprep.subr.mxu0 0.0
    %347 = vmatpush2.msra.mxu0 0.0
    %348 = vmatprep.mubr.f32.mxu0 0.0
    %v349 = vand.u32 %v157, 4294901760
    %350 = vmatmul.mubr.f32.gmra.mxu0 %v349
    %v351 = vpop.f32.mrf.mxu0
    %v352 = vadd.f32 %v241, %v351
    %v353 = vpop.f32.mrf.mxu0
    %354 = vmatprep.mubr.f32.mxu0 0.0
    %v355 = vand.u32 %v160, 4294901760
    %356 = vmatmul.mubr.f32.gmra.mxu0 %v355
    %v357 = vpop.f32.mrf.mxu0
    %v358 = vadd.f32 %v251, %v357
    %v359 = vpop.f32.mrf.mxu0
    %360 = vmatprep.mubr.f32.mxu0 0.0
    %v361 = vand.u32 %v163, 4294901760
    %362 = vmatmul.mubr.f32.gmra.mxu0 %v361
    %v363 = vpop.f32.mrf.mxu0
    %v364 = vadd.f32 %v261, %v363
    %v365 = vpop.f32.mrf.mxu0
    %366 = vdwg.mxu0
    %367 = vmatprep.subr.mxu0 0.0
    %368 = vmatpush1.msra.mxu0 0.0
    %369 = vmatprep.subr.mxu0 0.0
    %370 = vmatpush1.msra.mxu0 0.0
    %371 = vmatprep.subr.mxu0 0.0
    %372 = vmatpush1.msra.mxu0 0.0
    %373 = vmatprep.subr.mxu0 0.0
    %374 = vmatpush1.msra.mxu0 0.0
    %375 = vmatprep.subr.mxu0 0.0
    %376 = vmatpush1.msra.mxu0 0.0
    %377 = vmatprep.subr.mxu0 0.0
    %378 = vmatpush1.msra.mxu0 0.0
    %379 = vmatprep.subr.mxu0 0.0
    %380 = vmatpush1.msra.mxu0 0.0
    %381 = vmatprep.subr.mxu0 0.0
    %382 = vmatpush1.msra.mxu0 0.0
    %383 = vmatprep.subr.mxu0 0.0
    %384 = vmatpush1.msra.mxu0 0.0
    %385 = vmatprep.subr.mxu0 0.0
    %386 = vmatpush1.msra.mxu0 0.0
    %387 = vmatprep.subr.mxu0 0.0
    %388 = vmatpush1.msra.mxu0 0.0
    %389 = vmatprep.subr.mxu0 0.0
    %390 = vmatpush1.msra.mxu0 0.0
    %391 = vmatprep.subr.mxu0 0.0
    %v392 = vand.u32 %v154, 4294901760
    %v393 = vsub.f32 %v154, %v392
    %394 = vmatpush1.msra.mxu0 %v393
    %395 = vmatprep.subr.mxu0 0.0
    %v396 = vand.u32 %v153, 4294901760
    %v397 = vsub.f32 %v153, %v396
    %398 = vmatpush1.msra.mxu0 %v397
    %399 = vmatprep.subr.mxu0 0.0
    %v400 = vand.u32 %v152, 4294901760
    %v401 = vsub.f32 %v152, %v400
    %402 = vmatpush1.msra.mxu0 %v401
    %403 = vmatprep.subr.mxu0 0.0
    %v404 = vand.u32 %v151, 4294901760
    %v405 = vsub.f32 %v151, %v404
    %406 = vmatpush1.msra.mxu0 %v405
    %407 = vmatprep.subr.mxu0 0.0
    %408 = vmatpush2.msra.mxu0 0.0
    %409 = vmatprep.subr.mxu0 0.0
    %410 = vmatpush2.msra.mxu0 0.0
    %411 = vmatprep.subr.mxu0 0.0
    %412 = vmatpush2.msra.mxu0 0.0
    %413 = vmatprep.subr.mxu0 0.0
    %414 = vmatpush2.msra.mxu0 0.0
    %415 = vmatprep.subr.mxu0 0.0
    %416 = vmatpush2.msra.mxu0 0.0
    %417 = vmatprep.subr.mxu0 0.0
    %418 = vmatpush2.msra.mxu0 0.0
    %419 = vmatprep.subr.mxu0 0.0
    %420 = vmatpush2.msra.mxu0 0.0
    %421 = vmatprep.subr.mxu0 0.0
    %422 = vmatpush2.msra.mxu0 0.0
    %423 = vmatprep.subr.mxu0 0.0
    %424 = vmatpush2.msra.mxu0 0.0
    %425 = vmatprep.subr.mxu0 0.0
    %426 = vmatpush2.msra.mxu0 0.0
    %427 = vmatprep.subr.mxu0 0.0
    %428 = vmatpush2.msra.mxu0 0.0
    %429 = vmatprep.subr.mxu0 0.0
    %430 = vmatpush2.msra.mxu0 0.0
    %431 = vmatprep.subr.mxu0 0.0
    %432 = vmatpush2.msra.mxu0 0.0
    %433 = vmatprep.subr.mxu0 0.0
    %434 = vmatpush2.msra.mxu0 0.0
    %435 = vmatprep.subr.mxu0 0.0
    %436 = vmatpush2.msra.mxu0 0.0
    %437 = vmatprep.subr.mxu0 0.0
    %438 = vmatpush2.msra.mxu0 0.0
    %439 = vmatprep.mubr.f32.mxu0 0.0
    %v440 = vand.u32 %v157, 4294901760
    %v441 = vsub.f32 %v157, %v440
    %442 = vmatmul.mubr.f32.gmra.mxu0 %v441
    %v443 = vpop.f32.mrf.mxu0
    %v444 = vadd.f32 %v352, %v443
    %v445 = vpop.f32.mrf.mxu0
    %446 = vmatprep.mubr.f32.mxu0 0.0
    %v447 = vand.u32 %v160, 4294901760
    %v448 = vsub.f32 %v160, %v447
    %449 = vmatmul.mubr.f32.gmra.mxu0 %v448
    %v450 = vpop.f32.mrf.mxu0
    %v451 = vadd.f32 %v358, %v450
    %v452 = vpop.f32.mrf.mxu0
    %453 = vmatprep.mubr.f32.mxu0 0.0
    %v454 = vand.u32 %v163, 4294901760
    %v455 = vsub.f32 %v163, %v454
    %456 = vmatmul.mubr.f32.gmra.mxu0 %v455
    %v457 = vpop.f32.mrf.mxu0
    %v458 = vadd.f32 %v364, %v457
    %v459 = vpop.f32.mrf.mxu0
    %460 = vdwg.mxu0
    %461 = vmatprep.subr.mxu0 0.0
    %462 = vmatpush1.msra.mxu0 0.0
    %463 = vmatprep.subr.mxu0 0.0
    %464 = vmatpush1.msra.mxu0 0.0
    %465 = vmatprep.subr.mxu0 0.0
    %466 = vmatpush1.msra.mxu0 0.0
    %467 = vmatprep.subr.mxu0 0.0
    %468 = vmatpush1.msra.mxu0 0.0
    %469 = vmatprep.subr.mxu0 0.0
    %470 = vmatpush1.msra.mxu0 0.0
    %471 = vmatprep.subr.mxu0 0.0
    %472 = vmatpush1.msra.mxu0 0.0
    %473 = vmatprep.subr.mxu0 0.0
    %474 = vmatpush1.msra.mxu0 0.0
    %475 = vmatprep.subr.mxu0 0.0
    %476 = vmatpush1.msra.mxu0 0.0
    %477 = vmatprep.subr.mxu0 0.0
    %478 = vmatpush1.msra.mxu0 0.0
    %479 = vmatprep.subr.mxu0 0.0
    %480 = vmatpush1.msra.mxu0 0.0
    %481 = vmatprep.subr.mxu0 0.0
    %482 = vmatpush1.msra.mxu0 0.0
    %483 = vmatprep.subr.mxu0 0.0
    %484 = vmatpush1.msra.mxu0 0.0
    %485 = vmatprep.subr.mxu0 0.0
    %v486 = vand.u32 %v154, 4294901760
    %487 = vmatpush1.msra.mxu0 %v486
    %488 = vmatprep.subr.mxu0 0.0
    %v489 = vand.u32 %v153, 4294901760
    %490 = vmatpush1.msra.mxu0 %v489
    %491 = vmatprep.subr.mxu0 0.0
    %v492 = vand.u32 %v152, 4294901760
    %493 = vmatpush1.msra.mxu0 %v492
    %494 = vmatprep.subr.mxu0 0.0
    %v495 = vand.u32 %v151, 4294901760
    %496 = vmatpush1.msra.mxu0 %v495
    %497 = vmatprep.subr.mxu0 0.0
    %498 = vmatpush2.msra.mxu0 0.0
    %499 = vmatprep.subr.mxu0 0.0
    %500 = vmatpush2.msra.mxu0 0.0
    %501 = vmatprep.subr.mxu0 0.0
    %502 = vmatpush2.msra.mxu0 0.0
    %503 = vmatprep.subr.mxu0 0.0
    %504 = vmatpush2.msra.mxu0 0.0
    %505 = vmatprep.subr.mxu0 0.0
    %506 = vmatpush2.msra.mxu0 0.0
    %507 = vmatprep.subr.mxu0 0.0
    %508 = vmatpush2.msra.mxu0 0.0
    %509 = vmatprep.subr.mxu0 0.0
    %510 = vmatpush2.msra.mxu0 0.0
    %511 = vmatprep.subr.mxu0 0.0
    %512 = vmatpush2.msra.mxu0 0.0
    %513 = vmatprep.subr.mxu0 0.0
    %514 = vmatpush2.msra.mxu0 0.0
    %515 = vmatprep.subr.mxu0 0.0
    %516 = vmatpush2.msra.mxu0 0.0
    %517 = vmatprep.subr.mxu0 0.0
    %518 = vmatpush2.msra.mxu0 0.0
    %519 = vmatprep.subr.mxu0 0.0
    %520 = vmatpush2.msra.mxu0 0.0
    %521 = vmatprep.subr.mxu0 0.0
    %522 = vmatpush2.msra.mxu0 0.0
    %523 = vmatprep.subr.mxu0 0.0
    %524 = vmatpush2.msra.mxu0 0.0
    %525 = vmatprep.subr.mxu0 0.0
    %526 = vmatpush2.msra.mxu0 0.0
    %527 = vmatprep.subr.mxu0 0.0
    %528 = vmatpush2.msra.mxu0 0.0
    %529 = vmatprep.mubr.f32.mxu0 0.0
    %v530 = vand.u32 %v157, 4294901760
    %v531 = vsub.f32 %v157, %v530
    %v532 = vand.u32 %v531, 4294901760
    %533 = vmatmul.mubr.f32.gmra.mxu0 %v532
    %v534 = vpop.f32.mrf.mxu0
    %v535 = vadd.f32 %v444, %v534
    %v536 = vpop.f32.mrf.mxu0
    %537 = vmatprep.mubr.f32.mxu0 0.0
    %v538 = vand.u32 %v160, 4294901760
    %v539 = vsub.f32 %v160, %v538
    %v540 = vand.u32 %v539, 4294901760
    %541 = vmatmul.mubr.f32.gmra.mxu0 %v540
    %v542 = vpop.f32.mrf.mxu0
    %v543 = vadd.f32 %v451, %v542
    %v544 = vpop.f32.mrf.mxu0
    %545 = vmatprep.mubr.f32.mxu0 0.0
    %v546 = vand.u32 %v163, 4294901760
    %v547 = vsub.f32 %v163, %v546
    %v548 = vand.u32 %v547, 4294901760
    %549 = vmatmul.mubr.f32.gmra.mxu0 %v548
    %v550 = vpop.f32.mrf.mxu0
    %v551 = vadd.f32 %v458, %v550
    %v552 = vpop.f32.mrf.mxu0
    %553 = vdwg.mxu0
    %554 = vmatprep.subr.mxu0 0.0
    %555 = vmatpush1.msra.mxu0 0.0
    %556 = vmatprep.subr.mxu0 0.0
    %557 = vmatpush1.msra.mxu0 0.0
    %558 = vmatprep.subr.mxu0 0.0
    %559 = vmatpush1.msra.mxu0 0.0
    %560 = vmatprep.subr.mxu0 0.0
    %561 = vmatpush1.msra.mxu0 0.0
    %562 = vmatprep.subr.mxu0 0.0
    %563 = vmatpush1.msra.mxu0 0.0
    %564 = vmatprep.subr.mxu0 0.0
    %565 = vmatpush1.msra.mxu0 0.0
    %566 = vmatprep.subr.mxu0 0.0
    %567 = vmatpush1.msra.mxu0 0.0
    %568 = vmatprep.subr.mxu0 0.0
    %569 = vmatpush1.msra.mxu0 0.0
    %570 = vmatprep.subr.mxu0 0.0
    %571 = vmatpush1.msra.mxu0 0.0
    %572 = vmatprep.subr.mxu0 0.0
    %573 = vmatpush1.msra.mxu0 0.0
    %574 = vmatprep.subr.mxu0 0.0
    %575 = vmatpush1.msra.mxu0 0.0
    %576 = vmatprep.subr.mxu0 0.0
    %577 = vmatpush1.msra.mxu0 0.0
    %578 = vmatprep.subr.mxu0 0.0
    %v579 = vand.u32 %v154, 4294901760
    %v580 = vsub.f32 %v154, %v579
    %v581 = vand.u32 %v580, 4294901760
    %582 = vmatpush1.msra.mxu0 %v581
    %583 = vmatprep.subr.mxu0 0.0
    %v584 = vand.u32 %v153, 4294901760
    %v585 = vsub.f32 %v153, %v584
    %v586 = vand.u32 %v585, 4294901760
    %587 = vmatpush1.msra.mxu0 %v586
    %588 = vmatprep.subr.mxu0 0.0
    %v589 = vand.u32 %v152, 4294901760
    %v590 = vsub.f32 %v152, %v589
    %v591 = vand.u32 %v590, 4294901760
    %592 = vmatpush1.msra.mxu0 %v591
    %593 = vmatprep.subr.mxu0 0.0
    %v594 = vand.u32 %v151, 4294901760
    %v595 = vsub.f32 %v151, %v594
    %v596 = vand.u32 %v595, 4294901760
    %597 = vmatpush1.msra.mxu0 %v596
    %598 = vmatprep.subr.mxu0 0.0
    %599 = vmatpush2.msra.mxu0 0.0
    %600 = vmatprep.subr.mxu0 0.0
    %601 = vmatpush2.msra.mxu0 0.0
    %602 = vmatprep.subr.mxu0 0.0
    %603 = vmatpush2.msra.mxu0 0.0
    %604 = vmatprep.subr.mxu0 0.0
    %605 = vmatpush2.msra.mxu0 0.0
    %606 = vmatprep.subr.mxu0 0.0
    %607 = vmatpush2.msra.mxu0 0.0
    %608 = vmatprep.subr.mxu0 0.0
    %609 = vmatpush2.msra.mxu0 0.0
    %610 = vmatprep.subr.mxu0 0.0
    %611 = vmatpush2.msra.mxu0 0.0
    %612 = vmatprep.subr.mxu0 0.0
    %613 = vmatpush2.msra.mxu0 0.0
    %614 = vmatprep.subr.mxu0 0.0
    %615 = vmatpush2.msra.mxu0 0.0
    %616 = vmatprep.subr.mxu0 0.0
    %617 = vmatpush2.msra.mxu0 0.0
    %618 = vmatprep.subr.mxu0 0.0
    %619 = vmatpush2.msra.mxu0 0.0
    %620 = vmatprep.subr.mxu0 0.0
    %621 = vmatpush2.msra.mxu0 0.0
    %622 = vmatprep.subr.mxu0 0.0
    %623 = vmatpush2.msra.mxu0 0.0
    %624 = vmatprep.subr.mxu0 0.0
    %625 = vmatpush2.msra.mxu0 0.0
    %626 = vmatprep.subr.mxu0 0.0
    %627 = vmatpush2.msra.mxu0 0.0
    %628 = vmatprep.subr.mxu0 0.0
    %629 = vmatpush2.msra.mxu0 0.0
    %630 = vmatprep.mubr.f32.mxu0 0.0
    %v631 = vand.u32 %v157, 4294901760
    %632 = vmatmul.mubr.f32.gmra.mxu0 %v631
    %v633 = vpop.f32.mrf.mxu0
    %v634 = vadd.f32 %v535, %v633
    %v635 = vpop.f32.mrf.mxu0
    %636 = vmatprep.mubr.f32.mxu0 0.0
    %v637 = vand.u32 %v160, 4294901760
    %638 = vmatmul.mubr.f32.gmra.mxu0 %v637
    %v639 = vpop.f32.mrf.mxu0
    %v640 = vadd.f32 %v543, %v639
    %v641 = vpop.f32.mrf.mxu0
    %642 = vmatprep.mubr.f32.mxu0 0.0
    %v643 = vand.u32 %v163, 4294901760
    %644 = vmatmul.mubr.f32.gmra.mxu0 %v643
    %v645 = vpop.f32.mrf.mxu0
    %v646 = vadd.f32 %v551, %v645
    %v647 = vpop.f32.mrf.mxu0
    %648 = vdwg.mxu0
    %649 = vmatprep.subr.mxu0 0.0
    %650 = vmatpush1.msra.mxu0 0.0
    %651 = vmatprep.subr.mxu0 0.0
    %652 = vmatpush1.msra.mxu0 0.0
    %653 = vmatprep.subr.mxu0 0.0
    %654 = vmatpush1.msra.mxu0 0.0
    %655 = vmatprep.subr.mxu0 0.0
    %656 = vmatpush1.msra.mxu0 0.0
    %657 = vmatprep.subr.mxu0 0.0
    %658 = vmatpush1.msra.mxu0 0.0
    %659 = vmatprep.subr.mxu0 0.0
    %660 = vmatpush1.msra.mxu0 0.0
    %661 = vmatprep.subr.mxu0 0.0
    %662 = vmatpush1.msra.mxu0 0.0
    %663 = vmatprep.subr.mxu0 0.0
    %664 = vmatpush1.msra.mxu0 0.0
    %665 = vmatprep.subr.mxu0 0.0
    %666 = vmatpush1.msra.mxu0 0.0
    %667 = vmatprep.subr.mxu0 0.0
    %668 = vmatpush1.msra.mxu0 0.0
    %669 = vmatprep.subr.mxu0 0.0
    %670 = vmatpush1.msra.mxu0 0.0
    %671 = vmatprep.subr.mxu0 0.0
    %672 = vmatpush1.msra.mxu0 0.0
    %673 = vmatprep.subr.mxu0 0.0
    %v674 = vand.u32 %v154, 4294901760
    %675 = vmatpush1.msra.mxu0 %v674
    %676 = vmatprep.subr.mxu0 0.0
    %v677 = vand.u32 %v153, 4294901760
    %678 = vmatpush1.msra.mxu0 %v677
    %679 = vmatprep.subr.mxu0 0.0
    %v680 = vand.u32 %v152, 4294901760
    %681 = vmatpush1.msra.mxu0 %v680
    %682 = vmatprep.subr.mxu0 0.0
    %v683 = vand.u32 %v151, 4294901760
    %684 = vmatpush1.msra.mxu0 %v683
    %685 = vmatprep.subr.mxu0 0.0
    %686 = vmatpush2.msra.mxu0 0.0
    %687 = vmatprep.subr.mxu0 0.0
    %688 = vmatpush2.msra.mxu0 0.0
    %689 = vmatprep.subr.mxu0 0.0
    %690 = vmatpush2.msra.mxu0 0.0
    %691 = vmatprep.subr.mxu0 0.0
    %692 = vmatpush2.msra.mxu0 0.0
    %693 = vmatprep.subr.mxu0 0.0
    %694 = vmatpush2.msra.mxu0 0.0
    %695 = vmatprep.subr.mxu0 0.0
    %696 = vmatpush2.msra.mxu0 0.0
    %697 = vmatprep.subr.mxu0 0.0
    %698 = vmatpush2.msra.mxu0 0.0
    %699 = vmatprep.subr.mxu0 0.0
    %700 = vmatpush2.msra.mxu0 0.0
    %701 = vmatprep.subr.mxu0 0.0
    %702 = vmatpush2.msra.mxu0 0.0
    %703 = vmatprep.subr.mxu0 0.0
    %704 = vmatpush2.msra.mxu0 0.0
    %705 = vmatprep.subr.mxu0 0.0
    %706 = vmatpush2.msra.mxu0 0.0
    %707 = vmatprep.subr.mxu0 0.0
    %708 = vmatpush2.msra.mxu0 0.0
    %709 = vmatprep.subr.mxu0 0.0
    %710 = vmatpush2.msra.mxu0 0.0
    %711 = vmatprep.subr.mxu0 0.0
    %712 = vmatpush2.msra.mxu0 0.0
    %713 = vmatprep.subr.mxu0 0.0
    %714 = vmatpush2.msra.mxu0 0.0
    %715 = vmatprep.subr.mxu0 0.0
    %716 = vmatpush2.msra.mxu0 0.0
    %717 = vmatprep.mubr.f32.mxu0 0.0
    %v718 = vand.u32 %v157, 4294901760
    %719 = vmatmul.mubr.f32.gmra.mxu0 %v718
    %v720 = vpop.f32.mrf.mxu0
    %v721 = vadd.f32 %v634, %v720
    %v722 = vpop.f32.mrf.mxu0
    %723 = vmatprep.mubr.f32.mxu0 0.0
    %v724 = vand.u32 %v160, 4294901760
    %725 = vmatmul.mubr.f32.gmra.mxu0 %v724
    %v726 = vpop.f32.mrf.mxu0
    %v727 = vadd.f32 %v640, %v726
    %v728 = vpop.f32.mrf.mxu0
    %729 = vmatprep.mubr.f32.mxu0 0.0
    %v730 = vand.u32 %v163, 4294901760
    %731 = vmatmul.mubr.f32.gmra.mxu0 %v730
    %v732 = vpop.f32.mrf.mxu0
    %v733 = vadd.f32 %v646, %v732
    %v734 = vpop.f32.mrf.mxu0
    %735 = vdwg.mxu0
    %v736 = vld [vmem:[%s15] sm:$0x1]
    %v738 = vlaneseq
    %v739 = vshrl.u32 %v738, 7
    %v740 = vsub.s32 0, %v739
    %v741 = vrot.slane %v736, %v740
    %v743 = vadd.f32 %v721, %v741
    %v744 = vadd.f32 %v727, %v741
    %v745 = vadd.f32 %v733, %v741
    %747 = vrot.lane.b32.xlu0 %v744, 96
    %v748 = vpop.permute.xlu0 %747
    %751 = vrot.lane.b32.xlu0 %v745, 64
    %v752 = vpop.permute.xlu0 %751
    %v754 = vmax.f32 %v743, 0.0
    %v755 = vmax.f32 %v748, 0.0
    %v756 = vmax.f32 %v752, 0.0
    %v757 = vld [vmem:[#allocation12] sm:$0xff]
    %v758 = vld [vmem:[#allocation12 + $0x8] sm:$0xff]
    %v759 = vld [vmem:[#allocation12 + $0x10] sm:$0xff]
    %v760 = vld [vmem:[#allocation12 + $0x18] sm:$0xff]
    %v762 = vsel %vm155, %v754, 0
    %v765 = vsel %vm155, %v755, 0
    %v768 = vsel %vm155, %v756, 0
    %770 = vmatprep.subr.mxu0 0.0
    %771 = vmatpush1.msra.mxu0 0.0
    %772 = vmatprep.subr.mxu0 0.0
    %773 = vmatpush1.msra.mxu0 0.0
    %774 = vmatprep.subr.mxu0 0.0
    %775 = vmatpush1.msra.mxu0 0.0
    %776 = vmatprep.subr.mxu0 0.0
    %777 = vmatpush1.msra.mxu0 0.0
    %778 = vmatprep.subr.mxu0 0.0
    %779 = vmatpush1.msra.mxu0 0.0
    %780 = vmatprep.subr.mxu0 0.0
    %781 = vmatpush1.msra.mxu0 0.0
    %782 = vmatprep.subr.mxu0 0.0
    %783 = vmatpush1.msra.mxu0 0.0
    %784 = vmatprep.subr.mxu0 0.0
    %785 = vmatpush1.msra.mxu0 0.0
    %786 = vmatprep.subr.mxu0 0.0
    %787 = vmatpush1.msra.mxu0 0.0
    %788 = vmatprep.subr.mxu0 0.0
    %789 = vmatpush1.msra.mxu0 0.0
    %790 = vmatprep.subr.mxu0 0.0
    %791 = vmatpush1.msra.mxu0 0.0
    %792 = vmatprep.subr.mxu0 0.0
    %793 = vmatpush1.msra.mxu0 0.0
    %794 = vmatprep.subr.mxu0 0.0
    %v795 = vand.u32 %v760, 4294901760
    %796 = vmatpush1.msra.mxu0 %v795
    %797 = vmatprep.subr.mxu0 0.0
    %v798 = vand.u32 %v759, 4294901760
    %799 = vmatpush1.msra.mxu0 %v798
    %800 = vmatprep.subr.mxu0 0.0
    %v801 = vand.u32 %v758, 4294901760
    %802 = vmatpush1.msra.mxu0 %v801
    %803 = vmatprep.subr.mxu0 0.0
    %v804 = vand.u32 %v757, 4294901760
    %805 = vmatpush1.msra.mxu0 %v804
    %806 = vmatprep.subr.mxu0 0.0
    %807 = vmatpush2.msra.mxu0 0.0
    %808 = vmatprep.subr.mxu0 0.0
    %809 = vmatpush2.msra.mxu0 0.0
    %810 = vmatprep.subr.mxu0 0.0
    %811 = vmatpush2.msra.mxu0 0.0
    %812 = vmatprep.subr.mxu0 0.0
    %813 = vmatpush2.msra.mxu0 0.0
    %814 = vmatprep.subr.mxu0 0.0
    %815 = vmatpush2.msra.mxu0 0.0
    %816 = vmatprep.subr.mxu0 0.0
    %817 = vmatpush2.msra.mxu0 0.0
    %818 = vmatprep.subr.mxu0 0.0
    %819 = vmatpush2.msra.mxu0 0.0
    %820 = vmatprep.subr.mxu0 0.0
    %821 = vmatpush2.msra.mxu0 0.0
    %822 = vmatprep.subr.mxu0 0.0
    %823 = vmatpush2.msra.mxu0 0.0
    %824 = vmatprep.subr.mxu0 0.0
    %825 = vmatpush2.msra.mxu0 0.0
    %826 = vmatprep.subr.mxu0 0.0
    %827 = vmatpush2.msra.mxu0 0.0
    %828 = vmatprep.subr.mxu0 0.0
    %829 = vmatpush2.msra.mxu0 0.0
    %830 = vmatprep.subr.mxu0 0.0
    %831 = vmatpush2.msra.mxu0 0.0
    %832 = vmatprep.subr.mxu0 0.0
    %833 = vmatpush2.msra.mxu0 0.0
    %834 = vmatprep.subr.mxu0 0.0
    %835 = vmatpush2.msra.mxu0 0.0
    %836 = vmatprep.subr.mxu0 0.0
    %837 = vmatpush2.msra.mxu0 0.0
    %838 = vmatprep.mubr.f32.mxu0 0.0
    %v839 = vand.u32 %v762, 4294901760
    %v840 = vsub.f32 %v762, %v839
    %v841 = vand.u32 %v840, 4294901760
    %v842 = vsub.f32 %v840, %v841
    %v843 = vand.u32 %v842, 4294901760
    %844 = vmatmul.mubr.f32.gmra.mxu0 %v843
    %v845 = vpop.f32.mrf.mxu0
    %v846 = vadd.f32 0.0, %v845
    %v847 = vpop.f32.mrf.mxu0
    %848 = vmatprep.mubr.f32.mxu0 0.0
    %v849 = vand.u32 %v765, 4294901760
    %v850 = vsub.f32 %v765, %v849
    %v851 = vand.u32 %v850, 4294901760
    %v852 = vsub.f32 %v850, %v851
    %v853 = vand.u32 %v852, 4294901760
    %854 = vmatmul.mubr.f32.gmra.mxu0 %v853
    %v855 = vpop.f32.mrf.mxu0
    %v856 = vadd.f32 0.0, %v855
    %v857 = vpop.f32.mrf.mxu0
    %858 = vmatprep.mubr.f32.mxu0 0.0
    %v859 = vand.u32 %v768, 4294901760
    %v860 = vsub.f32 %v768, %v859
    %v861 = vand.u32 %v860, 4294901760
    %v862 = vsub.f32 %v860, %v861
    %v863 = vand.u32 %v862, 4294901760
    %864 = vmatmul.mubr.f32.gmra.mxu0 %v863
    %v865 = vpop.f32.mrf.mxu0
    %v866 = vadd.f32 0.0, %v865
    %v867 = vpop.f32.mrf.mxu0
    %868 = vdwg.mxu0
    %869 = vmatprep.subr.mxu0 0.0
    %870 = vmatpush1.msra.mxu0 0.0
    %871 = vmatprep.subr.mxu0 0.0
    %872 = vmatpush1.msra.mxu0 0.0
    %873 = vmatprep.subr.mxu0 0.0
    %874 = vmatpush1.msra.mxu0 0.0
    %875 = vmatprep.subr.mxu0 0.0
    %876 = vmatpush1.msra.mxu0 0.0
    %877 = vmatprep.subr.mxu0 0.0
    %878 = vmatpush1.msra.mxu0 0.0
    %879 = vmatprep.subr.mxu0 0.0
    %880 = vmatpush1.msra.mxu0 0.0
    %881 = vmatprep.subr.mxu0 0.0
    %882 = vmatpush1.msra.mxu0 0.0
    %883 = vmatprep.subr.mxu0 0.0
    %884 = vmatpush1.msra.mxu0 0.0
    %885 = vmatprep.subr.mxu0 0.0
    %886 = vmatpush1.msra.mxu0 0.0
    %887 = vmatprep.subr.mxu0 0.0
    %888 = vmatpush1.msra.mxu0 0.0
    %889 = vmatprep.subr.mxu0 0.0
    %890 = vmatpush1.msra.mxu0 0.0
    %891 = vmatprep.subr.mxu0 0.0
    %892 = vmatpush1.msra.mxu0 0.0
    %893 = vmatprep.subr.mxu0 0.0
    %v894 = vand.u32 %v760, 4294901760
    %v895 = vsub.f32 %v760, %v894
    %v896 = vand.u32 %v895, 4294901760
    %v897 = vsub.f32 %v895, %v896
    %v898 = vand.u32 %v897, 4294901760
    %899 = vmatpush1.msra.mxu0 %v898
    %900 = vmatprep.subr.mxu0 0.0
    %v901 = vand.u32 %v759, 4294901760
    %v902 = vsub.f32 %v759, %v901
    %v903 = vand.u32 %v902, 4294901760
    %v904 = vsub.f32 %v902, %v903
    %v905 = vand.u32 %v904, 4294901760
    %906 = vmatpush1.msra.mxu0 %v905
    %907 = vmatprep.subr.mxu0 0.0
    %v908 = vand.u32 %v758, 4294901760
    %v909 = vsub.f32 %v758, %v908
    %v910 = vand.u32 %v909, 4294901760
    %v911 = vsub.f32 %v909, %v910
    %v912 = vand.u32 %v911, 4294901760
    %913 = vmatpush1.msra.mxu0 %v912
    %914 = vmatprep.subr.mxu0 0.0
    %v915 = vand.u32 %v757, 4294901760
    %v916 = vsub.f32 %v757, %v915
    %v917 = vand.u32 %v916, 4294901760
    %v918 = vsub.f32 %v916, %v917
    %v919 = vand.u32 %v918, 4294901760
    %920 = vmatpush1.msra.mxu0 %v919
    %921 = vmatprep.subr.mxu0 0.0
    %922 = vmatpush2.msra.mxu0 0.0
    %923 = vmatprep.subr.mxu0 0.0
    %924 = vmatpush2.msra.mxu0 0.0
    %925 = vmatprep.subr.mxu0 0.0
    %926 = vmatpush2.msra.mxu0 0.0
    %927 = vmatprep.subr.mxu0 0.0
    %928 = vmatpush2.msra.mxu0 0.0
    %929 = vmatprep.subr.mxu0 0.0
    %930 = vmatpush2.msra.mxu0 0.0
    %931 = vmatprep.subr.mxu0 0.0
    %932 = vmatpush2.msra.mxu0 0.0
    %933 = vmatprep.subr.mxu0 0.0
    %934 = vmatpush2.msra.mxu0 0.0
    %935 = vmatprep.subr.mxu0 0.0
    %936 = vmatpush2.msra.mxu0 0.0
    %937 = vmatprep.subr.mxu0 0.0
    %938 = vmatpush2.msra.mxu0 0.0
    %939 = vmatprep.subr.mxu0 0.0
    %940 = vmatpush2.msra.mxu0 0.0
    %941 = vmatprep.subr.mxu0 0.0
    %942 = vmatpush2.msra.mxu0 0.0
    %943 = vmatprep.subr.mxu0 0.0
    %944 = vmatpush2.msra.mxu0 0.0
    %945 = vmatprep.subr.mxu0 0.0
    %946 = vmatpush2.msra.mxu0 0.0
    %947 = vmatprep.subr.mxu0 0.0
    %948 = vmatpush2.msra.mxu0 0.0
    %949 = vmatprep.subr.mxu0 0.0
    %950 = vmatpush2.msra.mxu0 0.0
    %951 = vmatprep.subr.mxu0 0.0
    %952 = vmatpush2.msra.mxu0 0.0
    %953 = vmatprep.mubr.f32.mxu0 0.0
    %v954 = vand.u32 %v762, 4294901760
    %955 = vmatmul.mubr.f32.gmra.mxu0 %v954
    %v956 = vpop.f32.mrf.mxu0
    %v957 = vadd.f32 %v846, %v956
    %v958 = vpop.f32.mrf.mxu0
    %959 = vmatprep.mubr.f32.mxu0 0.0
    %v960 = vand.u32 %v765, 4294901760
    %961 = vmatmul.mubr.f32.gmra.mxu0 %v960
    %v962 = vpop.f32.mrf.mxu0
    %v963 = vadd.f32 %v856, %v962
    %v964 = vpop.f32.mrf.mxu0
    %965 = vmatprep.mubr.f32.mxu0 0.0
    %v966 = vand.u32 %v768, 4294901760
    %967 = vmatmul.mubr.f32.gmra.mxu0 %v966
    %v968 = vpop.f32.mrf.mxu0
    %v969 = vadd.f32 %v866, %v968
    %v970 = vpop.f32.mrf.mxu0
    %971 = vdwg.mxu0
    %972 = vmatprep.subr.mxu0 0.0
    %973 = vmatpush1.msra.mxu0 0.0
    %974 = vmatprep.subr.mxu0 0.0
    %975 = vmatpush1.msra.mxu0 0.0
    %976 = vmatprep.subr.mxu0 0.0
    %977 = vmatpush1.msra.mxu0 0.0
    %978 = vmatprep.subr.mxu0 0.0
    %979 = vmatpush1.msra.mxu0 0.0
    %980 = vmatprep.subr.mxu0 0.0
    %981 = vmatpush1.msra.mxu0 0.0
    %982 = vmatprep.subr.mxu0 0.0
    %983 = vmatpush1.msra.mxu0 0.0
    %984 = vmatprep.subr.mxu0 0.0
    %985 = vmatpush1.msra.mxu0 0.0
    %986 = vmatprep.subr.mxu0 0.0
    %987 = vmatpush1.msra.mxu0 0.0
    %988 = vmatprep.subr.mxu0 0.0
    %989 = vmatpush1.msra.mxu0 0.0
    %990 = vmatprep.subr.mxu0 0.0
    %991 = vmatpush1.msra.mxu0 0.0
    %992 = vmatprep.subr.mxu0 0.0
    %993 = vmatpush1.msra.mxu0 0.0
    %994 = vmatprep.subr.mxu0 0.0
    %995 = vmatpush1.msra.mxu0 0.0
    %996 = vmatprep.subr.mxu0 0.0
    %v997 = vand.u32 %v760, 4294901760
    %v998 = vsub.f32 %v760, %v997
    %999 = vmatpush1.msra.mxu0 %v998
    %1000 = vmatprep.subr.mxu0 0.0
    %v1001 = vand.u32 %v759, 4294901760
    %v1002 = vsub.f32 %v759, %v1001
    %1003 = vmatpush1.msra.mxu0 %v1002
    %1004 = vmatprep.subr.mxu0 0.0
    %v1005 = vand.u32 %v758, 4294901760
    %v1006 = vsub.f32 %v758, %v1005
    %1007 = vmatpush1.msra.mxu0 %v1006
    %1008 = vmatprep.subr.mxu0 0.0
    %v1009 = vand.u32 %v757, 4294901760
    %v1010 = vsub.f32 %v757, %v1009
    %1011 = vmatpush1.msra.mxu0 %v1010
    %1012 = vmatprep.subr.mxu0 0.0
    %1013 = vmatpush2.msra.mxu0 0.0
    %1014 = vmatprep.subr.mxu0 0.0
    %1015 = vmatpush2.msra.mxu0 0.0
    %1016 = vmatprep.subr.mxu0 0.0
    %1017 = vmatpush2.msra.mxu0 0.0
    %1018 = vmatprep.subr.mxu0 0.0
    %1019 = vmatpush2.msra.mxu0 0.0
    %1020 = vmatprep.subr.mxu0 0.0
    %1021 = vmatpush2.msra.mxu0 0.0
    %1022 = vmatprep.subr.mxu0 0.0
    %1023 = vmatpush2.msra.mxu0 0.0
    %1024 = vmatprep.subr.mxu0 0.0
    %1025 = vmatpush2.msra.mxu0 0.0
    %1026 = vmatprep.subr.mxu0 0.0
    %1027 = vmatpush2.msra.mxu0 0.0
    %1028 = vmatprep.subr.mxu0 0.0
    %1029 = vmatpush2.msra.mxu0 0.0
    %1030 = vmatprep.subr.mxu0 0.0
    %1031 = vmatpush2.msra.mxu0 0.0
    %1032 = vmatprep.subr.mxu0 0.0
    %1033 = vmatpush2.msra.mxu0 0.0
    %1034 = vmatprep.subr.mxu0 0.0
    %1035 = vmatpush2.msra.mxu0 0.0
    %1036 = vmatprep.subr.mxu0 0.0
    %1037 = vmatpush2.msra.mxu0 0.0
    %1038 = vmatprep.subr.mxu0 0.0
    %1039 = vmatpush2.msra.mxu0 0.0
    %1040 = vmatprep.subr.mxu0 0.0
    %1041 = vmatpush2.msra.mxu0 0.0
    %1042 = vmatprep.subr.mxu0 0.0
    %1043 = vmatpush2.msra.mxu0 0.0
    %1044 = vmatprep.mubr.f32.mxu0 0.0
    %v1045 = vand.u32 %v762, 4294901760
    %v1046 = vsub.f32 %v762, %v1045
    %1047 = vmatmul.mubr.f32.gmra.mxu0 %v1046
    %v1048 = vpop.f32.mrf.mxu0
    %v1049 = vadd.f32 %v957, %v1048
    %v1050 = vpop.f32.mrf.mxu0
    %1051 = vmatprep.mubr.f32.mxu0 0.0
    %v1052 = vand.u32 %v765, 4294901760
    %v1053 = vsub.f32 %v765, %v1052
    %1054 = vmatmul.mubr.f32.gmra.mxu0 %v1053
    %v1055 = vpop.f32.mrf.mxu0
    %v1056 = vadd.f32 %v963, %v1055
    %v1057 = vpop.f32.mrf.mxu0
    %1058 = vmatprep.mubr.f32.mxu0 0.0
    %v1059 = vand.u32 %v768, 4294901760
    %v1060 = vsub.f32 %v768, %v1059
    %1061 = vmatmul.mubr.f32.gmra.mxu0 %v1060
    %v1062 = vpop.f32.mrf.mxu0
    %v1063 = vadd.f32 %v969, %v1062
    %v1064 = vpop.f32.mrf.mxu0
    %1065 = vdwg.mxu0
    %1066 = vmatprep.subr.mxu0 0.0
    %1067 = vmatpush1.msra.mxu0 0.0
    %1068 = vmatprep.subr.mxu0 0.0
    %1069 = vmatpush1.msra.mxu0 0.0
    %1070 = vmatprep.subr.mxu0 0.0
    %1071 = vmatpush1.msra.mxu0 0.0
    %1072 = vmatprep.subr.mxu0 0.0
    %1073 = vmatpush1.msra.mxu0 0.0
    %1074 = vmatprep.subr.mxu0 0.0
    %1075 = vmatpush1.msra.mxu0 0.0
    %1076 = vmatprep.subr.mxu0 0.0
    %1077 = vmatpush1.msra.mxu0 0.0
    %1078 = vmatprep.subr.mxu0 0.0
    %1079 = vmatpush1.msra.mxu0 0.0
    %1080 = vmatprep.subr.mxu0 0.0
    %1081 = vmatpush1.msra.mxu0 0.0
    %1082 = vmatprep.subr.mxu0 0.0
    %1083 = vmatpush1.msra.mxu0 0.0
    %1084 = vmatprep.subr.mxu0 0.0
    %1085 = vmatpush1.msra.mxu0 0.0
    %1086 = vmatprep.subr.mxu0 0.0
    %1087 = vmatpush1.msra.mxu0 0.0
    %1088 = vmatprep.subr.mxu0 0.0
    %1089 = vmatpush1.msra.mxu0 0.0
    %1090 = vmatprep.subr.mxu0 0.0
    %v1091 = vand.u32 %v760, 4294901760
    %1092 = vmatpush1.msra.mxu0 %v1091
    %1093 = vmatprep.subr.mxu0 0.0
    %v1094 = vand.u32 %v759, 4294901760
    %1095 = vmatpush1.msra.mxu0 %v1094
    %1096 = vmatprep.subr.mxu0 0.0
    %v1097 = vand.u32 %v758, 4294901760
    %1098 = vmatpush1.msra.mxu0 %v1097
    %1099 = vmatprep.subr.mxu0 0.0
    %v1100 = vand.u32 %v757, 4294901760
    %1101 = vmatpush1.msra.mxu0 %v1100
    %1102 = vmatprep.subr.mxu0 0.0
    %1103 = vmatpush2.msra.mxu0 0.0
    %1104 = vmatprep.subr.mxu0 0.0
    %1105 = vmatpush2.msra.mxu0 0.0
    %1106 = vmatprep.subr.mxu0 0.0
    %1107 = vmatpush2.msra.mxu0 0.0
    %1108 = vmatprep.subr.mxu0 0.0
    %1109 = vmatpush2.msra.mxu0 0.0
    %1110 = vmatprep.subr.mxu0 0.0
    %1111 = vmatpush2.msra.mxu0 0.0
    %1112 = vmatprep.subr.mxu0 0.0
    %1113 = vmatpush2.msra.mxu0 0.0
    %1114 = vmatprep.subr.mxu0 0.0
    %1115 = vmatpush2.msra.mxu0 0.0
    %1116 = vmatprep.subr.mxu0 0.0
    %1117 = vmatpush2.msra.mxu0 0.0
    %1118 = vmatprep.subr.mxu0 0.0
    %1119 = vmatpush2.msra.mxu0 0.0
    %1120 = vmatprep.subr.mxu0 0.0
    %1121 = vmatpush2.msra.mxu0 0.0
    %1122 = vmatprep.subr.mxu0 0.0
    %1123 = vmatpush2.msra.mxu0 0.0
    %1124 = vmatprep.subr.mxu0 0.0
    %1125 = vmatpush2.msra.mxu0 0.0
    %1126 = vmatprep.subr.mxu0 0.0
    %1127 = vmatpush2.msra.mxu0 0.0
    %1128 = vmatprep.subr.mxu0 0.0
    %1129 = vmatpush2.msra.mxu0 0.0
    %1130 = vmatprep.subr.mxu0 0.0
    %1131 = vmatpush2.msra.mxu0 0.0
    %1132 = vmatprep.subr.mxu0 0.0
    %1133 = vmatpush2.msra.mxu0 0.0
    %1134 = vmatprep.mubr.f32.mxu0 0.0
    %v1135 = vand.u32 %v762, 4294901760
    %v1136 = vsub.f32 %v762, %v1135
    %v1137 = vand.u32 %v1136, 4294901760
    %1138 = vmatmul.mubr.f32.gmra.mxu0 %v1137
    %v1139 = vpop.f32.mrf.mxu0
    %v1140 = vadd.f32 %v1049, %v1139
    %v1141 = vpop.f32.mrf.mxu0
    %1142 = vmatprep.mubr.f32.mxu0 0.0
    %v1143 = vand.u32 %v765, 4294901760
    %v1144 = vsub.f32 %v765, %v1143
    %v1145 = vand.u32 %v1144, 4294901760
    %1146 = vmatmul.mubr.f32.gmra.mxu0 %v1145
    %v1147 = vpop.f32.mrf.mxu0
    %v1148 = vadd.f32 %v1056, %v1147
    %v1149 = vpop.f32.mrf.mxu0
    %1150 = vmatprep.mubr.f32.mxu0 0.0
    %v1151 = vand.u32 %v768, 4294901760
    %v1152 = vsub.f32 %v768, %v1151
    %v1153 = vand.u32 %v1152, 4294901760
    %1154 = vmatmul.mubr.f32.gmra.mxu0 %v1153
    %v1155 = vpop.f32.mrf.mxu0
    %v1156 = vadd.f32 %v1063, %v1155
    %v1157 = vpop.f32.mrf.mxu0
    %1158 = vdwg.mxu0
    %1159 = vmatprep.subr.mxu0 0.0
    %1160 = vmatpush1.msra.mxu0 0.0
    %1161 = vmatprep.subr.mxu0 0.0
    %1162 = vmatpush1.msra.mxu0 0.0
    %1163 = vmatprep.subr.mxu0 0.0
    %1164 = vmatpush1.msra.mxu0 0.0
    %1165 = vmatprep.subr.mxu0 0.0
    %1166 = vmatpush1.msra.mxu0 0.0
    %1167 = vmatprep.subr.mxu0 0.0
    %1168 = vmatpush1.msra.mxu0 0.0
    %1169 = vmatprep.subr.mxu0 0.0
    %1170 = vmatpush1.msra.mxu0 0.0
    %1171 = vmatprep.subr.mxu0 0.0
    %1172 = vmatpush1.msra.mxu0 0.0
    %1173 = vmatprep.subr.mxu0 0.0
    %1174 = vmatpush1.msra.mxu0 0.0
    %1175 = vmatprep.subr.mxu0 0.0
    %1176 = vmatpush1.msra.mxu0 0.0
    %1177 = vmatprep.subr.mxu0 0.0
    %1178 = vmatpush1.msra.mxu0 0.0
    %1179 = vmatprep.subr.mxu0 0.0
    %1180 = vmatpush1.msra.mxu0 0.0
    %1181 = vmatprep.subr.mxu0 0.0
    %1182 = vmatpush1.msra.mxu0 0.0
    %1183 = vmatprep.subr.mxu0 0.0
    %v1184 = vand.u32 %v760, 4294901760
    %v1185 = vsub.f32 %v760, %v1184
    %v1186 = vand.u32 %v1185, 4294901760
    %1187 = vmatpush1.msra.mxu0 %v1186
    %1188 = vmatprep.subr.mxu0 0.0
    %v1189 = vand.u32 %v759, 4294901760
    %v1190 = vsub.f32 %v759, %v1189
    %v1191 = vand.u32 %v1190, 4294901760
    %1192 = vmatpush1.msra.mxu0 %v1191
    %1193 = vmatprep.subr.mxu0 0.0
    %v1194 = vand.u32 %v758, 4294901760
    %v1195 = vsub.f32 %v758, %v1194
    %v1196 = vand.u32 %v1195, 4294901760
    %1197 = vmatpush1.msra.mxu0 %v1196
    %1198 = vmatprep.subr.mxu0 0.0
    %v1199 = vand.u32 %v757, 4294901760
    %v1200 = vsub.f32 %v757, %v1199
    %v1201 = vand.u32 %v1200, 4294901760
    %1202 = vmatpush1.msra.mxu0 %v1201
    %1203 = vmatprep.subr.mxu0 0.0
    %1204 = vmatpush2.msra.mxu0 0.0
    %1205 = vmatprep.subr.mxu0 0.0
    %1206 = vmatpush2.msra.mxu0 0.0
    %1207 = vmatprep.subr.mxu0 0.0
    %1208 = vmatpush2.msra.mxu0 0.0
    %1209 = vmatprep.subr.mxu0 0.0
    %1210 = vmatpush2.msra.mxu0 0.0
    %1211 = vmatprep.subr.mxu0 0.0
    %1212 = vmatpush2.msra.mxu0 0.0
    %1213 = vmatprep.subr.mxu0 0.0
    %1214 = vmatpush2.msra.mxu0 0.0
    %1215 = vmatprep.subr.mxu0 0.0
    %1216 = vmatpush2.msra.mxu0 0.0
    %1217 = vmatprep.subr.mxu0 0.0
    %1218 = vmatpush2.msra.mxu0 0.0
    %1219 = vmatprep.subr.mxu0 0.0
    %1220 = vmatpush2.msra.mxu0 0.0
    %1221 = vmatprep.subr.mxu0 0.0
    %1222 = vmatpush2.msra.mxu0 0.0
    %1223 = vmatprep.subr.mxu0 0.0
    %1224 = vmatpush2.msra.mxu0 0.0
    %1225 = vmatprep.subr.mxu0 0.0
    %1226 = vmatpush2.msra.mxu0 0.0
    %1227 = vmatprep.subr.mxu0 0.0
    %1228 = vmatpush2.msra.mxu0 0.0
    %1229 = vmatprep.subr.mxu0 0.0
    %1230 = vmatpush2.msra.mxu0 0.0
    %1231 = vmatprep.subr.mxu0 0.0
    %1232 = vmatpush2.msra.mxu0 0.0
    %1233 = vmatprep.subr.mxu0 0.0
    %1234 = vmatpush2.msra.mxu0 0.0
    %1235 = vmatprep.mubr.f32.mxu0 0.0
    %v1236 = vand.u32 %v762, 4294901760
    %1237 = vmatmul.mubr.f32.gmra.mxu0 %v1236
    %v1238 = vpop.f32.mrf.mxu0
    %v1239 = vadd.f32 %v1140, %v1238
    %v1240 = vpop.f32.mrf.mxu0
    %1241 = vmatprep.mubr.f32.mxu0 0.0
    %v1242 = vand.u32 %v765, 4294901760
    %1243 = vmatmul.mubr.f32.gmra.mxu0 %v1242
    %v1244 = vpop.f32.mrf.mxu0
    %v1245 = vadd.f32 %v1148, %v1244
    %v1246 = vpop.f32.mrf.mxu0
    %1247 = vmatprep.mubr.f32.mxu0 0.0
    %v1248 = vand.u32 %v768, 4294901760
    %1249 = vmatmul.mubr.f32.gmra.mxu0 %v1248
    %v1250 = vpop.f32.mrf.mxu0
    %v1251 = vadd.f32 %v1156, %v1250
    %v1252 = vpop.f32.mrf.mxu0
    %1253 = vdwg.mxu0
    %1254 = vmatprep.subr.mxu0 0.0
    %1255 = vmatpush1.msra.mxu0 0.0
    %1256 = vmatprep.subr.mxu0 0.0
    %1257 = vmatpush1.msra.mxu0 0.0
    %1258 = vmatprep.subr.mxu0 0.0
    %1259 = vmatpush1.msra.mxu0 0.0
    %1260 = vmatprep.subr.mxu0 0.0
    %1261 = vmatpush1.msra.mxu0 0.0
    %1262 = vmatprep.subr.mxu0 0.0
    %1263 = vmatpush1.msra.mxu0 0.0
    %1264 = vmatprep.subr.mxu0 0.0
    %1265 = vmatpush1.msra.mxu0 0.0
    %1266 = vmatprep.subr.mxu0 0.0
    %1267 = vmatpush1.msra.mxu0 0.0
    %1268 = vmatprep.subr.mxu0 0.0
    %1269 = vmatpush1.msra.mxu0 0.0
    %1270 = vmatprep.subr.mxu0 0.0
    %1271 = vmatpush1.msra.mxu0 0.0
    %1272 = vmatprep.subr.mxu0 0.0
    %1273 = vmatpush1.msra.mxu0 0.0
    %1274 = vmatprep.subr.mxu0 0.0
    %1275 = vmatpush1.msra.mxu0 0.0
    %1276 = vmatprep.subr.mxu0 0.0
    %1277 = vmatpush1.msra.mxu0 0.0
    %1278 = vmatprep.subr.mxu0 0.0
    %v1279 = vand.u32 %v760, 4294901760
    %1280 = vmatpush1.msra.mxu0 %v1279
    %1281 = vmatprep.subr.mxu0 0.0
    %v1282 = vand.u32 %v759, 4294901760
    %1283 = vmatpush1.msra.mxu0 %v1282
    %1284 = vmatprep.subr.mxu0 0.0
    %v1285 = vand.u32 %v758, 4294901760
    %1286 = vmatpush1.msra.mxu0 %v1285
    %1287 = vmatprep.subr.mxu0 0.0
    %v1288 = vand.u32 %v757, 4294901760
    %1289 = vmatpush1.msra.mxu0 %v1288
    %1290 = vmatprep.subr.mxu0 0.0
    %1291 = vmatpush2.msra.mxu0 0.0
    %1292 = vmatprep.subr.mxu0 0.0
    %1293 = vmatpush2.msra.mxu0 0.0
    %1294 = vmatprep.subr.mxu0 0.0
    %1295 = vmatpush2.msra.mxu0 0.0
    %1296 = vmatprep.subr.mxu0 0.0
    %1297 = vmatpush2.msra.mxu0 0.0
    %1298 = vmatprep.subr.mxu0 0.0
    %1299 = vmatpush2.msra.mxu0 0.0
    %1300 = vmatprep.subr.mxu0 0.0
    %1301 = vmatpush2.msra.mxu0 0.0
    %1302 = vmatprep.subr.mxu0 0.0
    %1303 = vmatpush2.msra.mxu0 0.0
    %1304 = vmatprep.subr.mxu0 0.0
    %1305 = vmatpush2.msra.mxu0 0.0
    %1306 = vmatprep.subr.mxu0 0.0
    %1307 = vmatpush2.msra.mxu0 0.0
    %1308 = vmatprep.subr.mxu0 0.0
    %1309 = vmatpush2.msra.mxu0 0.0
    %1310 = vmatprep.subr.mxu0 0.0
    %1311 = vmatpush2.msra.mxu0 0.0
    %1312 = vmatprep.subr.mxu0 0.0
    %1313 = vmatpush2.msra.mxu0 0.0
    %1314 = vmatprep.subr.mxu0 0.0
    %1315 = vmatpush2.msra.mxu0 0.0
    %1316 = vmatprep.subr.mxu0 0.0
    %1317 = vmatpush2.msra.mxu0 0.0
    %1318 = vmatprep.subr.mxu0 0.0
    %1319 = vmatpush2.msra.mxu0 0.0
    %1320 = vmatprep.subr.mxu0 0.0
    %1321 = vmatpush2.msra.mxu0 0.0
    %1322 = vmatprep.mubr.f32.mxu0 0.0
    %v1323 = vand.u32 %v762, 4294901760
    %1324 = vmatmul.mubr.f32.gmra.mxu0 %v1323
    %v1325 = vpop.f32.mrf.mxu0
    %v1326 = vadd.f32 %v1239, %v1325
    %v1327 = vpop.f32.mrf.mxu0
    %1328 = vmatprep.mubr.f32.mxu0 0.0
    %v1329 = vand.u32 %v765, 4294901760
    %1330 = vmatmul.mubr.f32.gmra.mxu0 %v1329
    %v1331 = vpop.f32.mrf.mxu0
    %v1332 = vadd.f32 %v1245, %v1331
    %v1333 = vpop.f32.mrf.mxu0
    %1334 = vmatprep.mubr.f32.mxu0 0.0
    %v1335 = vand.u32 %v768, 4294901760
    %1336 = vmatmul.mubr.f32.gmra.mxu0 %v1335
    %v1337 = vpop.f32.mrf.mxu0
    %v1338 = vadd.f32 %v1251, %v1337
    %v1339 = vpop.f32.mrf.mxu0
    %1340 = vdwg.mxu0
    %v1341 = vld [vmem:[%s17] sm:$0x1]
    %v1343 = vlaneseq
    %v1344 = vshrl.u32 %v1343, 7
    %v1345 = vsub.s32 0, %v1344
    %v1346 = vrot.slane %v1341, %v1345
    %v1348 = vadd.f32 %v1326, %v1346
    %v1349 = vadd.f32 %v1332, %v1346
    %v1350 = vadd.f32 %v1338, %v1346
    %1352 = vrot.lane.b32.xlu0 %v1349, 96
    %v1353 = vpop.permute.xlu0 %1352
    %1356 = vrot.lane.b32.xlu0 %v1350, 64
    %v1357 = vpop.permute.xlu0 %1356
    %v1359 = vmul.f32 %v1348, %v1348
    %v1360 = vmul.f32 %v1353, %v1353
    %v1361 = vmul.f32 %v1357, %v1357
    %v1362 = vsel %vm155, %v1359, 0.0
    %1363 = vadd.xlane.f32.xlu0 %v1362
    %v1364 = vpop.xlane.xlu0 %1363
    %v1365 = vsel %vm155, %v1360, 0.0
    %1366 = vadd.xlane.f32.xlu0 %v1365
    %v1367 = vpop.xlane.xlu0 %1366
    %v1368 = vsel %vm155, %v1361, 0.0
    %1369 = vadd.xlane.f32.xlu0 %v1368
    %v1370 = vpop.xlane.xlu0 %1369
    %v1371 = vrsqrt.pop %v1364
    %v1372 = vmul.f32 %v1364, %v1371
    %vm1373 = vcmp.eq.f32.partialorder %v1364, inf
    %v1374 = vsel %vm1373, %v1364, %v1372
    %vm1375 = vcmp.eq.f32.partialorder %v1364, 0.0
    %v1376 = vand.u32 %v1364, 2147483648
    %v1377 = vsel %vm1375, %v1376, %v1374
    %v1378 = vrsqrt.pop %v1367
    %v1379 = vmul.f32 %v1367, %v1378
    %vm1380 = vcmp.eq.f32.partialorder %v1367, inf
    %v1381 = vsel %vm1380, %v1367, %v1379
    %vm1382 = vcmp.eq.f32.partialorder %v1367, 0.0
    %v1383 = vand.u32 %v1367, 2147483648
    %v1384 = vsel %vm1382, %v1383, %v1381
    %v1385 = vrsqrt.pop %v1370
    %v1386 = vmul.f32 %v1370, %v1385
    %vm1387 = vcmp.eq.f32.partialorder %v1370, inf
    %v1388 = vsel %vm1387, %v1370, %v1386
    %vm1389 = vcmp.eq.f32.partialorder %v1370, 0.0
    %v1390 = vand.u32 %v1370, 2147483648
    %v1391 = vsel %vm1389, %v1390, %v1388
    %v1392 = vmax.f32 %v1377, 1e-12
    %v1393 = vmax.f32 %v1384, 1e-12
    %v1394 = vmax.f32 %v1391, 1e-12
    %v1395 = vrcp.pop %v1392
    %v1396 = vmul.f32 %v1348, %v1395
    %v1397 = vrcp.pop %v1393
    %v1398 = vmul.f32 %v1353, %v1397
    %v1399 = vrcp.pop %v1394
    %v1400 = vmul.f32 %v1357, %v1399
    %v1401 = vld [vmem:[#allocation4] sm:$0xff]
    %v1402 = vld [vmem:[%s8] sm:$0xff]
    %v1403 = vld [vmem:[%s8 + $0x8] sm:$0xff]
    %v1404 = vld [vmem:[%s8 + $0x10] sm:$0xff]
    %v1405 = vld [vmem:[%s8 + $0x18] sm:$0xff]
    %v1406 = vld [vmem:[%s8 + $0x20] sm:$0xff]
    %v1407 = vld [vmem:[%s8 + $0x28] sm:$0xff]
    %v1408 = vld [vmem:[%s8 + $0x30] sm:$0xff]
    %v1409 = vld [vmem:[%s8 + $0x38] sm:$0xff]
    %v1410 = vld [vmem:[%s9] sm:$0x1]
    %v1412 = vlaneseq
    %v1413 = vshrl.u32 %v1412, 7
    %v1414 = vsub.s32 0, %v1413
    %v1415 = vrot.slane %v1410, %v1414
    %vm1417 = vcmask 523264
    %v1419 = vsel %vm1417, %v1401, 0
    %1421 = vmatprep.subr.mxu0 0.0
    %1422 = vmatpush1.msra.mxu0 0.0
    %1423 = vmatprep.subr.mxu0 0.0
    %1424 = vmatpush1.msra.mxu0 0.0
    %1425 = vmatprep.subr.mxu0 0.0
    %1426 = vmatpush1.msra.mxu0 0.0
    %1427 = vmatprep.subr.mxu0 0.0
    %1428 = vmatpush1.msra.mxu0 0.0
    %1429 = vmatprep.subr.mxu0 0.0
    %1430 = vmatpush1.msra.mxu0 0.0
    %1431 = vmatprep.subr.mxu0 0.0
    %1432 = vmatpush1.msra.mxu0 0.0
    %1433 = vmatprep.subr.mxu0 0.0
    %1434 = vmatpush1.msra.mxu0 0.0
    %1435 = vmatprep.subr.mxu0 0.0
    %1436 = vmatpush1.msra.mxu0 0.0
    %1437 = vmatprep.subr.mxu0 0.0
    %v1438 = vand.u32 %v1409, 4294901760
    %1439 = vmatpush1.msra.mxu0 %v1438
    %1440 = vmatprep.subr.mxu0 0.0
    %v1441 = vand.u32 %v1408, 4294901760
    %1442 = vmatpush1.msra.mxu0 %v1441
    %1443 = vmatprep.subr.mxu0 0.0
    %v1444 = vand.u32 %v1407, 4294901760
    %1445 = vmatpush1.msra.mxu0 %v1444
    %1446 = vmatprep.subr.mxu0 0.0
    %v1447 = vand.u32 %v1406, 4294901760
    %1448 = vmatpush1.msra.mxu0 %v1447
    %1449 = vmatprep.subr.mxu0 0.0
    %v1450 = vand.u32 %v1405, 4294901760
    %1451 = vmatpush1.msra.mxu0 %v1450
    %1452 = vmatprep.subr.mxu0 0.0
    %v1453 = vand.u32 %v1404, 4294901760
    %1454 = vmatpush1.msra.mxu0 %v1453
    %1455 = vmatprep.subr.mxu0 0.0
    %v1456 = vand.u32 %v1403, 4294901760
    %1457 = vmatpush1.msra.mxu0 %v1456
    %1458 = vmatprep.subr.mxu0 0.0
    %v1459 = vand.u32 %v1402, 4294901760
    %1460 = vmatpush1.msra.mxu0 %v1459
    %1461 = vmatprep.subr.mxu0 0.0
    %1462 = vmatpush2.msra.mxu0 0.0
    %1463 = vmatprep.subr.mxu0 0.0
    %1464 = vmatpush2.msra.mxu0 0.0
    %1465 = vmatprep.subr.mxu0 0.0
    %1466 = vmatpush2.msra.mxu0 0.0
    %1467 = vmatprep.subr.mxu0 0.0
    %1468 = vmatpush2.msra.mxu0 0.0
    %1469 = vmatprep.subr.mxu0 0.0
    %1470 = vmatpush2.msra.mxu0 0.0
    %1471 = vmatprep.subr.mxu0 0.0
    %1472 = vmatpush2.msra.mxu0 0.0
    %1473 = vmatprep.subr.mxu0 0.0
    %1474 = vmatpush2.msra.mxu0 0.0
    %1475 = vmatprep.subr.mxu0 0.0
    %1476 = vmatpush2.msra.mxu0 0.0
    %1477 = vmatprep.subr.mxu0 0.0
    %1478 = vmatpush2.msra.mxu0 0.0
    %1479 = vmatprep.subr.mxu0 0.0
    %1480 = vmatpush2.msra.mxu0 0.0
    %1481 = vmatprep.subr.mxu0 0.0
    %1482 = vmatpush2.msra.mxu0 0.0
    %1483 = vmatprep.subr.mxu0 0.0
    %1484 = vmatpush2.msra.mxu0 0.0
    %1485 = vmatprep.subr.mxu0 0.0
    %1486 = vmatpush2.msra.mxu0 0.0
    %1487 = vmatprep.subr.mxu0 0.0
    %1488 = vmatpush2.msra.mxu0 0.0
    %1489 = vmatprep.subr.mxu0 0.0
    %1490 = vmatpush2.msra.mxu0 0.0
    %1491 = vmatprep.subr.mxu0 0.0
    %1492 = vmatpush2.msra.mxu0 0.0
    %1493 = vmatprep.mubr.f32.mxu0 0.0
    %v1494 = vand.u32 %v1419, 4294901760
    %v1495 = vsub.f32 %v1419, %v1494
    %v1496 = vand.u32 %v1495, 4294901760
    %v1497 = vsub.f32 %v1495, %v1496
    %v1498 = vand.u32 %v1497, 4294901760
    %1499 = vmatmul.mubr.f32.gmra.mxu0 %v1498
    %v1500 = vpop.f32.mrf.mxu0
    %v1501 = vadd.f32 %v1415, %v1500
    %v1502 = vpop.f32.mrf.mxu0
    %1503 = vdwg.mxu0
    %1504 = vmatprep.subr.mxu0 0.0
    %1505 = vmatpush1.msra.mxu0 0.0
    %1506 = vmatprep.subr.mxu0 0.0
    %1507 = vmatpush1.msra.mxu0 0.0
    %1508 = vmatprep.subr.mxu0 0.0
    %1509 = vmatpush1.msra.mxu0 0.0
    %1510 = vmatprep.subr.mxu0 0.0
    %1511 = vmatpush1.msra.mxu0 0.0
    %1512 = vmatprep.subr.mxu0 0.0
    %1513 = vmatpush1.msra.mxu0 0.0
    %1514 = vmatprep.subr.mxu0 0.0
    %1515 = vmatpush1.msra.mxu0 0.0
    %1516 = vmatprep.subr.mxu0 0.0
    %1517 = vmatpush1.msra.mxu0 0.0
    %1518 = vmatprep.subr.mxu0 0.0
    %1519 = vmatpush1.msra.mxu0 0.0
    %1520 = vmatprep.subr.mxu0 0.0
    %v1521 = vand.u32 %v1409, 4294901760
    %v1522 = vsub.f32 %v1409, %v1521
    %v1523 = vand.u32 %v1522, 4294901760
    %v1524 = vsub.f32 %v1522, %v1523
    %v1525 = vand.u32 %v1524, 4294901760
    %1526 = vmatpush1.msra.mxu0 %v1525
    %1527 = vmatprep.subr.mxu0 0.0
    %v1528 = vand.u32 %v1408, 4294901760
    %v1529 = vsub.f32 %v1408, %v1528
    %v1530 = vand.u32 %v1529, 4294901760
    %v1531 = vsub.f32 %v1529, %v1530
    %v1532 = vand.u32 %v1531, 4294901760
    %1533 = vmatpush1.msra.mxu0 %v1532
    %1534 = vmatprep.subr.mxu0 0.0
    %v1535 = vand.u32 %v1407, 4294901760
    %v1536 = vsub.f32 %v1407, %v1535
    %v1537 = vand.u32 %v1536, 4294901760
    %v1538 = vsub.f32 %v1536, %v1537
    %v1539 = vand.u32 %v1538, 4294901760
    %1540 = vmatpush1.msra.mxu0 %v1539
    %1541 = vmatprep.subr.mxu0 0.0
    %v1542 = vand.u32 %v1406, 4294901760
    %v1543 = vsub.f32 %v1406, %v1542
    %v1544 = vand.u32 %v1543, 4294901760
    %v1545 = vsub.f32 %v1543, %v1544
    %v1546 = vand.u32 %v1545, 4294901760
    %1547 = vmatpush1.msra.mxu0 %v1546
    %1548 = vmatprep.subr.mxu0 0.0
    %v1549 = vand.u32 %v1405, 4294901760
    %v1550 = vsub.f32 %v1405, %v1549
    %v1551 = vand.u32 %v1550, 4294901760
    %v1552 = vsub.f32 %v1550, %v1551
    %v1553 = vand.u32 %v1552, 4294901760
    %1554 = vmatpush1.msra.mxu0 %v1553
    %1555 = vmatprep.subr.mxu0 0.0
    %v1556 = vand.u32 %v1404, 4294901760
    %v1557 = vsub.f32 %v1404, %v1556
    %v1558 = vand.u32 %v1557, 4294901760
    %v1559 = vsub.f32 %v1557, %v1558
    %v1560 = vand.u32 %v1559, 4294901760
    %1561 = vmatpush1.msra.mxu0 %v1560
    %1562 = vmatprep.subr.mxu0 0.0
    %v1563 = vand.u32 %v1403, 4294901760
    %v1564 = vsub.f32 %v1403, %v1563
    %v1565 = vand.u32 %v1564, 4294901760
    %v1566 = vsub.f32 %v1564, %v1565
    %v1567 = vand.u32 %v1566, 4294901760
    %1568 = vmatpush1.msra.mxu0 %v1567
    %1569 = vmatprep.subr.mxu0 0.0
    %v1570 = vand.u32 %v1402, 4294901760
    %v1571 = vsub.f32 %v1402, %v1570
    %v1572 = vand.u32 %v1571, 4294901760
    %v1573 = vsub.f32 %v1571, %v1572
    %v1574 = vand.u32 %v1573, 4294901760
    %1575 = vmatpush1.msra.mxu0 %v1574
    %1576 = vmatprep.subr.mxu0 0.0
    %1577 = vmatpush2.msra.mxu0 0.0
    %1578 = vmatprep.subr.mxu0 0.0
    %1579 = vmatpush2.msra.mxu0 0.0
    %1580 = vmatprep.subr.mxu0 0.0
    %1581 = vmatpush2.msra.mxu0 0.0
    %1582 = vmatprep.subr.mxu0 0.0
    %1583 = vmatpush2.msra.mxu0 0.0
    %1584 = vmatprep.subr.mxu0 0.0
    %1585 = vmatpush2.msra.mxu0 0.0
    %1586 = vmatprep.subr.mxu0 0.0
    %1587 = vmatpush2.msra.mxu0 0.0
    %1588 = vmatprep.subr.mxu0 0.0
    %1589 = vmatpush2.msra.mxu0 0.0
    %1590 = vmatprep.subr.mxu0 0.0
    %1591 = vmatpush2.msra.mxu0 0.0
    %1592 = vmatprep.subr.mxu0 0.0
    %1593 = vmatpush2.msra.mxu0 0.0
    %1594 = vmatprep.subr.mxu0 0.0
    %1595 = vmatpush2.msra.mxu0 0.0
    %1596 = vmatprep.subr.mxu0 0.0
    %1597 = vmatpush2.msra.mxu0 0.0
    %1598 = vmatprep.subr.mxu0 0.0
    %1599 = vmatpush2.msra.mxu0 0.0
    %1600 = vmatprep.subr.mxu0 0.0
    %1601 = vmatpush2.msra.mxu0 0.0
    %1602 = vmatprep.subr.mxu0 0.0
    %1603 = vmatpush2.msra.mxu0 0.0
    %1604 = vmatprep.subr.mxu0 0.0
    %1605 = vmatpush2.msra.mxu0 0.0
    %1606 = vmatprep.subr.mxu0 0.0
    %1607 = vmatpush2.msra.mxu0 0.0
    %1608 = vmatprep.mubr.f32.mxu0 0.0
    %v1609 = vand.u32 %v1419, 4294901760
    %1610 = vmatmul.mubr.f32.gmra.mxu0 %v1609
    %v1611 = vpop.f32.mrf.mxu0
    %v1612 = vadd.f32 %v1501, %v1611
    %v1613 = vpop.f32.mrf.mxu0
    %1614 = vdwg.mxu0
    %1615 = vmatprep.subr.mxu0 0.0
    %1616 = vmatpush1.msra.mxu0 0.0
    %1617 = vmatprep.subr.mxu0 0.0
    %1618 = vmatpush1.msra.mxu0 0.0
    %1619 = vmatprep.subr.mxu0 0.0
    %1620 = vmatpush1.msra.mxu0 0.0
    %1621 = vmatprep.subr.mxu0 0.0
    %1622 = vmatpush1.msra.mxu0 0.0
    %1623 = vmatprep.subr.mxu0 0.0
    %1624 = vmatpush1.msra.mxu0 0.0
    %1625 = vmatprep.subr.mxu0 0.0
    %1626 = vmatpush1.msra.mxu0 0.0
    %1627 = vmatprep.subr.mxu0 0.0
    %1628 = vmatpush1.msra.mxu0 0.0
    %1629 = vmatprep.subr.mxu0 0.0
    %1630 = vmatpush1.msra.mxu0 0.0
    %1631 = vmatprep.subr.mxu0 0.0
    %v1632 = vand.u32 %v1409, 4294901760
    %v1633 = vsub.f32 %v1409, %v1632
    %1634 = vmatpush1.msra.mxu0 %v1633
    %1635 = vmatprep.subr.mxu0 0.0
    %v1636 = vand.u32 %v1408, 4294901760
    %v1637 = vsub.f32 %v1408, %v1636
    %1638 = vmatpush1.msra.mxu0 %v1637
    %1639 = vmatprep.subr.mxu0 0.0
    %v1640 = vand.u32 %v1407, 4294901760
    %v1641 = vsub.f32 %v1407, %v1640
    %1642 = vmatpush1.msra.mxu0 %v1641
    %1643 = vmatprep.subr.mxu0 0.0
    %v1644 = vand.u32 %v1406, 4294901760
    %v1645 = vsub.f32 %v1406, %v1644
    %1646 = vmatpush1.msra.mxu0 %v1645
    %1647 = vmatprep.subr.mxu0 0.0
    %v1648 = vand.u32 %v1405, 4294901760
    %v1649 = vsub.f32 %v1405, %v1648
    %1650 = vmatpush1.msra.mxu0 %v1649
    %1651 = vmatprep.subr.mxu0 0.0
    %v1652 = vand.u32 %v1404, 4294901760
    %v1653 = vsub.f32 %v1404, %v1652
    %1654 = vmatpush1.msra.mxu0 %v1653
    %1655 = vmatprep.subr.mxu0 0.0
    %v1656 = vand.u32 %v1403, 4294901760
    %v1657 = vsub.f32 %v1403, %v1656
    %1658 = vmatpush1.msra.mxu0 %v1657
    %1659 = vmatprep.subr.mxu0 0.0
    %v1660 = vand.u32 %v1402, 4294901760
    %v1661 = vsub.f32 %v1402, %v1660
    %1662 = vmatpush1.msra.mxu0 %v1661
    %1663 = vmatprep.subr.mxu0 0.0
    %1664 = vmatpush2.msra.mxu0 0.0
    %1665 = vmatprep.subr.mxu0 0.0
    %1666 = vmatpush2.msra.mxu0 0.0
    %1667 = vmatprep.subr.mxu0 0.0
    %1668 = vmatpush2.msra.mxu0 0.0
    %1669 = vmatprep.subr.mxu0 0.0
    %1670 = vmatpush2.msra.mxu0 0.0
    %1671 = vmatprep.subr.mxu0 0.0
    %1672 = vmatpush2.msra.mxu0 0.0
    %1673 = vmatprep.subr.mxu0 0.0
    %1674 = vmatpush2.msra.mxu0 0.0
    %1675 = vmatprep.subr.mxu0 0.0
    %1676 = vmatpush2.msra.mxu0 0.0
    %1677 = vmatprep.subr.mxu0 0.0
    %1678 = vmatpush2.msra.mxu0 0.0
    %1679 = vmatprep.subr.mxu0 0.0
    %1680 = vmatpush2.msra.mxu0 0.0
    %1681 = vmatprep.subr.mxu0 0.0
    %1682 = vmatpush2.msra.mxu0 0.0
    %1683 = vmatprep.subr.mxu0 0.0
    %1684 = vmatpush2.msra.mxu0 0.0
    %1685 = vmatprep.subr.mxu0 0.0
    %1686 = vmatpush2.msra.mxu0 0.0
    %1687 = vmatprep.subr.mxu0 0.0
    %1688 = vmatpush2.msra.mxu0 0.0
    %1689 = vmatprep.subr.mxu0 0.0
    %1690 = vmatpush2.msra.mxu0 0.0
    %1691 = vmatprep.subr.mxu0 0.0
    %1692 = vmatpush2.msra.mxu0 0.0
    %1693 = vmatprep.subr.mxu0 0.0
    %1694 = vmatpush2.msra.mxu0 0.0
    %1695 = vmatprep.mubr.f32.mxu0 0.0
    %v1696 = vand.u32 %v1419, 4294901760
    %v1697 = vsub.f32 %v1419, %v1696
    %1698 = vmatmul.mubr.f32.gmra.mxu0 %v1697
    %v1699 = vpop.f32.mrf.mxu0
    %v1700 = vadd.f32 %v1612, %v1699
    %v1701 = vpop.f32.mrf.mxu0
    %1702 = vdwg.mxu0
    %1703 = vmatprep.subr.mxu0 0.0
    %1704 = vmatpush1.msra.mxu0 0.0
    %1705 = vmatprep.subr.mxu0 0.0
    %1706 = vmatpush1.msra.mxu0 0.0
    %1707 = vmatprep.subr.mxu0 0.0
    %1708 = vmatpush1.msra.mxu0 0.0
    %1709 = vmatprep.subr.mxu0 0.0
    %1710 = vmatpush1.msra.mxu0 0.0
    %1711 = vmatprep.subr.mxu0 0.0
    %1712 = vmatpush1.msra.mxu0 0.0
    %1713 = vmatprep.subr.mxu0 0.0
    %1714 = vmatpush1.msra.mxu0 0.0
    %1715 = vmatprep.subr.mxu0 0.0
    %1716 = vmatpush1.msra.mxu0 0.0
    %1717 = vmatprep.subr.mxu0 0.0
    %1718 = vmatpush1.msra.mxu0 0.0
    %1719 = vmatprep.subr.mxu0 0.0
    %v1720 = vand.u32 %v1409, 4294901760
    %1721 = vmatpush1.msra.mxu0 %v1720
    %1722 = vmatprep.subr.mxu0 0.0
    %v1723 = vand.u32 %v1408, 4294901760
    %1724 = vmatpush1.msra.mxu0 %v1723
    %1725 = vmatprep.subr.mxu0 0.0
    %v1726 = vand.u32 %v1407, 4294901760
    %1727 = vmatpush1.msra.mxu0 %v1726
    %1728 = vmatprep.subr.mxu0 0.0
    %v1729 = vand.u32 %v1406, 4294901760
    %1730 = vmatpush1.msra.mxu0 %v1729
    %1731 = vmatprep.subr.mxu0 0.0
    %v1732 = vand.u32 %v1405, 4294901760
    %1733 = vmatpush1.msra.mxu0 %v1732
    %1734 = vmatprep.subr.mxu0 0.0
    %v1735 = vand.u32 %v1404, 4294901760
    %1736 = vmatpush1.msra.mxu0 %v1735
    %1737 = vmatprep.subr.mxu0 0.0
    %v1738 = vand.u32 %v1403, 4294901760
    %1739 = vmatpush1.msra.mxu0 %v1738
    %1740 = vmatprep.subr.mxu0 0.0
    %v1741 = vand.u32 %v1402, 4294901760
    %1742 = vmatpush1.msra.mxu0 %v1741
    %1743 = vmatprep.subr.mxu0 0.0
    %1744 = vmatpush2.msra.mxu0 0.0
    %1745 = vmatprep.subr.mxu0 0.0
    %1746 = vmatpush2.msra.mxu0 0.0
    %1747 = vmatprep.subr.mxu0 0.0
    %1748 = vmatpush2.msra.mxu0 0.0
    %1749 = vmatprep.subr.mxu0 0.0
    %1750 = vmatpush2.msra.mxu0 0.0
    %1751 = vmatprep.subr.mxu0 0.0
    %1752 = vmatpush2.msra.mxu0 0.0
    %1753 = vmatprep.subr.mxu0 0.0
    %1754 = vmatpush2.msra.mxu0 0.0
    %1755 = vmatprep.subr.mxu0 0.0
    %1756 = vmatpush2.msra.mxu0 0.0
    %1757 = vmatprep.subr.mxu0 0.0
    %1758 = vmatpush2.msra.mxu0 0.0
    %1759 = vmatprep.subr.mxu0 0.0
    %1760 = vmatpush2.msra.mxu0 0.0
    %1761 = vmatprep.subr.mxu0 0.0
    %1762 = vmatpush2.msra.mxu0 0.0
    %1763 = vmatprep.subr.mxu0 0.0
    %1764 = vmatpush2.msra.mxu0 0.0
    %1765 = vmatprep.subr.mxu0 0.0
    %1766 = vmatpush2.msra.mxu0 0.0
    %1767 = vmatprep.subr.mxu0 0.0
    %1768 = vmatpush2.msra.mxu0 0.0
    %1769 = vmatprep.subr.mxu0 0.0
    %1770 = vmatpush2.msra.mxu0 0.0
    %1771 = vmatprep.subr.mxu0 0.0
    %1772 = vmatpush2.msra.mxu0 0.0
    %1773 = vmatprep.subr.mxu0 0.0
    %1774 = vmatpush2.msra.mxu0 0.0
    %1775 = vmatprep.mubr.f32.mxu0 0.0
    %v1776 = vand.u32 %v1419, 4294901760
    %v1777 = vsub.f32 %v1419, %v1776
    %v1778 = vand.u32 %v1777, 4294901760
    %1779 = vmatmul.mubr.f32.gmra.mxu0 %v1778
    %v1780 = vpop.f32.mrf.mxu0
    %v1781 = vadd.f32 %v1700, %v1780
    %v1782 = vpop.f32.mrf.mxu0
    %1783 = vdwg.mxu0
    %1784 = vmatprep.subr.mxu0 0.0
    %1785 = vmatpush1.msra.mxu0 0.0
    %1786 = vmatprep.subr.mxu0 0.0
    %1787 = vmatpush1.msra.mxu0 0.0
    %1788 = vmatprep.subr.mxu0 0.0
    %1789 = vmatpush1.msra.mxu0 0.0
    %1790 = vmatprep.subr.mxu0 0.0
    %1791 = vmatpush1.msra.mxu0 0.0
    %1792 = vmatprep.subr.mxu0 0.0
    %1793 = vmatpush1.msra.mxu0 0.0
    %1794 = vmatprep.subr.mxu0 0.0
    %1795 = vmatpush1.msra.mxu0 0.0
    %1796 = vmatprep.subr.mxu0 0.0
    %1797 = vmatpush1.msra.mxu0 0.0
    %1798 = vmatprep.subr.mxu0 0.0
    %1799 = vmatpush1.msra.mxu0 0.0
    %1800 = vmatprep.subr.mxu0 0.0
    %v1801 = vand.u32 %v1409, 4294901760
    %v1802 = vsub.f32 %v1409, %v1801
    %v1803 = vand.u32 %v1802, 4294901760
    %1804 = vmatpush1.msra.mxu0 %v1803
    %1805 = vmatprep.subr.mxu0 0.0
    %v1806 = vand.u32 %v1408, 4294901760
    %v1807 = vsub.f32 %v1408, %v1806
    %v1808 = vand.u32 %v1807, 4294901760
    %1809 = vmatpush1.msra.mxu0 %v1808
    %1810 = vmatprep.subr.mxu0 0.0
    %v1811 = vand.u32 %v1407, 4294901760
    %v1812 = vsub.f32 %v1407, %v1811
    %v1813 = vand.u32 %v1812, 4294901760
    %1814 = vmatpush1.msra.mxu0 %v1813
    %1815 = vmatprep.subr.mxu0 0.0
    %v1816 = vand.u32 %v1406, 4294901760
    %v1817 = vsub.f32 %v1406, %v1816
    %v1818 = vand.u32 %v1817, 4294901760
    %1819 = vmatpush1.msra.mxu0 %v1818
    %1820 = vmatprep.subr.mxu0 0.0
    %v1821 = vand.u32 %v1405, 4294901760
    %v1822 = vsub.f32 %v1405, %v1821
    %v1823 = vand.u32 %v1822, 4294901760
    %1824 = vmatpush1.msra.mxu0 %v1823
    %1825 = vmatprep.subr.mxu0 0.0
    %v1826 = vand.u32 %v1404, 4294901760
    %v1827 = vsub.f32 %v1404, %v1826
    %v1828 = vand.u32 %v1827, 4294901760
    %1829 = vmatpush1.msra.mxu0 %v1828
    %1830 = vmatprep.subr.mxu0 0.0
    %v1831 = vand.u32 %v1403, 4294901760
    %v1832 = vsub.f32 %v1403, %v1831
    %v1833 = vand.u32 %v1832, 4294901760
    %1834 = vmatpush1.msra.mxu0 %v1833
    %1835 = vmatprep.subr.mxu0 0.0
    %v1836 = vand.u32 %v1402, 4294901760
    %v1837 = vsub.f32 %v1402, %v1836
    %v1838 = vand.u32 %v1837, 4294901760
    %1839 = vmatpush1.msra.mxu0 %v1838
    %1840 = vmatprep.subr.mxu0 0.0
    %1841 = vmatpush2.msra.mxu0 0.0
    %1842 = vmatprep.subr.mxu0 0.0
    %1843 = vmatpush2.msra.mxu0 0.0
    %1844 = vmatprep.subr.mxu0 0.0
    %1845 = vmatpush2.msra.mxu0 0.0
    %1846 = vmatprep.subr.mxu0 0.0
    %1847 = vmatpush2.msra.mxu0 0.0
    %1848 = vmatprep.subr.mxu0 0.0
    %1849 = vmatpush2.msra.mxu0 0.0
    %1850 = vmatprep.subr.mxu0 0.0
    %1851 = vmatpush2.msra.mxu0 0.0
    %1852 = vmatprep.subr.mxu0 0.0
    %1853 = vmatpush2.msra.mxu0 0.0
    %1854 = vmatprep.subr.mxu0 0.0
    %1855 = vmatpush2.msra.mxu0 0.0
    %1856 = vmatprep.subr.mxu0 0.0
    %1857 = vmatpush2.msra.mxu0 0.0
    %1858 = vmatprep.subr.mxu0 0.0
    %1859 = vmatpush2.msra.mxu0 0.0
    %1860 = vmatprep.subr.mxu0 0.0
    %1861 = vmatpush2.msra.mxu0 0.0
    %1862 = vmatprep.subr.mxu0 0.0
    %1863 = vmatpush2.msra.mxu0 0.0
    %1864 = vmatprep.subr.mxu0 0.0
    %1865 = vmatpush2.msra.mxu0 0.0
    %1866 = vmatprep.subr.mxu0 0.0
    %1867 = vmatpush2.msra.mxu0 0.0
    %1868 = vmatprep.subr.mxu0 0.0
    %1869 = vmatpush2.msra.mxu0 0.0
    %1870 = vmatprep.subr.mxu0 0.0
    %1871 = vmatpush2.msra.mxu0 0.0
    %1872 = vmatprep.mubr.f32.mxu0 0.0
    %v1873 = vand.u32 %v1419, 4294901760
    %1874 = vmatmul.mubr.f32.gmra.mxu0 %v1873
    %v1875 = vpop.f32.mrf.mxu0
    %v1876 = vadd.f32 %v1781, %v1875
    %v1877 = vpop.f32.mrf.mxu0
    %1878 = vdwg.mxu0
    %1879 = vmatprep.subr.mxu0 0.0
    %1880 = vmatpush1.msra.mxu0 0.0
    %1881 = vmatprep.subr.mxu0 0.0
    %1882 = vmatpush1.msra.mxu0 0.0
    %1883 = vmatprep.subr.mxu0 0.0
    %1884 = vmatpush1.msra.mxu0 0.0
    %1885 = vmatprep.subr.mxu0 0.0
    %1886 = vmatpush1.msra.mxu0 0.0
    %1887 = vmatprep.subr.mxu0 0.0
    %1888 = vmatpush1.msra.mxu0 0.0
    %1889 = vmatprep.subr.mxu0 0.0
    %1890 = vmatpush1.msra.mxu0 0.0
    %1891 = vmatprep.subr.mxu0 0.0
    %1892 = vmatpush1.msra.mxu0 0.0
    %1893 = vmatprep.subr.mxu0 0.0
    %1894 = vmatpush1.msra.mxu0 0.0
    %1895 = vmatprep.subr.mxu0 0.0
    %v1896 = vand.u32 %v1409, 4294901760
    %1897 = vmatpush1.msra.mxu0 %v1896
    %1898 = vmatprep.subr.mxu0 0.0
    %v1899 = vand.u32 %v1408, 4294901760
    %1900 = vmatpush1.msra.mxu0 %v1899
    %1901 = vmatprep.subr.mxu0 0.0
    %v1902 = vand.u32 %v1407, 4294901760
    %1903 = vmatpush1.msra.mxu0 %v1902
    %1904 = vmatprep.subr.mxu0 0.0
    %v1905 = vand.u32 %v1406, 4294901760
    %1906 = vmatpush1.msra.mxu0 %v1905
    %1907 = vmatprep.subr.mxu0 0.0
    %v1908 = vand.u32 %v1405, 4294901760
    %1909 = vmatpush1.msra.mxu0 %v1908
    %1910 = vmatprep.subr.mxu0 0.0
    %v1911 = vand.u32 %v1404, 4294901760
    %1912 = vmatpush1.msra.mxu0 %v1911
    %1913 = vmatprep.subr.mxu0 0.0
    %v1914 = vand.u32 %v1403, 4294901760
    %1915 = vmatpush1.msra.mxu0 %v1914
    %1916 = vmatprep.subr.mxu0 0.0
    %v1917 = vand.u32 %v1402, 4294901760
    %1918 = vmatpush1.msra.mxu0 %v1917
    %1919 = vmatprep.subr.mxu0 0.0
    %1920 = vmatpush2.msra.mxu0 0.0
    %1921 = vmatprep.subr.mxu0 0.0
    %1922 = vmatpush2.msra.mxu0 0.0
    %1923 = vmatprep.subr.mxu0 0.0
    %1924 = vmatpush2.msra.mxu0 0.0
    %1925 = vmatprep.subr.mxu0 0.0
    %1926 = vmatpush2.msra.mxu0 0.0
    %1927 = vmatprep.subr.mxu0 0.0
    %1928 = vmatpush2.msra.mxu0 0.0
    %1929 = vmatprep.subr.mxu0 0.0
    %1930 = vmatpush2.msra.mxu0 0.0
    %1931 = vmatprep.subr.mxu0 0.0
    %1932 = vmatpush2.msra.mxu0 0.0
    %1933 = vmatprep.subr.mxu0 0.0
    %1934 = vmatpush2.msra.mxu0 0.0
    %1935 = vmatprep.subr.mxu0 0.0
    %1936 = vmatpush2.msra.mxu0 0.0
    %1937 = vmatprep.subr.mxu0 0.0
    %1938 = vmatpush2.msra.mxu0 0.0
    %1939 = vmatprep.subr.mxu0 0.0
    %1940 = vmatpush2.msra.mxu0 0.0
    %1941 = vmatprep.subr.mxu0 0.0
    %1942 = vmatpush2.msra.mxu0 0.0
    %1943 = vmatprep.subr.mxu0 0.0
    %1944 = vmatpush2.msra.mxu0 0.0
    %1945 = vmatprep.subr.mxu0 0.0
    %1946 = vmatpush2.msra.mxu0 0.0
    %1947 = vmatprep.subr.mxu0 0.0
    %1948 = vmatpush2.msra.mxu0 0.0
    %1949 = vmatprep.subr.mxu0 0.0
    %1950 = vmatpush2.msra.mxu0 0.0
    %1951 = vmatprep.mubr.f32.mxu0 0.0
    %v1952 = vand.u32 %v1419, 4294901760
    %1953 = vmatmul.mubr.f32.gmra.mxu0 %v1952
    %v1954 = vpop.f32.mrf.mxu0
    %v1955 = vadd.f32 %v1876, %v1954
    %v1956 = vpop.f32.mrf.mxu0
    %1957 = vdwg.mxu0
    %v1958 = vld [vmem:[#allocation6] sm:$0xff]
    %v1959 = vld [vmem:[%s3] sm:$0xff]
    %v1960 = vld [vmem:[%s3 + $0x8] sm:$0xff]
    %v1961 = vld [vmem:[%s3 + $0x10] sm:$0xff]
    %v1962 = vld [vmem:[%s3 + $0x18] sm:$0xff]
    %v1963 = vld [vmem:[%s3 + $0x20] sm:$0xff]
    %v1964 = vld [vmem:[%s10] sm:$0xff]
    %v1965 = vld [vmem:[%s10 + $0x8] sm:$0xff]
    %v1966 = vld [vmem:[%s10 + $0x10] sm:$0xff]
    %v1967 = vld [vmem:[%s10 + $0x18] sm:$0xff]
    %v1969 = vsel %vm155, %v1958, 0
    %v1972 = vsel %vm155, %v1959, 0
    %v1975 = vsel %vm155, %v1960, 0
    %v1978 = vsel %vm155, %v1961, 0
    %v1981 = vsel %vm155, %v1962, 0
    %v1984 = vsel %vm155, %v1963, 0
    %1986 = vmatprep.subr.mxu0 0.0
    %1987 = vmatpush1.msra.mxu0 0.0
    %1988 = vmatprep.subr.mxu0 0.0
    %1989 = vmatpush1.msra.mxu0 0.0
    %1990 = vmatprep.subr.mxu0 0.0
    %1991 = vmatpush1.msra.mxu0 0.0
    %1992 = vmatprep.subr.mxu0 0.0
    %1993 = vmatpush1.msra.mxu0 0.0
    %1994 = vmatprep.subr.mxu0 0.0
    %1995 = vmatpush1.msra.mxu0 0.0
    %1996 = vmatprep.subr.mxu0 0.0
    %1997 = vmatpush1.msra.mxu0 0.0
    %1998 = vmatprep.subr.mxu0 0.0
    %1999 = vmatpush1.msra.mxu0 0.0
    %2000 = vmatprep.subr.mxu0 0.0
    %2001 = vmatpush1.msra.mxu0 0.0
    %2002 = vmatprep.subr.mxu0 0.0
    %2003 = vmatpush1.msra.mxu0 0.0
    %2004 = vmatprep.subr.mxu0 0.0
    %2005 = vmatpush1.msra.mxu0 0.0
    %2006 = vmatprep.subr.mxu0 0.0
    %2007 = vmatpush1.msra.mxu0 0.0
    %2008 = vmatprep.subr.mxu0 0.0
    %2009 = vmatpush1.msra.mxu0 0.0
    %2010 = vmatprep.subr.mxu0 0.0
    %v2011 = vand.u32 %v1967, 4294901760
    %2012 = vmatpush1.msra.mxu0 %v2011
    %2013 = vmatprep.subr.mxu0 0.0
    %v2014 = vand.u32 %v1966, 4294901760
    %2015 = vmatpush1.msra.mxu0 %v2014
    %2016 = vmatprep.subr.mxu0 0.0
    %v2017 = vand.u32 %v1965, 4294901760
    %2018 = vmatpush1.msra.mxu0 %v2017
    %2019 = vmatprep.subr.mxu0 0.0
    %v2020 = vand.u32 %v1964, 4294901760
    %2021 = vmatpush1.msra.mxu0 %v2020
    %2022 = vmatprep.subr.mxu0 0.0
    %2023 = vmatpush2.msra.mxu0 0.0
    %2024 = vmatprep.subr.mxu0 0.0
    %2025 = vmatpush2.msra.mxu0 0.0
    %2026 = vmatprep.subr.mxu0 0.0
    %2027 = vmatpush2.msra.mxu0 0.0
    %2028 = vmatprep.subr.mxu0 0.0
    %2029 = vmatpush2.msra.mxu0 0.0
    %2030 = vmatprep.subr.mxu0 0.0
    %2031 = vmatpush2.msra.mxu0 0.0
    %2032 = vmatprep.subr.mxu0 0.0
    %2033 = vmatpush2.msra.mxu0 0.0
    %2034 = vmatprep.subr.mxu0 0.0
    %2035 = vmatpush2.msra.mxu0 0.0
    %2036 = vmatprep.subr.mxu0 0.0
    %2037 = vmatpush2.msra.mxu0 0.0
    %2038 = vmatprep.subr.mxu0 0.0
    %2039 = vmatpush2.msra.mxu0 0.0
    %2040 = vmatprep.subr.mxu0 0.0
    %2041 = vmatpush2.msra.mxu0 0.0
    %2042 = vmatprep.subr.mxu0 0.0
    %2043 = vmatpush2.msra.mxu0 0.0
    %2044 = vmatprep.subr.mxu0 0.0
    %2045 = vmatpush2.msra.mxu0 0.0
    %2046 = vmatprep.subr.mxu0 0.0
    %2047 = vmatpush2.msra.mxu0 0.0
    %2048 = vmatprep.subr.mxu0 0.0
    %2049 = vmatpush2.msra.mxu0 0.0
    %2050 = vmatprep.subr.mxu0 0.0
    %2051 = vmatpush2.msra.mxu0 0.0
    %2052 = vmatprep.subr.mxu0 0.0
    %2053 = vmatpush2.msra.mxu0 0.0
    %2054 = vmatprep.mubr.f32.mxu0 0.0
    %v2055 = vand.u32 %v1969, 4294901760
    %v2056 = vsub.f32 %v1969, %v2055
    %v2057 = vand.u32 %v2056, 4294901760
    %v2058 = vsub.f32 %v2056, %v2057
    %v2059 = vand.u32 %v2058, 4294901760
    %2060 = vmatmul.mubr.f32.gmra.mxu0 %v2059
    %v2061 = vpop.f32.mrf.mxu0
    %v2062 = vadd.f32 0.0, %v2061
    %v2063 = vpop.f32.mrf.mxu0
    %2064 = vmatprep.mubr.f32.mxu0 0.0
    %v2065 = vand.u32 %v1972, 4294901760
    %v2066 = vsub.f32 %v1972, %v2065
    %v2067 = vand.u32 %v2066, 4294901760
    %v2068 = vsub.f32 %v2066, %v2067
    %v2069 = vand.u32 %v2068, 4294901760
    %2070 = vmatmul.mubr.f32.gmra.mxu0 %v2069
    %v2071 = vpop.f32.mrf.mxu0
    %v2072 = vadd.f32 0.0, %v2071
    %v2073 = vpop.f32.mrf.mxu0
    %2074 = vmatprep.mubr.f32.mxu0 0.0
    %v2075 = vand.u32 %v1975, 4294901760
    %v2076 = vsub.f32 %v1975, %v2075
    %v2077 = vand.u32 %v2076, 4294901760
    %v2078 = vsub.f32 %v2076, %v2077
    %v2079 = vand.u32 %v2078, 4294901760
    %2080 = vmatmul.mubr.f32.gmra.mxu0 %v2079
    %v2081 = vpop.f32.mrf.mxu0
    %v2082 = vadd.f32 0.0, %v2081
    %v2083 = vpop.f32.mrf.mxu0
    %2084 = vmatprep.mubr.f32.mxu0 0.0
    %v2085 = vand.u32 %v1978, 4294901760
    %v2086 = vsub.f32 %v1978, %v2085
    %v2087 = vand.u32 %v2086, 4294901760
    %v2088 = vsub.f32 %v2086, %v2087
    %v2089 = vand.u32 %v2088, 4294901760
    %2090 = vmatmul.mubr.f32.gmra.mxu0 %v2089
    %v2091 = vpop.f32.mrf.mxu0
    %v2092 = vadd.f32 0.0, %v2091
    %v2093 = vpop.f32.mrf.mxu0
    %2094 = vmatprep.mubr.f32.mxu0 0.0
    %v2095 = vand.u32 %v1981, 4294901760
    %v2096 = vsub.f32 %v1981, %v2095
    %v2097 = vand.u32 %v2096, 4294901760
    %v2098 = vsub.f32 %v2096, %v2097
    %v2099 = vand.u32 %v2098, 4294901760
    %2100 = vmatmul.mubr.f32.gmra.mxu0 %v2099
    %v2101 = vpop.f32.mrf.mxu0
    %v2102 = vadd.f32 0.0, %v2101
    %v2103 = vpop.f32.mrf.mxu0
    %2104 = vmatprep.mubr.f32.mxu0 0.0
    %v2105 = vand.u32 %v1984, 4294901760
    %v2106 = vsub.f32 %v1984, %v2105
    %v2107 = vand.u32 %v2106, 4294901760
    %v2108 = vsub.f32 %v2106, %v2107
    %v2109 = vand.u32 %v2108, 4294901760
    %2110 = vmatmul.mubr.f32.gmra.mxu0 %v2109
    %v2111 = vpop.f32.mrf.mxu0
    %v2112 = vadd.f32 0.0, %v2111
    %v2113 = vpop.f32.mrf.mxu0
    %2114 = vdwg.mxu0
    %2115 = vmatprep.subr.mxu0 0.0
    %2116 = vmatpush1.msra.mxu0 0.0
    %2117 = vmatprep.subr.mxu0 0.0
    %2118 = vmatpush1.msra.mxu0 0.0
    %2119 = vmatprep.subr.mxu0 0.0
    %2120 = vmatpush1.msra.mxu0 0.0
    %2121 = vmatprep.subr.mxu0 0.0
    %2122 = vmatpush1.msra.mxu0 0.0
    %2123 = vmatprep.subr.mxu0 0.0
    %2124 = vmatpush1.msra.mxu0 0.0
    %2125 = vmatprep.subr.mxu0 0.0
    %2126 = vmatpush1.msra.mxu0 0.0
    %2127 = vmatprep.subr.mxu0 0.0
    %2128 = vmatpush1.msra.mxu0 0.0
    %2129 = vmatprep.subr.mxu0 0.0
    %2130 = vmatpush1.msra.mxu0 0.0
    %2131 = vmatprep.subr.mxu0 0.0
    %2132 = vmatpush1.msra.mxu0 0.0
    %2133 = vmatprep.subr.mxu0 0.0
    %2134 = vmatpush1.msra.mxu0 0.0
    %2135 = vmatprep.subr.mxu0 0.0
    %2136 = vmatpush1.msra.mxu0 0.0
    %2137 = vmatprep.subr.mxu0 0.0
    %2138 = vmatpush1.msra.mxu0 0.0
    %2139 = vmatprep.subr.mxu0 0.0
    %v2140 = vand.u32 %v1967, 4294901760
    %v2141 = vsub.f32 %v1967, %v2140
    %v2142 = vand.u32 %v2141, 4294901760
    %v2143 = vsub.f32 %v2141, %v2142
    %v2144 = vand.u32 %v2143, 4294901760
    %2145 = vmatpush1.msra.mxu0 %v2144
    %2146 = vmatprep.subr.mxu0 0.0
    %v2147 = vand.u32 %v1966, 4294901760
    %v2148 = vsub.f32 %v1966, %v2147
    %v2149 = vand.u32 %v2148, 4294901760
    %v2150 = vsub.f32 %v2148, %v2149
    %v2151 = vand.u32 %v2150, 4294901760
    %2152 = vmatpush1.msra.mxu0 %v2151
    %2153 = vmatprep.subr.mxu0 0.0
    %v2154 = vand.u32 %v1965, 4294901760
    %v2155 = vsub.f32 %v1965, %v2154
    %v2156 = vand.u32 %v2155, 4294901760
    %v2157 = vsub.f32 %v2155, %v2156
    %v2158 = vand.u32 %v2157, 4294901760
    %2159 = vmatpush1.msra.mxu0 %v2158
    %2160 = vmatprep.subr.mxu0 0.0
    %v2161 = vand.u32 %v1964, 4294901760
    %v2162 = vsub.f32 %v1964, %v2161
    %v2163 = vand.u32 %v2162, 4294901760
    %v2164 = vsub.f32 %v2162, %v2163
    %v2165 = vand.u32 %v2164, 4294901760
    %2166 = vmatpush1.msra.mxu0 %v2165
    %2167 = vmatprep.subr.mxu0 0.0
    %2168 = vmatpush2.msra.mxu0 0.0
    %2169 = vmatprep.subr.mxu0 0.0
    %2170 = vmatpush2.msra.mxu0 0.0
    %2171 = vmatprep.subr.mxu0 0.0
    %2172 = vmatpush2.msra.mxu0 0.0
    %2173 = vmatprep.subr.mxu0 0.0
    %2174 = vmatpush2.msra.mxu0 0.0
    %2175 = vmatprep.subr.mxu0 0.0
    %2176 = vmatpush2.msra.mxu0 0.0
    %2177 = vmatprep.subr.mxu0 0.0
    %2178 = vmatpush2.msra.mxu0 0.0
    %2179 = vmatprep.subr.mxu0 0.0
    %2180 = vmatpush2.msra.mxu0 0.0
    %2181 = vmatprep.subr.mxu0 0.0
    %2182 = vmatpush2.msra.mxu0 0.0
    %2183 = vmatprep.subr.mxu0 0.0
    %2184 = vmatpush2.msra.mxu0 0.0
    %2185 = vmatprep.subr.mxu0 0.0
    %2186 = vmatpush2.msra.mxu0 0.0
    %2187 = vmatprep.subr.mxu0 0.0
    %2188 = vmatpush2.msra.mxu0 0.0
    %2189 = vmatprep.subr.mxu0 0.0
    %2190 = vmatpush2.msra.mxu0 0.0
    %2191 = vmatprep.subr.mxu0 0.0
    %2192 = vmatpush2.msra.mxu0 0.0
    %2193 = vmatprep.subr.mxu0 0.0
    %2194 = vmatpush2.msra.mxu0 0.0
    %2195 = vmatprep.subr.mxu0 0.0
    %2196 = vmatpush2.msra.mxu0 0.0
    %2197 = vmatprep.subr.mxu0 0.0
    %2198 = vmatpush2.msra.mxu0 0.0
    %2199 = vmatprep.mubr.f32.mxu0 0.0
    %v2200 = vand.u32 %v1969, 4294901760
    %2201 = vmatmul.mubr.f32.gmra.mxu0 %v2200
    %v2202 = vpop.f32.mrf.mxu0
    %v2203 = vadd.f32 %v2062, %v2202
    %v2204 = vpop.f32.mrf.mxu0
    %2205 = vmatprep.mubr.f32.mxu0 0.0
    %v2206 = vand.u32 %v1972, 4294901760
    %2207 = vmatmul.mubr.f32.gmra.mxu0 %v2206
    %v2208 = vpop.f32.mrf.mxu0
    %v2209 = vadd.f32 %v2072, %v2208
    %v2210 = vpop.f32.mrf.mxu0
    %2211 = vmatprep.mubr.f32.mxu0 0.0
    %v2212 = vand.u32 %v1975, 4294901760
    %2213 = vmatmul.mubr.f32.gmra.mxu0 %v2212
    %v2214 = vpop.f32.mrf.mxu0
    %v2215 = vadd.f32 %v2082, %v2214
    %v2216 = vpop.f32.mrf.mxu0
    %2217 = vmatprep.mubr.f32.mxu0 0.0
    %v2218 = vand.u32 %v1978, 4294901760
    %2219 = vmatmul.mubr.f32.gmra.mxu0 %v2218
    %v2220 = vpop.f32.mrf.mxu0
    %v2221 = vadd.f32 %v2092, %v2220
    %v2222 = vpop.f32.mrf.mxu0
    %2223 = vmatprep.mubr.f32.mxu0 0.0
    %v2224 = vand.u32 %v1981, 4294901760
    %2225 = vmatmul.mubr.f32.gmra.mxu0 %v2224
    %v2226 = vpop.f32.mrf.mxu0
    %v2227 = vadd.f32 %v2102, %v2226
    %v2228 = vpop.f32.mrf.mxu0
    %2229 = vmatprep.mubr.f32.mxu0 0.0
    %v2230 = vand.u32 %v1984, 4294901760
    %2231 = vmatmul.mubr.f32.gmra.mxu0 %v2230
    %v2232 = vpop.f32.mrf.mxu0
    %v2233 = vadd.f32 %v2112, %v2232
    %v2234 = vpop.f32.mrf.mxu0
    %2235 = vdwg.mxu0
    %2236 = vmatprep.subr.mxu0 0.0
    %2237 = vmatpush1.msra.mxu0 0.0
    %2238 = vmatprep.subr.mxu0 0.0
    %2239 = vmatpush1.msra.mxu0 0.0
    %2240 = vmatprep.subr.mxu0 0.0
    %2241 = vmatpush1.msra.mxu0 0.0
    %2242 = vmatprep.subr.mxu0 0.0
    %2243 = vmatpush1.msra.mxu0 0.0
    %2244 = vmatprep.subr.mxu0 0.0
    %2245 = vmatpush1.msra.mxu0 0.0
    %2246 = vmatprep.subr.mxu0 0.0
    %2247 = vmatpush1.msra.mxu0 0.0
    %2248 = vmatprep.subr.mxu0 0.0
    %2249 = vmatpush1.msra.mxu0 0.0
    %2250 = vmatprep.subr.mxu0 0.0
    %2251 = vmatpush1.msra.mxu0 0.0
    %2252 = vmatprep.subr.mxu0 0.0
    %2253 = vmatpush1.msra.mxu0 0.0
    %2254 = vmatprep.subr.mxu0 0.0
    %2255 = vmatpush1.msra.mxu0 0.0
    %2256 = vmatprep.subr.mxu0 0.0
    %2257 = vmatpush1.msra.mxu0 0.0
    %2258 = vmatprep.subr.mxu0 0.0
    %2259 = vmatpush1.msra.mxu0 0.0
    %2260 = vmatprep.subr.mxu0 0.0
    %v2261 = vand.u32 %v1967, 4294901760
    %v2262 = vsub.f32 %v1967, %v2261
    %2263 = vmatpush1.msra.mxu0 %v2262
    %2264 = vmatprep.subr.mxu0 0.0
    %v2265 = vand.u32 %v1966, 4294901760
    %v2266 = vsub.f32 %v1966, %v2265
    %2267 = vmatpush1.msra.mxu0 %v2266
    %2268 = vmatprep.subr.mxu0 0.0
    %v2269 = vand.u32 %v1965, 4294901760
    %v2270 = vsub.f32 %v1965, %v2269
    %2271 = vmatpush1.msra.mxu0 %v2270
    %2272 = vmatprep.subr.mxu0 0.0
    %v2273 = vand.u32 %v1964, 4294901760
    %v2274 = vsub.f32 %v1964, %v2273
    %2275 = vmatpush1.msra.mxu0 %v2274
    %2276 = vmatprep.subr.mxu0 0.0
    %2277 = vmatpush2.msra.mxu0 0.0
    %2278 = vmatprep.subr.mxu0 0.0
    %2279 = vmatpush2.msra.mxu0 0.0
    %2280 = vmatprep.subr.mxu0 0.0
    %2281 = vmatpush2.msra.mxu0 0.0
    %2282 = vmatprep.subr.mxu0 0.0
    %2283 = vmatpush2.msra.mxu0 0.0
    %2284 = vmatprep.subr.mxu0 0.0
    %2285 = vmatpush2.msra.mxu0 0.0
    %2286 = vmatprep.subr.mxu0 0.0
    %2287 = vmatpush2.msra.mxu0 0.0
    %2288 = vmatprep.subr.mxu0 0.0
    %2289 = vmatpush2.msra.mxu0 0.0
    %2290 = vmatprep.subr.mxu0 0.0
    %2291 = vmatpush2.msra.mxu0 0.0
    %2292 = vmatprep.subr.mxu0 0.0
    %2293 = vmatpush2.msra.mxu0 0.0
    %2294 = vmatprep.subr.mxu0 0.0
    %2295 = vmatpush2.msra.mxu0 0.0
    %2296 = vmatprep.subr.mxu0 0.0
    %2297 = vmatpush2.msra.mxu0 0.0
    %2298 = vmatprep.subr.mxu0 0.0
    %2299 = vmatpush2.msra.mxu0 0.0
    %2300 = vmatprep.subr.mxu0 0.0
    %2301 = vmatpush2.msra.mxu0 0.0
    %2302 = vmatprep.subr.mxu0 0.0
    %2303 = vmatpush2.msra.mxu0 0.0
    %2304 = vmatprep.subr.mxu0 0.0
    %2305 = vmatpush2.msra.mxu0 0.0
    %2306 = vmatprep.subr.mxu0 0.0
    %2307 = vmatpush2.msra.mxu0 0.0
    %2308 = vmatprep.mubr.f32.mxu0 0.0
    %v2309 = vand.u32 %v1969, 4294901760
    %v2310 = vsub.f32 %v1969, %v2309
    %2311 = vmatmul.mubr.f32.gmra.mxu0 %v2310
    %v2312 = vpop.f32.mrf.mxu0
    %v2313 = vadd.f32 %v2203, %v2312
    %v2314 = vpop.f32.mrf.mxu0
    %2315 = vmatprep.mubr.f32.mxu0 0.0
    %v2316 = vand.u32 %v1972, 4294901760
    %v2317 = vsub.f32 %v1972, %v2316
    %2318 = vmatmul.mubr.f32.gmra.mxu0 %v2317
    %v2319 = vpop.f32.mrf.mxu0
    %v2320 = vadd.f32 %v2209, %v2319
    %v2321 = vpop.f32.mrf.mxu0
    %2322 = vmatprep.mubr.f32.mxu0 0.0
    %v2323 = vand.u32 %v1975, 4294901760
    %v2324 = vsub.f32 %v1975, %v2323
    %2325 = vmatmul.mubr.f32.gmra.mxu0 %v2324
    %v2326 = vpop.f32.mrf.mxu0
    %v2327 = vadd.f32 %v2215, %v2326
    %v2328 = vpop.f32.mrf.mxu0
    %2329 = vmatprep.mubr.f32.mxu0 0.0
    %v2330 = vand.u32 %v1978, 4294901760
    %v2331 = vsub.f32 %v1978, %v2330
    %2332 = vmatmul.mubr.f32.gmra.mxu0 %v2331
    %v2333 = vpop.f32.mrf.mxu0
    %v2334 = vadd.f32 %v2221, %v2333
    %v2335 = vpop.f32.mrf.mxu0
    %2336 = vmatprep.mubr.f32.mxu0 0.0
    %v2337 = vand.u32 %v1981, 4294901760
    %v2338 = vsub.f32 %v1981, %v2337
    %2339 = vmatmul.mubr.f32.gmra.mxu0 %v2338
    %v2340 = vpop.f32.mrf.mxu0
    %v2341 = vadd.f32 %v2227, %v2340
    %v2342 = vpop.f32.mrf.mxu0
    %2343 = vmatprep.mubr.f32.mxu0 0.0
    %v2344 = vand.u32 %v1984, 4294901760
    %v2345 = vsub.f32 %v1984, %v2344
    %2346 = vmatmul.mubr.f32.gmra.mxu0 %v2345
    %v2347 = vpop.f32.mrf.mxu0
    %v2348 = vadd.f32 %v2233, %v2347
    %v2349 = vpop.f32.mrf.mxu0
    %2350 = vdwg.mxu0
    %2351 = vmatprep.subr.mxu0 0.0
    %2352 = vmatpush1.msra.mxu0 0.0
    %2353 = vmatprep.subr.mxu0 0.0
    %2354 = vmatpush1.msra.mxu0 0.0
    %2355 = vmatprep.subr.mxu0 0.0
    %2356 = vmatpush1.msra.mxu0 0.0
    %2357 = vmatprep.subr.mxu0 0.0
    %2358 = vmatpush1.msra.mxu0 0.0
    %2359 = vmatprep.subr.mxu0 0.0
    %2360 = vmatpush1.msra.mxu0 0.0
    %2361 = vmatprep.subr.mxu0 0.0
    %2362 = vmatpush1.msra.mxu0 0.0
    %2363 = vmatprep.subr.mxu0 0.0
    %2364 = vmatpush1.msra.mxu0 0.0
    %2365 = vmatprep.subr.mxu0 0.0
    %2366 = vmatpush1.msra.mxu0 0.0
    %2367 = vmatprep.subr.mxu0 0.0
    %2368 = vmatpush1.msra.mxu0 0.0
    %2369 = vmatprep.subr.mxu0 0.0
    %2370 = vmatpush1.msra.mxu0 0.0
    %2371 = vmatprep.subr.mxu0 0.0
    %2372 = vmatpush1.msra.mxu0 0.0
    %2373 = vmatprep.subr.mxu0 0.0
    %2374 = vmatpush1.msra.mxu0 0.0
    %2375 = vmatprep.subr.mxu0 0.0
    %v2376 = vand.u32 %v1967, 4294901760
    %2377 = vmatpush1.msra.mxu0 %v2376
    %2378 = vmatprep.subr.mxu0 0.0
    %v2379 = vand.u32 %v1966, 4294901760
    %2380 = vmatpush1.msra.mxu0 %v2379
    %2381 = vmatprep.subr.mxu0 0.0
    %v2382 = vand.u32 %v1965, 4294901760
    %2383 = vmatpush1.msra.mxu0 %v2382
    %2384 = vmatprep.subr.mxu0 0.0
    %v2385 = vand.u32 %v1964, 4294901760
    %2386 = vmatpush1.msra.mxu0 %v2385
    %2387 = vmatprep.subr.mxu0 0.0
    %2388 = vmatpush2.msra.mxu0 0.0
    %2389 = vmatprep.subr.mxu0 0.0
    %2390 = vmatpush2.msra.mxu0 0.0
    %2391 = vmatprep.subr.mxu0 0.0
    %2392 = vmatpush2.msra.mxu0 0.0
    %2393 = vmatprep.subr.mxu0 0.0
    %2394 = vmatpush2.msra.mxu0 0.0
    %2395 = vmatprep.subr.mxu0 0.0
    %2396 = vmatpush2.msra.mxu0 0.0
    %2397 = vmatprep.subr.mxu0 0.0
    %2398 = vmatpush2.msra.mxu0 0.0
    %2399 = vmatprep.subr.mxu0 0.0
    %2400 = vmatpush2.msra.mxu0 0.0
    %2401 = vmatprep.subr.mxu0 0.0
    %2402 = vmatpush2.msra.mxu0 0.0
    %2403 = vmatprep.subr.mxu0 0.0
    %2404 = vmatpush2.msra.mxu0 0.0
    %2405 = vmatprep.subr.mxu0 0.0
    %2406 = vmatpush2.msra.mxu0 0.0
    %2407 = vmatprep.subr.mxu0 0.0
    %2408 = vmatpush2.msra.mxu0 0.0
    %2409 = vmatprep.subr.mxu0 0.0
    %2410 = vmatpush2.msra.mxu0 0.0
    %2411 = vmatprep.subr.mxu0 0.0
    %2412 = vmatpush2.msra.mxu0 0.0
    %2413 = vmatprep.subr.mxu0 0.0
    %2414 = vmatpush2.msra.mxu0 0.0
    %2415 = vmatprep.subr.mxu0 0.0
    %2416 = vmatpush2.msra.mxu0 0.0
    %2417 = vmatprep.subr.mxu0 0.0
    %2418 = vmatpush2.msra.mxu0 0.0
    %2419 = vmatprep.mubr.f32.mxu0 0.0
    %v2420 = vand.u32 %v1969, 4294901760
    %v2421 = vsub.f32 %v1969, %v2420
    %v2422 = vand.u32 %v2421, 4294901760
    %2423 = vmatmul.mubr.f32.gmra.mxu0 %v2422
    %v2424 = vpop.f32.mrf.mxu0
    %v2425 = vadd.f32 %v2313, %v2424
    %v2426 = vpop.f32.mrf.mxu0
    %2427 = vmatprep.mubr.f32.mxu0 0.0
    %v2428 = vand.u32 %v1972, 4294901760
    %v2429 = vsub.f32 %v1972, %v2428
    %v2430 = vand.u32 %v2429, 4294901760
    %2431 = vmatmul.mubr.f32.gmra.mxu0 %v2430
    %v2432 = vpop.f32.mrf.mxu0
    %v2433 = vadd.f32 %v2320, %v2432
    %v2434 = vpop.f32.mrf.mxu0
    %2435 = vmatprep.mubr.f32.mxu0 0.0
    %v2436 = vand.u32 %v1975, 4294901760
    %v2437 = vsub.f32 %v1975, %v2436
    %v2438 = vand.u32 %v2437, 4294901760
    %2439 = vmatmul.mubr.f32.gmra.mxu0 %v2438
    %v2440 = vpop.f32.mrf.mxu0
    %v2441 = vadd.f32 %v2327, %v2440
    %v2442 = vpop.f32.mrf.mxu0
    %2443 = vmatprep.mubr.f32.mxu0 0.0
    %v2444 = vand.u32 %v1978, 4294901760
    %v2445 = vsub.f32 %v1978, %v2444
    %v2446 = vand.u32 %v2445, 4294901760
    %2447 = vmatmul.mubr.f32.gmra.mxu0 %v2446
    %v2448 = vpop.f32.mrf.mxu0
    %v2449 = vadd.f32 %v2334, %v2448
    %v2450 = vpop.f32.mrf.mxu0
    %2451 = vmatprep.mubr.f32.mxu0 0.0
    %v2452 = vand.u32 %v1981, 4294901760
    %v2453 = vsub.f32 %v1981, %v2452
    %v2454 = vand.u32 %v2453, 4294901760
    %2455 = vmatmul.mubr.f32.gmra.mxu0 %v2454
    %v2456 = vpop.f32.mrf.mxu0
    %v2457 = vadd.f32 %v2341, %v2456
    %v2458 = vpop.f32.mrf.mxu0
    %2459 = vmatprep.mubr.f32.mxu0 0.0
    %v2460 = vand.u32 %v1984, 4294901760
    %v2461 = vsub.f32 %v1984, %v2460
    %v2462 = vand.u32 %v2461, 4294901760
    %2463 = vmatmul.mubr.f32.gmra.mxu0 %v2462
    %v2464 = vpop.f32.mrf.mxu0
    %v2465 = vadd.f32 %v2348, %v2464
    %v2466 = vpop.f32.mrf.mxu0
    %2467 = vdwg.mxu0
    %2468 = vmatprep.subr.mxu0 0.0
    %2469 = vmatpush1.msra.mxu0 0.0
    %2470 = vmatprep.subr.mxu0 0.0
    %2471 = vmatpush1.msra.mxu0 0.0
    %2472 = vmatprep.subr.mxu0 0.0
    %2473 = vmatpush1.msra.mxu0 0.0
    %2474 = vmatprep.subr.mxu0 0.0
    %2475 = vmatpush1.msra.mxu0 0.0
    %2476 = vmatprep.subr.mxu0 0.0
    %2477 = vmatpush1.msra.mxu0 0.0
    %2478 = vmatprep.subr.mxu0 0.0
    %2479 = vmatpush1.msra.mxu0 0.0
    %2480 = vmatprep.subr.mxu0 0.0
    %2481 = vmatpush1.msra.mxu0 0.0
    %2482 = vmatprep.subr.mxu0 0.0
    %2483 = vmatpush1.msra.mxu0 0.0
    %2484 = vmatprep.subr.mxu0 0.0
    %2485 = vmatpush1.msra.mxu0 0.0
    %2486 = vmatprep.subr.mxu0 0.0
    %2487 = vmatpush1.msra.mxu0 0.0
    %2488 = vmatprep.subr.mxu0 0.0
    %2489 = vmatpush1.msra.mxu0 0.0
    %2490 = vmatprep.subr.mxu0 0.0
    %2491 = vmatpush1.msra.mxu0 0.0
    %2492 = vmatprep.subr.mxu0 0.0
    %v2493 = vand.u32 %v1967, 4294901760
    %v2494 = vsub.f32 %v1967, %v2493
    %v2495 = vand.u32 %v2494, 4294901760
    %2496 = vmatpush1.msra.mxu0 %v2495
    %2497 = vmatprep.subr.mxu0 0.0
    %v2498 = vand.u32 %v1966, 4294901760
    %v2499 = vsub.f32 %v1966, %v2498
    %v2500 = vand.u32 %v2499, 4294901760
    %2501 = vmatpush1.msra.mxu0 %v2500
    %2502 = vmatprep.subr.mxu0 0.0
    %v2503 = vand.u32 %v1965, 4294901760
    %v2504 = vsub.f32 %v1965, %v2503
    %v2505 = vand.u32 %v2504, 4294901760
    %2506 = vmatpush1.msra.mxu0 %v2505
    %2507 = vmatprep.subr.mxu0 0.0
    %v2508 = vand.u32 %v1964, 4294901760
    %v2509 = vsub.f32 %v1964, %v2508
    %v2510 = vand.u32 %v2509, 4294901760
    %2511 = vmatpush1.msra.mxu0 %v2510
    %2512 = vmatprep.subr.mxu0 0.0
    %2513 = vmatpush2.msra.mxu0 0.0
    %2514 = vmatprep.subr.mxu0 0.0
    %2515 = vmatpush2.msra.mxu0 0.0
    %2516 = vmatprep.subr.mxu0 0.0
    %2517 = vmatpush2.msra.mxu0 0.0
    %2518 = vmatprep.subr.mxu0 0.0
    %2519 = vmatpush2.msra.mxu0 0.0
    %2520 = vmatprep.subr.mxu0 0.0
    %2521 = vmatpush2.msra.mxu0 0.0
    %2522 = vmatprep.subr.mxu0 0.0
    %2523 = vmatpush2.msra.mxu0 0.0
    %2524 = vmatprep.subr.mxu0 0.0
    %2525 = vmatpush2.msra.mxu0 0.0
    %2526 = vmatprep.subr.mxu0 0.0
    %2527 = vmatpush2.msra.mxu0 0.0
    %2528 = vmatprep.subr.mxu0 0.0
    %2529 = vmatpush2.msra.mxu0 0.0
    %2530 = vmatprep.subr.mxu0 0.0
    %2531 = vmatpush2.msra.mxu0 0.0
    %2532 = vmatprep.subr.mxu0 0.0
    %2533 = vmatpush2.msra.mxu0 0.0
    %2534 = vmatprep.subr.mxu0 0.0
    %2535 = vmatpush2.msra.mxu0 0.0
    %2536 = vmatprep.subr.mxu0 0.0
    %2537 = vmatpush2.msra.mxu0 0.0
    %2538 = vmatprep.subr.mxu0 0.0
    %2539 = vmatpush2.msra.mxu0 0.0
    %2540 = vmatprep.subr.mxu0 0.0
    %2541 = vmatpush2.msra.mxu0 0.0
    %2542 = vmatprep.subr.mxu0 0.0
    %2543 = vmatpush2.msra.mxu0 0.0
    %2544 = vmatprep.mubr.f32.mxu0 0.0
    %v2545 = vand.u32 %v1969, 4294901760
    %2546 = vmatmul.mubr.f32.gmra.mxu0 %v2545
    %v2547 = vpop.f32.mrf.mxu0
    %v2548 = vadd.f32 %v2425, %v2547
    %v2549 = vpop.f32.mrf.mxu0
    %2550 = vmatprep.mubr.f32.mxu0 0.0
    %v2551 = vand.u32 %v1972, 4294901760
    %2552 = vmatmul.mubr.f32.gmra.mxu0 %v2551
    %v2553 = vpop.f32.mrf.mxu0
    %v2554 = vadd.f32 %v2433, %v2553
    %v2555 = vpop.f32.mrf.mxu0
    %2556 = vmatprep.mubr.f32.mxu0 0.0
    %v2557 = vand.u32 %v1975, 4294901760
    %2558 = vmatmul.mubr.f32.gmra.mxu0 %v2557
    %v2559 = vpop.f32.mrf.mxu0
    %v2560 = vadd.f32 %v2441, %v2559
    %v2561 = vpop.f32.mrf.mxu0
    %2562 = vmatprep.mubr.f32.mxu0 0.0
    %v2563 = vand.u32 %v1978, 4294901760
    %2564 = vmatmul.mubr.f32.gmra.mxu0 %v2563
    %v2565 = vpop.f32.mrf.mxu0
    %v2566 = vadd.f32 %v2449, %v2565
    %v2567 = vpop.f32.mrf.mxu0
    %2568 = vmatprep.mubr.f32.mxu0 0.0
    %v2569 = vand.u32 %v1981, 4294901760
    %2570 = vmatmul.mubr.f32.gmra.mxu0 %v2569
    %v2571 = vpop.f32.mrf.mxu0
    %v2572 = vadd.f32 %v2457, %v2571
    %v2573 = vpop.f32.mrf.mxu0
    %2574 = vmatprep.mubr.f32.mxu0 0.0
    %v2575 = vand.u32 %v1984, 4294901760
    %2576 = vmatmul.mubr.f32.gmra.mxu0 %v2575
    %v2577 = vpop.f32.mrf.mxu0
    %v2578 = vadd.f32 %v2465, %v2577
    %v2579 = vpop.f32.mrf.mxu0
    %2580 = vdwg.mxu0
    %2581 = vmatprep.subr.mxu0 0.0
    %2582 = vmatpush1.msra.mxu0 0.0
    %2583 = vmatprep.subr.mxu0 0.0
    %2584 = vmatpush1.msra.mxu0 0.0
    %2585 = vmatprep.subr.mxu0 0.0
    %2586 = vmatpush1.msra.mxu0 0.0
    %2587 = vmatprep.subr.mxu0 0.0
    %2588 = vmatpush1.msra.mxu0 0.0
    %2589 = vmatprep.subr.mxu0 0.0
    %2590 = vmatpush1.msra.mxu0 0.0
    %2591 = vmatprep.subr.mxu0 0.0
    %2592 = vmatpush1.msra.mxu0 0.0
    %2593 = vmatprep.subr.mxu0 0.0
    %2594 = vmatpush1.msra.mxu0 0.0
    %2595 = vmatprep.subr.mxu0 0.0
    %2596 = vmatpush1.msra.mxu0 0.0
    %2597 = vmatprep.subr.mxu0 0.0
    %2598 = vmatpush1.msra.mxu0 0.0
    %2599 = vmatprep.subr.mxu0 0.0
    %2600 = vmatpush1.msra.mxu0 0.0
    %2601 = vmatprep.subr.mxu0 0.0
    %2602 = vmatpush1.msra.mxu0 0.0
    %2603 = vmatprep.subr.mxu0 0.0
    %2604 = vmatpush1.msra.mxu0 0.0
    %2605 = vmatprep.subr.mxu0 0.0
    %v2606 = vand.u32 %v1967, 4294901760
    %2607 = vmatpush1.msra.mxu0 %v2606
    %2608 = vmatprep.subr.mxu0 0.0
    %v2609 = vand.u32 %v1966, 4294901760
    %2610 = vmatpush1.msra.mxu0 %v2609
    %2611 = vmatprep.subr.mxu0 0.0
    %v2612 = vand.u32 %v1965, 4294901760
    %2613 = vmatpush1.msra.mxu0 %v2612
    %2614 = vmatprep.subr.mxu0 0.0
    %v2615 = vand.u32 %v1964, 4294901760
    %2616 = vmatpush1.msra.mxu0 %v2615
    %2617 = vmatprep.subr.mxu0 0.0
    %2618 = vmatpush2.msra.mxu0 0.0
    %2619 = vmatprep.subr.mxu0 0.0
    %2620 = vmatpush2.msra.mxu0 0.0
    %2621 = vmatprep.subr.mxu0 0.0
    %2622 = vmatpush2.msra.mxu0 0.0
    %2623 = vmatprep.subr.mxu0 0.0
    %2624 = vmatpush2.msra.mxu0 0.0
    %2625 = vmatprep.subr.mxu0 0.0
    %2626 = vmatpush2.msra.mxu0 0.0
    %2627 = vmatprep.subr.mxu0 0.0
    %2628 = vmatpush2.msra.mxu0 0.0
    %2629 = vmatprep.subr.mxu0 0.0
    %2630 = vmatpush2.msra.mxu0 0.0
    %2631 = vmatprep.subr.mxu0 0.0
    %2632 = vmatpush2.msra.mxu0 0.0
    %2633 = vmatprep.subr.mxu0 0.0
    %2634 = vmatpush2.msra.mxu0 0.0
    %2635 = vmatprep.subr.mxu0 0.0
    %2636 = vmatpush2.msra.mxu0 0.0
    %2637 = vmatprep.subr.mxu0 0.0
    %2638 = vmatpush2.msra.mxu0 0.0
    %2639 = vmatprep.subr.mxu0 0.0
    %2640 = vmatpush2.msra.mxu0 0.0
    %2641 = vmatprep.subr.mxu0 0.0
    %2642 = vmatpush2.msra.mxu0 0.0
    %2643 = vmatprep.subr.mxu0 0.0
    %2644 = vmatpush2.msra.mxu0 0.0
    %2645 = vmatprep.subr.mxu0 0.0
    %2646 = vmatpush2.msra.mxu0 0.0
    %2647 = vmatprep.subr.mxu0 0.0
    %2648 = vmatpush2.msra.mxu0 0.0
    %2649 = vmatprep.mubr.f32.mxu0 0.0
    %v2650 = vand.u32 %v1969, 4294901760
    %2651 = vmatmul.mubr.f32.gmra.mxu0 %v2650
    %v2652 = vpop.f32.mrf.mxu0
    %v2653 = vadd.f32 %v2548, %v2652
    %v2654 = vpop.f32.mrf.mxu0
    %2655 = vmatprep.mubr.f32.mxu0 0.0
    %v2656 = vand.u32 %v1972, 4294901760
    %2657 = vmatmul.mubr.f32.gmra.mxu0 %v2656
    %v2658 = vpop.f32.mrf.mxu0
    %v2659 = vadd.f32 %v2554, %v2658
    %v2660 = vpop.f32.mrf.mxu0
    %2661 = vmatprep.mubr.f32.mxu0 0.0
    %v2662 = vand.u32 %v1975, 4294901760
    %2663 = vmatmul.mubr.f32.gmra.mxu0 %v2662
    %v2664 = vpop.f32.mrf.mxu0
    %v2665 = vadd.f32 %v2560, %v2664
    %v2666 = vpop.f32.mrf.mxu0
    %2667 = vmatprep.mubr.f32.mxu0 0.0
    %v2668 = vand.u32 %v1978, 4294901760
    %2669 = vmatmul.mubr.f32.gmra.mxu0 %v2668
    %v2670 = vpop.f32.mrf.mxu0
    %v2671 = vadd.f32 %v2566, %v2670
    %v2672 = vpop.f32.mrf.mxu0
    %2673 = vmatprep.mubr.f32.mxu0 0.0
    %v2674 = vand.u32 %v1981, 4294901760
    %2675 = vmatmul.mubr.f32.gmra.mxu0 %v2674
    %v2676 = vpop.f32.mrf.mxu0
    %v2677 = vadd.f32 %v2572, %v2676
    %v2678 = vpop.f32.mrf.mxu0
    %2679 = vmatprep.mubr.f32.mxu0 0.0
    %v2680 = vand.u32 %v1984, 4294901760
    %2681 = vmatmul.mubr.f32.gmra.mxu0 %v2680
    %v2682 = vpop.f32.mrf.mxu0
    %v2683 = vadd.f32 %v2578, %v2682
    %v2684 = vpop.f32.mrf.mxu0
    %2685 = vdwg.mxu0
    %v2686 = vld [vmem:[%s11] sm:$0x1]
    %v2688 = vlaneseq
    %v2689 = vshrl.u32 %v2688, 7
    %v2690 = vsub.s32 0, %v2689
    %v2691 = vrot.slane %v2686, %v2690
    %v2693 = vadd.f32 %v2653, %v2691
    %v2694 = vadd.f32 %v2659, %v2691
    %v2695 = vadd.f32 %v2665, %v2691
    %v2696 = vadd.f32 %v2671, %v2691
    %v2697 = vadd.f32 %v2677, %v2691
    %v2698 = vadd.f32 %v2683, %v2691
    %2704 = vrot.lane.b32.xlu0 %v2694, 96
    %v2705 = vpop.permute.xlu0 %2704
    %2706 = vrot.lane.b32.xlu0 %v2695, 96
    %v2707 = vpop.permute.xlu0 %2706
    %2708 = vrot.lane.b32.xlu0 %v2696, 96
    %v2709 = vpop.permute.xlu0 %2708
    %2710 = vrot.lane.b32.xlu0 %v2697, 96
    %v2711 = vpop.permute.xlu0 %2710
    %2712 = vrot.lane.b32.xlu0 %v2698, 96
    %v2713 = vpop.permute.xlu0 %2712
    %v2719 = vmax.f32 %v1955, 0.0
    %v2720 = vmax.f32 %v2693, 0.0
    %v2721 = vmax.f32 %v2705, 0.0
    %v2722 = vmax.f32 %v2707, 0.0
    %v2723 = vmax.f32 %v2709, 0.0
    %v2724 = vmax.f32 %v2711, 0.0
    %v2725 = vmax.f32 %v2713, 0.0
    %v2726 = vld [vmem:[%s12] sm:$0xff]
    %v2727 = vld [vmem:[%s12 + $0x8] sm:$0xff]
    %v2728 = vld [vmem:[%s12 + $0x10] sm:$0xff]
    %v2729 = vld [vmem:[%s12 + $0x18] sm:$0xff]
    %v2731 = vsel %vm155, %v2719, 0
    %v2734 = vsel %vm155, %v2720, 0
    %v2737 = vsel %vm155, %v2721, 0
    %v2740 = vsel %vm155, %v2722, 0
    %v2743 = vsel %vm155, %v2723, 0
    %v2746 = vsel %vm155, %v2724, 0
    %v2749 = vsel %vm155, %v2725, 0
    %2751 = vmatprep.subr.mxu0 0.0
    %2752 = vmatpush1.msra.mxu0 0.0
    %2753 = vmatprep.subr.mxu0 0.0
    %2754 = vmatpush1.msra.mxu0 0.0
    %2755 = vmatprep.subr.mxu0 0.0
    %2756 = vmatpush1.msra.mxu0 0.0
    %2757 = vmatprep.subr.mxu0 0.0
    %2758 = vmatpush1.msra.mxu0 0.0
    %2759 = vmatprep.subr.mxu0 0.0
    %2760 = vmatpush1.msra.mxu0 0.0
    %2761 = vmatprep.subr.mxu0 0.0
    %2762 = vmatpush1.msra.mxu0 0.0
    %2763 = vmatprep.subr.mxu0 0.0
    %2764 = vmatpush1.msra.mxu0 0.0
    %2765 = vmatprep.subr.mxu0 0.0
    %2766 = vmatpush1.msra.mxu0 0.0
    %2767 = vmatprep.subr.mxu0 0.0
    %2768 = vmatpush1.msra.mxu0 0.0
    %2769 = vmatprep.subr.mxu0 0.0
    %2770 = vmatpush1.msra.mxu0 0.0
    %2771 = vmatprep.subr.mxu0 0.0
    %2772 = vmatpush1.msra.mxu0 0.0
    %2773 = vmatprep.subr.mxu0 0.0
    %2774 = vmatpush1.msra.mxu0 0.0
    %2775 = vmatprep.subr.mxu0 0.0
    %v2776 = vand.u32 %v2729, 4294901760
    %2777 = vmatpush1.msra.mxu0 %v2776
    %2778 = vmatprep.subr.mxu0 0.0
    %v2779 = vand.u32 %v2728, 4294901760
    %2780 = vmatpush1.msra.mxu0 %v2779
    %2781 = vmatprep.subr.mxu0 0.0
    %v2782 = vand.u32 %v2727, 4294901760
    %2783 = vmatpush1.msra.mxu0 %v2782
    %2784 = vmatprep.subr.mxu0 0.0
    %v2785 = vand.u32 %v2726, 4294901760
    %2786 = vmatpush1.msra.mxu0 %v2785
    %2787 = vmatprep.subr.mxu0 0.0
    %2788 = vmatpush2.msra.mxu0 0.0
    %2789 = vmatprep.subr.mxu0 0.0
    %2790 = vmatpush2.msra.mxu0 0.0
    %2791 = vmatprep.subr.mxu0 0.0
    %2792 = vmatpush2.msra.mxu0 0.0
    %2793 = vmatprep.subr.mxu0 0.0
    %2794 = vmatpush2.msra.mxu0 0.0
    %2795 = vmatprep.subr.mxu0 0.0
    %2796 = vmatpush2.msra.mxu0 0.0
    %2797 = vmatprep.subr.mxu0 0.0
    %2798 = vmatpush2.msra.mxu0 0.0
    %2799 = vmatprep.subr.mxu0 0.0
    %2800 = vmatpush2.msra.mxu0 0.0
    %2801 = vmatprep.subr.mxu0 0.0
    %2802 = vmatpush2.msra.mxu0 0.0
    %2803 = vmatprep.subr.mxu0 0.0
    %2804 = vmatpush2.msra.mxu0 0.0
    %2805 = vmatprep.subr.mxu0 0.0
    %2806 = vmatpush2.msra.mxu0 0.0
    %2807 = vmatprep.subr.mxu0 0.0
    %2808 = vmatpush2.msra.mxu0 0.0
    %2809 = vmatprep.subr.mxu0 0.0
    %2810 = vmatpush2.msra.mxu0 0.0
    %2811 = vmatprep.subr.mxu0 0.0
    %2812 = vmatpush2.msra.mxu0 0.0
    %2813 = vmatprep.subr.mxu0 0.0
    %2814 = vmatpush2.msra.mxu0 0.0
    %2815 = vmatprep.subr.mxu0 0.0
    %2816 = vmatpush2.msra.mxu0 0.0
    %2817 = vmatprep.subr.mxu0 0.0
    %2818 = vmatpush2.msra.mxu0 0.0
    %2819 = vmatprep.mubr.f32.mxu0 0.0
    %v2820 = vand.u32 %v2731, 4294901760
    %v2821 = vsub.f32 %v2731, %v2820
    %v2822 = vand.u32 %v2821, 4294901760
    %v2823 = vsub.f32 %v2821, %v2822
    %v2824 = vand.u32 %v2823, 4294901760
    %2825 = vmatmul.mubr.f32.gmra.mxu0 %v2824
    %v2826 = vpop.f32.mrf.mxu0
    %v2827 = vadd.f32 0.0, %v2826
    %v2828 = vpop.f32.mrf.mxu0
    %2829 = vmatprep.mubr.f32.mxu0 0.0
    %v2830 = vand.u32 %v2734, 4294901760
    %v2831 = vsub.f32 %v2734, %v2830
    %v2832 = vand.u32 %v2831, 4294901760
    %v2833 = vsub.f32 %v2831, %v2832
    %v2834 = vand.u32 %v2833, 4294901760
    %2835 = vmatmul.mubr.f32.gmra.mxu0 %v2834
    %v2836 = vpop.f32.mrf.mxu0
    %v2837 = vadd.f32 0.0, %v2836
    %v2838 = vpop.f32.mrf.mxu0
    %2839 = vmatprep.mubr.f32.mxu0 0.0
    %v2840 = vand.u32 %v2737, 4294901760
    %v2841 = vsub.f32 %v2737, %v2840
    %v2842 = vand.u32 %v2841, 4294901760
    %v2843 = vsub.f32 %v2841, %v2842
    %v2844 = vand.u32 %v2843, 4294901760
    %2845 = vmatmul.mubr.f32.gmra.mxu0 %v2844
    %v2846 = vpop.f32.mrf.mxu0
    %v2847 = vadd.f32 0.0, %v2846
    %v2848 = vpop.f32.mrf.mxu0
    %2849 = vmatprep.mubr.f32.mxu0 0.0
    %v2850 = vand.u32 %v2740, 4294901760
    %v2851 = vsub.f32 %v2740, %v2850
    %v2852 = vand.u32 %v2851, 4294901760
    %v2853 = vsub.f32 %v2851, %v2852
    %v2854 = vand.u32 %v2853, 4294901760
    %2855 = vmatmul.mubr.f32.gmra.mxu0 %v2854
    %v2856 = vpop.f32.mrf.mxu0
    %v2857 = vadd.f32 0.0, %v2856
    %v2858 = vpop.f32.mrf.mxu0
    %2859 = vmatprep.mubr.f32.mxu0 0.0
    %v2860 = vand.u32 %v2743, 4294901760
    %v2861 = vsub.f32 %v2743, %v2860
    %v2862 = vand.u32 %v2861, 4294901760
    %v2863 = vsub.f32 %v2861, %v2862
    %v2864 = vand.u32 %v2863, 4294901760
    %2865 = vmatmul.mubr.f32.gmra.mxu0 %v2864
    %v2866 = vpop.f32.mrf.mxu0
    %v2867 = vadd.f32 0.0, %v2866
    %v2868 = vpop.f32.mrf.mxu0
    %2869 = vmatprep.mubr.f32.mxu0 0.0
    %v2870 = vand.u32 %v2746, 4294901760
    %v2871 = vsub.f32 %v2746, %v2870
    %v2872 = vand.u32 %v2871, 4294901760
    %v2873 = vsub.f32 %v2871, %v2872
    %v2874 = vand.u32 %v2873, 4294901760
    %2875 = vmatmul.mubr.f32.gmra.mxu0 %v2874
    %v2876 = vpop.f32.mrf.mxu0
    %v2877 = vadd.f32 0.0, %v2876
    %v2878 = vpop.f32.mrf.mxu0
    %2879 = vmatprep.mubr.f32.mxu0 0.0
    %v2880 = vand.u32 %v2749, 4294901760
    %v2881 = vsub.f32 %v2749, %v2880
    %v2882 = vand.u32 %v2881, 4294901760
    %v2883 = vsub.f32 %v2881, %v2882
    %v2884 = vand.u32 %v2883, 4294901760
    %2885 = vmatmul.mubr.f32.gmra.mxu0 %v2884
    %v2886 = vpop.f32.mrf.mxu0
    %v2887 = vadd.f32 0.0, %v2886
    %v2888 = vpop.f32.mrf.mxu0
    %2889 = vdwg.mxu0
    %2890 = vmatprep.subr.mxu0 0.0
    %2891 = vmatpush1.msra.mxu0 0.0
    %2892 = vmatprep.subr.mxu0 0.0
    %2893 = vmatpush1.msra.mxu0 0.0
    %2894 = vmatprep.subr.mxu0 0.0
    %2895 = vmatpush1.msra.mxu0 0.0
    %2896 = vmatprep.subr.mxu0 0.0
    %2897 = vmatpush1.msra.mxu0 0.0
    %2898 = vmatprep.subr.mxu0 0.0
    %2899 = vmatpush1.msra.mxu0 0.0
    %2900 = vmatprep.subr.mxu0 0.0
    %2901 = vmatpush1.msra.mxu0 0.0
    %2902 = vmatprep.subr.mxu0 0.0
    %2903 = vmatpush1.msra.mxu0 0.0
    %2904 = vmatprep.subr.mxu0 0.0
    %2905 = vmatpush1.msra.mxu0 0.0
    %2906 = vmatprep.subr.mxu0 0.0
    %2907 = vmatpush1.msra.mxu0 0.0
    %2908 = vmatprep.subr.mxu0 0.0
    %2909 = vmatpush1.msra.mxu0 0.0
    %2910 = vmatprep.subr.mxu0 0.0
    %2911 = vmatpush1.msra.mxu0 0.0
    %2912 = vmatprep.subr.mxu0 0.0
    %2913 = vmatpush1.msra.mxu0 0.0
    %2914 = vmatprep.subr.mxu0 0.0
    %v2915 = vand.u32 %v2729, 4294901760
    %v2916 = vsub.f32 %v2729, %v2915
    %v2917 = vand.u32 %v2916, 4294901760
    %v2918 = vsub.f32 %v2916, %v2917
    %v2919 = vand.u32 %v2918, 4294901760
    %2920 = vmatpush1.msra.mxu0 %v2919
    %2921 = vmatprep.subr.mxu0 0.0
    %v2922 = vand.u32 %v2728, 4294901760
    %v2923 = vsub.f32 %v2728, %v2922
    %v2924 = vand.u32 %v2923, 4294901760
    %v2925 = vsub.f32 %v2923, %v2924
    %v2926 = vand.u32 %v2925, 4294901760
    %2927 = vmatpush1.msra.mxu0 %v2926
    %2928 = vmatprep.subr.mxu0 0.0
    %v2929 = vand.u32 %v2727, 4294901760
    %v2930 = vsub.f32 %v2727, %v2929
    %v2931 = vand.u32 %v2930, 4294901760
    %v2932 = vsub.f32 %v2930, %v2931
    %v2933 = vand.u32 %v2932, 4294901760
    %2934 = vmatpush1.msra.mxu0 %v2933
    %2935 = vmatprep.subr.mxu0 0.0
    %v2936 = vand.u32 %v2726, 4294901760
    %v2937 = vsub.f32 %v2726, %v2936
    %v2938 = vand.u32 %v2937, 4294901760
    %v2939 = vsub.f32 %v2937, %v2938
    %v2940 = vand.u32 %v2939, 4294901760
    %2941 = vmatpush1.msra.mxu0 %v2940
    %2942 = vmatprep.subr.mxu0 0.0
    %2943 = vmatpush2.msra.mxu0 0.0
    %2944 = vmatprep.subr.mxu0 0.0
    %2945 = vmatpush2.msra.mxu0 0.0
    %2946 = vmatprep.subr.mxu0 0.0
    %2947 = vmatpush2.msra.mxu0 0.0
    %2948 = vmatprep.subr.mxu0 0.0
    %2949 = vmatpush2.msra.mxu0 0.0
    %2950 = vmatprep.subr.mxu0 0.0
    %2951 = vmatpush2.msra.mxu0 0.0
    %2952 = vmatprep.subr.mxu0 0.0
    %2953 = vmatpush2.msra.mxu0 0.0
    %2954 = vmatprep.subr.mxu0 0.0
    %2955 = vmatpush2.msra.mxu0 0.0
    %2956 = vmatprep.subr.mxu0 0.0
    %2957 = vmatpush2.msra.mxu0 0.0
    %2958 = vmatprep.subr.mxu0 0.0
    %2959 = vmatpush2.msra.mxu0 0.0
    %2960 = vmatprep.subr.mxu0 0.0
    %2961 = vmatpush2.msra.mxu0 0.0
    %2962 = vmatprep.subr.mxu0 0.0
    %2963 = vmatpush2.msra.mxu0 0.0
    %2964 = vmatprep.subr.mxu0 0.0
    %2965 = vmatpush2.msra.mxu0 0.0
    %2966 = vmatprep.subr.mxu0 0.0
    %2967 = vmatpush2.msra.mxu0 0.0
    %2968 = vmatprep.subr.mxu0 0.0
    %2969 = vmatpush2.msra.mxu0 0.0
    %2970 = vmatprep.subr.mxu0 0.0
    %2971 = vmatpush2.msra.mxu0 0.0
    %2972 = vmatprep.subr.mxu0 0.0
    %2973 = vmatpush2.msra.mxu0 0.0
    %2974 = vmatprep.mubr.f32.mxu0 0.0
    %v2975 = vand.u32 %v2731, 4294901760
    %2976 = vmatmul.mubr.f32.gmra.mxu0 %v2975
    %v2977 = vpop.f32.mrf.mxu0
    %v2978 = vadd.f32 %v2827, %v2977
    %v2979 = vpop.f32.mrf.mxu0
    %2980 = vmatprep.mubr.f32.mxu0 0.0
    %v2981 = vand.u32 %v2734, 4294901760
    %2982 = vmatmul.mubr.f32.gmra.mxu0 %v2981
    %v2983 = vpop.f32.mrf.mxu0
    %v2984 = vadd.f32 %v2837, %v2983
    %v2985 = vpop.f32.mrf.mxu0
    %2986 = vmatprep.mubr.f32.mxu0 0.0
    %v2987 = vand.u32 %v2737, 4294901760
    %2988 = vmatmul.mubr.f32.gmra.mxu0 %v2987
    %v2989 = vpop.f32.mrf.mxu0
    %v2990 = vadd.f32 %v2847, %v2989
    %v2991 = vpop.f32.mrf.mxu0
    %2992 = vmatprep.mubr.f32.mxu0 0.0
    %v2993 = vand.u32 %v2740, 4294901760
    %2994 = vmatmul.mubr.f32.gmra.mxu0 %v2993
    %v2995 = vpop.f32.mrf.mxu0
    %v2996 = vadd.f32 %v2857, %v2995
    %v2997 = vpop.f32.mrf.mxu0
    %2998 = vmatprep.mubr.f32.mxu0 0.0
    %v2999 = vand.u32 %v2743, 4294901760
    %3000 = vmatmul.mubr.f32.gmra.mxu0 %v2999
    %v3001 = vpop.f32.mrf.mxu0
    %v3002 = vadd.f32 %v2867, %v3001
    %v3003 = vpop.f32.mrf.mxu0
    %3004 = vmatprep.mubr.f32.mxu0 0.0
    %v3005 = vand.u32 %v2746, 4294901760
    %3006 = vmatmul.mubr.f32.gmra.mxu0 %v3005
    %v3007 = vpop.f32.mrf.mxu0
    %v3008 = vadd.f32 %v2877, %v3007
    %v3009 = vpop.f32.mrf.mxu0
    %3010 = vmatprep.mubr.f32.mxu0 0.0
    %v3011 = vand.u32 %v2749, 4294901760
    %3012 = vmatmul.mubr.f32.gmra.mxu0 %v3011
    %v3013 = vpop.f32.mrf.mxu0
    %v3014 = vadd.f32 %v2887, %v3013
    %v3015 = vpop.f32.mrf.mxu0
    %3016 = vdwg.mxu0
    %3017 = vmatprep.subr.mxu0 0.0
    %3018 = vmatpush1.msra.mxu0 0.0
    %3019 = vmatprep.subr.mxu0 0.0
    %3020 = vmatpush1.msra.mxu0 0.0
    %3021 = vmatprep.subr.mxu0 0.0
    %3022 = vmatpush1.msra.mxu0 0.0
    %3023 = vmatprep.subr.mxu0 0.0
    %3024 = vmatpush1.msra.mxu0 0.0
    %3025 = vmatprep.subr.mxu0 0.0
    %3026 = vmatpush1.msra.mxu0 0.0
    %3027 = vmatprep.subr.mxu0 0.0
    %3028 = vmatpush1.msra.mxu0 0.0
    %3029 = vmatprep.subr.mxu0 0.0
    %3030 = vmatpush1.msra.mxu0 0.0
    %3031 = vmatprep.subr.mxu0 0.0
    %3032 = vmatpush1.msra.mxu0 0.0
    %3033 = vmatprep.subr.mxu0 0.0
    %3034 = vmatpush1.msra.mxu0 0.0
    %3035 = vmatprep.subr.mxu0 0.0
    %3036 = vmatpush1.msra.mxu0 0.0
    %3037 = vmatprep.subr.mxu0 0.0
    %3038 = vmatpush1.msra.mxu0 0.0
    %3039 = vmatprep.subr.mxu0 0.0
    %3040 = vmatpush1.msra.mxu0 0.0
    %3041 = vmatprep.subr.mxu0 0.0
    %v3042 = vand.u32 %v2729, 4294901760
    %v3043 = vsub.f32 %v2729, %v3042
    %3044 = vmatpush1.msra.mxu0 %v3043
    %3045 = vmatprep.subr.mxu0 0.0
    %v3046 = vand.u32 %v2728, 4294901760
    %v3047 = vsub.f32 %v2728, %v3046
    %3048 = vmatpush1.msra.mxu0 %v3047
    %3049 = vmatprep.subr.mxu0 0.0
    %v3050 = vand.u32 %v2727, 4294901760
    %v3051 = vsub.f32 %v2727, %v3050
    %3052 = vmatpush1.msra.mxu0 %v3051
    %3053 = vmatprep.subr.mxu0 0.0
    %v3054 = vand.u32 %v2726, 4294901760
    %v3055 = vsub.f32 %v2726, %v3054
    %3056 = vmatpush1.msra.mxu0 %v3055
    %3057 = vmatprep.subr.mxu0 0.0
    %3058 = vmatpush2.msra.mxu0 0.0
    %3059 = vmatprep.subr.mxu0 0.0
    %3060 = vmatpush2.msra.mxu0 0.0
    %3061 = vmatprep.subr.mxu0 0.0
    %3062 = vmatpush2.msra.mxu0 0.0
    %3063 = vmatprep.subr.mxu0 0.0
    %3064 = vmatpush2.msra.mxu0 0.0
    %3065 = vmatprep.subr.mxu0 0.0
    %3066 = vmatpush2.msra.mxu0 0.0
    %3067 = vmatprep.subr.mxu0 0.0
    %3068 = vmatpush2.msra.mxu0 0.0
    %3069 = vmatprep.subr.mxu0 0.0
    %3070 = vmatpush2.msra.mxu0 0.0
    %3071 = vmatprep.subr.mxu0 0.0
    %3072 = vmatpush2.msra.mxu0 0.0
    %3073 = vmatprep.subr.mxu0 0.0
    %3074 = vmatpush2.msra.mxu0 0.0
    %3075 = vmatprep.subr.mxu0 0.0
    %3076 = vmatpush2.msra.mxu0 0.0
    %3077 = vmatprep.subr.mxu0 0.0
    %3078 = vmatpush2.msra.mxu0 0.0
    %3079 = vmatprep.subr.mxu0 0.0
    %3080 = vmatpush2.msra.mxu0 0.0
    %3081 = vmatprep.subr.mxu0 0.0
    %3082 = vmatpush2.msra.mxu0 0.0
    %3083 = vmatprep.subr.mxu0 0.0
    %3084 = vmatpush2.msra.mxu0 0.0
    %3085 = vmatprep.subr.mxu0 0.0
    %3086 = vmatpush2.msra.mxu0 0.0
    %3087 = vmatprep.subr.mxu0 0.0
    %3088 = vmatpush2.msra.mxu0 0.0
    %3089 = vmatprep.mubr.f32.mxu0 0.0
    %v3090 = vand.u32 %v2731, 4294901760
    %v3091 = vsub.f32 %v2731, %v3090
    %3092 = vmatmul.mubr.f32.gmra.mxu0 %v3091
    %v3093 = vpop.f32.mrf.mxu0
    %v3094 = vadd.f32 %v2978, %v3093
    %v3095 = vpop.f32.mrf.mxu0
    %3096 = vmatprep.mubr.f32.mxu0 0.0
    %v3097 = vand.u32 %v2734, 4294901760
    %v3098 = vsub.f32 %v2734, %v3097
    %3099 = vmatmul.mubr.f32.gmra.mxu0 %v3098
    %v3100 = vpop.f32.mrf.mxu0
    %v3101 = vadd.f32 %v2984, %v3100
    %v3102 = vpop.f32.mrf.mxu0
    %3103 = vmatprep.mubr.f32.mxu0 0.0
    %v3104 = vand.u32 %v2737, 4294901760
    %v3105 = vsub.f32 %v2737, %v3104
    %3106 = vmatmul.mubr.f32.gmra.mxu0 %v3105
    %v3107 = vpop.f32.mrf.mxu0
    %v3108 = vadd.f32 %v2990, %v3107
    %v3109 = vpop.f32.mrf.mxu0
    %3110 = vmatprep.mubr.f32.mxu0 0.0
    %v3111 = vand.u32 %v2740, 4294901760
    %v3112 = vsub.f32 %v2740, %v3111
    %3113 = vmatmul.mubr.f32.gmra.mxu0 %v3112
    %v3114 = vpop.f32.mrf.mxu0
    %v3115 = vadd.f32 %v2996, %v3114
    %v3116 = vpop.f32.mrf.mxu0
    %3117 = vmatprep.mubr.f32.mxu0 0.0
    %v3118 = vand.u32 %v2743, 4294901760
    %v3119 = vsub.f32 %v2743, %v3118
    %3120 = vmatmul.mubr.f32.gmra.mxu0 %v3119
    %v3121 = vpop.f32.mrf.mxu0
    %v3122 = vadd.f32 %v3002, %v3121
    %v3123 = vpop.f32.mrf.mxu0
    %3124 = vmatprep.mubr.f32.mxu0 0.0
    %v3125 = vand.u32 %v2746, 4294901760
    %v3126 = vsub.f32 %v2746, %v3125
    %3127 = vmatmul.mubr.f32.gmra.mxu0 %v3126
    %v3128 = vpop.f32.mrf.mxu0
    %v3129 = vadd.f32 %v3008, %v3128
    %v3130 = vpop.f32.mrf.mxu0
    %3131 = vmatprep.mubr.f32.mxu0 0.0
    %v3132 = vand.u32 %v2749, 4294901760
    %v3133 = vsub.f32 %v2749, %v3132
    %3134 = vmatmul.mubr.f32.gmra.mxu0 %v3133
    %v3135 = vpop.f32.mrf.mxu0
    %v3136 = vadd.f32 %v3014, %v3135
    %v3137 = vpop.f32.mrf.mxu0
    %3138 = vdwg.mxu0
    %3139 = vmatprep.subr.mxu0 0.0
    %3140 = vmatpush1.msra.mxu0 0.0
    %3141 = vmatprep.subr.mxu0 0.0
    %3142 = vmatpush1.msra.mxu0 0.0
    %3143 = vmatprep.subr.mxu0 0.0
    %3144 = vmatpush1.msra.mxu0 0.0
    %3145 = vmatprep.subr.mxu0 0.0
    %3146 = vmatpush1.msra.mxu0 0.0
    %3147 = vmatprep.subr.mxu0 0.0
    %3148 = vmatpush1.msra.mxu0 0.0
    %3149 = vmatprep.subr.mxu0 0.0
    %3150 = vmatpush1.msra.mxu0 0.0
    %3151 = vmatprep.subr.mxu0 0.0
    %3152 = vmatpush1.msra.mxu0 0.0
    %3153 = vmatprep.subr.mxu0 0.0
    %3154 = vmatpush1.msra.mxu0 0.0
    %3155 = vmatprep.subr.mxu0 0.0
    %3156 = vmatpush1.msra.mxu0 0.0
    %3157 = vmatprep.subr.mxu0 0.0
    %3158 = vmatpush1.msra.mxu0 0.0
    %3159 = vmatprep.subr.mxu0 0.0
    %3160 = vmatpush1.msra.mxu0 0.0
    %3161 = vmatprep.subr.mxu0 0.0
    %3162 = vmatpush1.msra.mxu0 0.0
    %3163 = vmatprep.subr.mxu0 0.0
    %v3164 = vand.u32 %v2729, 4294901760
    %3165 = vmatpush1.msra.mxu0 %v3164
    %3166 = vmatprep.subr.mxu0 0.0
    %v3167 = vand.u32 %v2728, 4294901760
    %3168 = vmatpush1.msra.mxu0 %v3167
    %3169 = vmatprep.subr.mxu0 0.0
    %v3170 = vand.u32 %v2727, 4294901760
    %3171 = vmatpush1.msra.mxu0 %v3170
    %3172 = vmatprep.subr.mxu0 0.0
    %v3173 = vand.u32 %v2726, 4294901760
    %3174 = vmatpush1.msra.mxu0 %v3173
    %3175 = vmatprep.subr.mxu0 0.0
    %3176 = vmatpush2.msra.mxu0 0.0
    %3177 = vmatprep.subr.mxu0 0.0
    %3178 = vmatpush2.msra.mxu0 0.0
    %3179 = vmatprep.subr.mxu0 0.0
    %3180 = vmatpush2.msra.mxu0 0.0
    %3181 = vmatprep.subr.mxu0 0.0
    %3182 = vmatpush2.msra.mxu0 0.0
    %3183 = vmatprep.subr.mxu0 0.0
    %3184 = vmatpush2.msra.mxu0 0.0
    %3185 = vmatprep.subr.mxu0 0.0
    %3186 = vmatpush2.msra.mxu0 0.0
    %3187 = vmatprep.subr.mxu0 0.0
    %3188 = vmatpush2.msra.mxu0 0.0
    %3189 = vmatprep.subr.mxu0 0.0
    %3190 = vmatpush2.msra.mxu0 0.0
    %3191 = vmatprep.subr.mxu0 0.0
    %3192 = vmatpush2.msra.mxu0 0.0
    %3193 = vmatprep.subr.mxu0 0.0
    %3194 = vmatpush2.msra.mxu0 0.0
    %3195 = vmatprep.subr.mxu0 0.0
    %3196 = vmatpush2.msra.mxu0 0.0
    %3197 = vmatprep.subr.mxu0 0.0
    %3198 = vmatpush2.msra.mxu0 0.0
    %3199 = vmatprep.subr.mxu0 0.0
    %3200 = vmatpush2.msra.mxu0 0.0
    %3201 = vmatprep.subr.mxu0 0.0
    %3202 = vmatpush2.msra.mxu0 0.0
    %3203 = vmatprep.subr.mxu0 0.0
    %3204 = vmatpush2.msra.mxu0 0.0
    %3205 = vmatprep.subr.mxu0 0.0
    %3206 = vmatpush2.msra.mxu0 0.0
    %3207 = vmatprep.mubr.f32.mxu0 0.0
    %v3208 = vand.u32 %v2731, 4294901760
    %v3209 = vsub.f32 %v2731, %v3208
    %v3210 = vand.u32 %v3209, 4294901760
    %3211 = vmatmul.mubr.f32.gmra.mxu0 %v3210
    %v3212 = vpop.f32.mrf.mxu0
    %v3213 = vadd.f32 %v3094, %v3212
    %v3214 = vpop.f32.mrf.mxu0
    %3215 = vmatprep.mubr.f32.mxu0 0.0
    %v3216 = vand.u32 %v2734, 4294901760
    %v3217 = vsub.f32 %v2734, %v3216
    %v3218 = vand.u32 %v3217, 4294901760
    %3219 = vmatmul.mubr.f32.gmra.mxu0 %v3218
    %v3220 = vpop.f32.mrf.mxu0
    %v3221 = vadd.f32 %v3101, %v3220
    %v3222 = vpop.f32.mrf.mxu0
    %3223 = vmatprep.mubr.f32.mxu0 0.0
    %v3224 = vand.u32 %v2737, 4294901760
    %v3225 = vsub.f32 %v2737, %v3224
    %v3226 = vand.u32 %v3225, 4294901760
    %3227 = vmatmul.mubr.f32.gmra.mxu0 %v3226
    %v3228 = vpop.f32.mrf.mxu0
    %v3229 = vadd.f32 %v3108, %v3228
    %v3230 = vpop.f32.mrf.mxu0
    %3231 = vmatprep.mubr.f32.mxu0 0.0
    %v3232 = vand.u32 %v2740, 4294901760
    %v3233 = vsub.f32 %v2740, %v3232
    %v3234 = vand.u32 %v3233, 4294901760
    %3235 = vmatmul.mubr.f32.gmra.mxu0 %v3234
    %v3236 = vpop.f32.mrf.mxu0
    %v3237 = vadd.f32 %v3115, %v3236
    %v3238 = vpop.f32.mrf.mxu0
    %3239 = vmatprep.mubr.f32.mxu0 0.0
    %v3240 = vand.u32 %v2743, 4294901760
    %v3241 = vsub.f32 %v2743, %v3240
    %v3242 = vand.u32 %v3241, 4294901760
    %3243 = vmatmul.mubr.f32.gmra.mxu0 %v3242
    %v3244 = vpop.f32.mrf.mxu0
    %v3245 = vadd.f32 %v3122, %v3244
    %v3246 = vpop.f32.mrf.mxu0
    %3247 = vmatprep.mubr.f32.mxu0 0.0
    %v3248 = vand.u32 %v2746, 4294901760
    %v3249 = vsub.f32 %v2746, %v3248
    %v3250 = vand.u32 %v3249, 4294901760
    %3251 = vmatmul.mubr.f32.gmra.mxu0 %v3250
    %v3252 = vpop.f32.mrf.mxu0
    %v3253 = vadd.f32 %v3129, %v3252
    %v3254 = vpop.f32.mrf.mxu0
    %3255 = vmatprep.mubr.f32.mxu0 0.0
    %v3256 = vand.u32 %v2749, 4294901760
    %v3257 = vsub.f32 %v2749, %v3256
    %v3258 = vand.u32 %v3257, 4294901760
    %3259 = vmatmul.mubr.f32.gmra.mxu0 %v3258
    %v3260 = vpop.f32.mrf.mxu0
    %v3261 = vadd.f32 %v3136, %v3260
    %v3262 = vpop.f32.mrf.mxu0
    %3263 = vdwg.mxu0
    %3264 = vmatprep.subr.mxu0 0.0
    %3265 = vmatpush1.msra.mxu0 0.0
    %3266 = vmatprep.subr.mxu0 0.0
    %3267 = vmatpush1.msra.mxu0 0.0
    %3268 = vmatprep.subr.mxu0 0.0
    %3269 = vmatpush1.msra.mxu0 0.0
    %3270 = vmatprep.subr.mxu0 0.0
    %3271 = vmatpush1.msra.mxu0 0.0
    %3272 = vmatprep.subr.mxu0 0.0
    %3273 = vmatpush1.msra.mxu0 0.0
    %3274 = vmatprep.subr.mxu0 0.0
    %3275 = vmatpush1.msra.mxu0 0.0
    %3276 = vmatprep.subr.mxu0 0.0
    %3277 = vmatpush1.msra.mxu0 0.0
    %3278 = vmatprep.subr.mxu0 0.0
    %3279 = vmatpush1.msra.mxu0 0.0
    %3280 = vmatprep.subr.mxu0 0.0
    %3281 = vmatpush1.msra.mxu0 0.0
    %3282 = vmatprep.subr.mxu0 0.0
    %3283 = vmatpush1.msra.mxu0 0.0
    %3284 = vmatprep.subr.mxu0 0.0
    %3285 = vmatpush1.msra.mxu0 0.0
    %3286 = vmatprep.subr.mxu0 0.0
    %3287 = vmatpush1.msra.mxu0 0.0
    %3288 = vmatprep.subr.mxu0 0.0
    %v3289 = vand.u32 %v2729, 4294901760
    %v3290 = vsub.f32 %v2729, %v3289
    %v3291 = vand.u32 %v3290, 4294901760
    %3292 = vmatpush1.msra.mxu0 %v3291
    %3293 = vmatprep.subr.mxu0 0.0
    %v3294 = vand.u32 %v2728, 4294901760
    %v3295 = vsub.f32 %v2728, %v3294
    %v3296 = vand.u32 %v3295, 4294901760
    %3297 = vmatpush1.msra.mxu0 %v3296
    %3298 = vmatprep.subr.mxu0 0.0
    %v3299 = vand.u32 %v2727, 4294901760
    %v3300 = vsub.f32 %v2727, %v3299
    %v3301 = vand.u32 %v3300, 4294901760
    %3302 = vmatpush1.msra.mxu0 %v3301
    %3303 = vmatprep.subr.mxu0 0.0
    %v3304 = vand.u32 %v2726, 4294901760
    %v3305 = vsub.f32 %v2726, %v3304
    %v3306 = vand.u32 %v3305, 4294901760
    %3307 = vmatpush1.msra.mxu0 %v3306
    %3308 = vmatprep.subr.mxu0 0.0
    %3309 = vmatpush2.msra.mxu0 0.0
    %3310 = vmatprep.subr.mxu0 0.0
    %3311 = vmatpush2.msra.mxu0 0.0
    %3312 = vmatprep.subr.mxu0 0.0
    %3313 = vmatpush2.msra.mxu0 0.0
    %3314 = vmatprep.subr.mxu0 0.0
    %3315 = vmatpush2.msra.mxu0 0.0
    %3316 = vmatprep.subr.mxu0 0.0
    %3317 = vmatpush2.msra.mxu0 0.0
    %3318 = vmatprep.subr.mxu0 0.0
    %3319 = vmatpush2.msra.mxu0 0.0
    %3320 = vmatprep.subr.mxu0 0.0
    %3321 = vmatpush2.msra.mxu0 0.0
    %3322 = vmatprep.subr.mxu0 0.0
    %3323 = vmatpush2.msra.mxu0 0.0
    %3324 = vmatprep.subr.mxu0 0.0
    %3325 = vmatpush2.msra.mxu0 0.0
    %3326 = vmatprep.subr.mxu0 0.0
    %3327 = vmatpush2.msra.mxu0 0.0
    %3328 = vmatprep.subr.mxu0 0.0
    %3329 = vmatpush2.msra.mxu0 0.0
    %3330 = vmatprep.subr.mxu0 0.0
    %3331 = vmatpush2.msra.mxu0 0.0
    %3332 = vmatprep.subr.mxu0 0.0
    %3333 = vmatpush2.msra.mxu0 0.0
    %3334 = vmatprep.subr.mxu0 0.0
    %3335 = vmatpush2.msra.mxu0 0.0
    %3336 = vmatprep.subr.mxu0 0.0
    %3337 = vmatpush2.msra.mxu0 0.0
    %3338 = vmatprep.subr.mxu0 0.0
    %3339 = vmatpush2.msra.mxu0 0.0
    %3340 = vmatprep.mubr.f32.mxu0 0.0
    %v3341 = vand.u32 %v2731, 4294901760
    %3342 = vmatmul.mubr.f32.gmra.mxu0 %v3341
    %v3343 = vpop.f32.mrf.mxu0
    %v3344 = vadd.f32 %v3213, %v3343
    %v3345 = vpop.f32.mrf.mxu0
    %3346 = vmatprep.mubr.f32.mxu0 0.0
    %v3347 = vand.u32 %v2734, 4294901760
    %3348 = vmatmul.mubr.f32.gmra.mxu0 %v3347
    %v3349 = vpop.f32.mrf.mxu0
    %v3350 = vadd.f32 %v3221, %v3349
    %v3351 = vpop.f32.mrf.mxu0
    %3352 = vmatprep.mubr.f32.mxu0 0.0
    %v3353 = vand.u32 %v2737, 4294901760
    %3354 = vmatmul.mubr.f32.gmra.mxu0 %v3353
    %v3355 = vpop.f32.mrf.mxu0
    %v3356 = vadd.f32 %v3229, %v3355
    %v3357 = vpop.f32.mrf.mxu0
    %3358 = vmatprep.mubr.f32.mxu0 0.0
    %v3359 = vand.u32 %v2740, 4294901760
    %3360 = vmatmul.mubr.f32.gmra.mxu0 %v3359
    %v3361 = vpop.f32.mrf.mxu0
    %v3362 = vadd.f32 %v3237, %v3361
    %v3363 = vpop.f32.mrf.mxu0
    %3364 = vmatprep.mubr.f32.mxu0 0.0
    %v3365 = vand.u32 %v2743, 4294901760
    %3366 = vmatmul.mubr.f32.gmra.mxu0 %v3365
    %v3367 = vpop.f32.mrf.mxu0
    %v3368 = vadd.f32 %v3245, %v3367
    %v3369 = vpop.f32.mrf.mxu0
    %3370 = vmatprep.mubr.f32.mxu0 0.0
    %v3371 = vand.u32 %v2746, 4294901760
    %3372 = vmatmul.mubr.f32.gmra.mxu0 %v3371
    %v3373 = vpop.f32.mrf.mxu0
    %v3374 = vadd.f32 %v3253, %v3373
    %v3375 = vpop.f32.mrf.mxu0
    %3376 = vmatprep.mubr.f32.mxu0 0.0
    %v3377 = vand.u32 %v2749, 4294901760
    %3378 = vmatmul.mubr.f32.gmra.mxu0 %v3377
    %v3379 = vpop.f32.mrf.mxu0
    %v3380 = vadd.f32 %v3261, %v3379
    %v3381 = vpop.f32.mrf.mxu0
    %3382 = vdwg.mxu0
    %3383 = vmatprep.subr.mxu0 0.0
    %3384 = vmatpush1.msra.mxu0 0.0
    %3385 = vmatprep.subr.mxu0 0.0
    %3386 = vmatpush1.msra.mxu0 0.0
    %3387 = vmatprep.subr.mxu0 0.0
    %3388 = vmatpush1.msra.mxu0 0.0
    %3389 = vmatprep.subr.mxu0 0.0
    %3390 = vmatpush1.msra.mxu0 0.0
    %3391 = vmatprep.subr.mxu0 0.0
    %3392 = vmatpush1.msra.mxu0 0.0
    %3393 = vmatprep.subr.mxu0 0.0
    %3394 = vmatpush1.msra.mxu0 0.0
    %3395 = vmatprep.subr.mxu0 0.0
    %3396 = vmatpush1.msra.mxu0 0.0
    %3397 = vmatprep.subr.mxu0 0.0
    %3398 = vmatpush1.msra.mxu0 0.0
    %3399 = vmatprep.subr.mxu0 0.0
    %3400 = vmatpush1.msra.mxu0 0.0
    %3401 = vmatprep.subr.mxu0 0.0
    %3402 = vmatpush1.msra.mxu0 0.0
    %3403 = vmatprep.subr.mxu0 0.0
    %3404 = vmatpush1.msra.mxu0 0.0
    %3405 = vmatprep.subr.mxu0 0.0
    %3406 = vmatpush1.msra.mxu0 0.0
    %3407 = vmatprep.subr.mxu0 0.0
    %v3408 = vand.u32 %v2729, 4294901760
    %3409 = vmatpush1.msra.mxu0 %v3408
    %3410 = vmatprep.subr.mxu0 0.0
    %v3411 = vand.u32 %v2728, 4294901760
    %3412 = vmatpush1.msra.mxu0 %v3411
    %3413 = vmatprep.subr.mxu0 0.0
    %v3414 = vand.u32 %v2727, 4294901760
    %3415 = vmatpush1.msra.mxu0 %v3414
    %3416 = vmatprep.subr.mxu0 0.0
    %v3417 = vand.u32 %v2726, 4294901760
    %3418 = vmatpush1.msra.mxu0 %v3417
    %3419 = vmatprep.subr.mxu0 0.0
    %3420 = vmatpush2.msra.mxu0 0.0
    %3421 = vmatprep.subr.mxu0 0.0
    %3422 = vmatpush2.msra.mxu0 0.0
    %3423 = vmatprep.subr.mxu0 0.0
    %3424 = vmatpush2.msra.mxu0 0.0
    %3425 = vmatprep.subr.mxu0 0.0
    %3426 = vmatpush2.msra.mxu0 0.0
    %3427 = vmatprep.subr.mxu0 0.0
    %3428 = vmatpush2.msra.mxu0 0.0
    %3429 = vmatprep.subr.mxu0 0.0
    %3430 = vmatpush2.msra.mxu0 0.0
    %3431 = vmatprep.subr.mxu0 0.0
    %3432 = vmatpush2.msra.mxu0 0.0
    %3433 = vmatprep.subr.mxu0 0.0
    %3434 = vmatpush2.msra.mxu0 0.0
    %3435 = vmatprep.subr.mxu0 0.0
    %3436 = vmatpush2.msra.mxu0 0.0
    %3437 = vmatprep.subr.mxu0 0.0
    %3438 = vmatpush2.msra.mxu0 0.0
    %3439 = vmatprep.subr.mxu0 0.0
    %3440 = vmatpush2.msra.mxu0 0.0
    %3441 = vmatprep.subr.mxu0 0.0
    %3442 = vmatpush2.msra.mxu0 0.0
    %3443 = vmatprep.subr.mxu0 0.0
    %3444 = vmatpush2.msra.mxu0 0.0
    %3445 = vmatprep.subr.mxu0 0.0
    %3446 = vmatpush2.msra.mxu0 0.0
    %3447 = vmatprep.subr.mxu0 0.0
    %3448 = vmatpush2.msra.mxu0 0.0
    %3449 = vmatprep.subr.mxu0 0.0
    %3450 = vmatpush2.msra.mxu0 0.0
    %3451 = vmatprep.mubr.f32.mxu0 0.0
    %v3452 = vand.u32 %v2731, 4294901760
    %3453 = vmatmul.mubr.f32.gmra.mxu0 %v3452
    %v3454 = vpop.f32.mrf.mxu0
    %v3455 = vadd.f32 %v3344, %v3454
    %v3456 = vpop.f32.mrf.mxu0
    %3457 = vmatprep.mubr.f32.mxu0 0.0
    %v3458 = vand.u32 %v2734, 4294901760
    %3459 = vmatmul.mubr.f32.gmra.mxu0 %v3458
    %v3460 = vpop.f32.mrf.mxu0
    %v3461 = vadd.f32 %v3350, %v3460
    %v3462 = vpop.f32.mrf.mxu0
    %3463 = vmatprep.mubr.f32.mxu0 0.0
    %v3464 = vand.u32 %v2737, 4294901760
    %3465 = vmatmul.mubr.f32.gmra.mxu0 %v3464
    %v3466 = vpop.f32.mrf.mxu0
    %v3467 = vadd.f32 %v3356, %v3466
    %v3468 = vpop.f32.mrf.mxu0
    %3469 = vmatprep.mubr.f32.mxu0 0.0
    %v3470 = vand.u32 %v2740, 4294901760
    %3471 = vmatmul.mubr.f32.gmra.mxu0 %v3470
    %v3472 = vpop.f32.mrf.mxu0
    %v3473 = vadd.f32 %v3362, %v3472
    %v3474 = vpop.f32.mrf.mxu0
    %3475 = vmatprep.mubr.f32.mxu0 0.0
    %v3476 = vand.u32 %v2743, 4294901760
    %3477 = vmatmul.mubr.f32.gmra.mxu0 %v3476
    %v3478 = vpop.f32.mrf.mxu0
    %v3479 = vadd.f32 %v3368, %v3478
    %v3480 = vpop.f32.mrf.mxu0
    %3481 = vmatprep.mubr.f32.mxu0 0.0
    %v3482 = vand.u32 %v2746, 4294901760
    %3483 = vmatmul.mubr.f32.gmra.mxu0 %v3482
    %v3484 = vpop.f32.mrf.mxu0
    %v3485 = vadd.f32 %v3374, %v3484
    %v3486 = vpop.f32.mrf.mxu0
    %3487 = vmatprep.mubr.f32.mxu0 0.0
    %v3488 = vand.u32 %v2749, 4294901760
    %3489 = vmatmul.mubr.f32.gmra.mxu0 %v3488
    %v3490 = vpop.f32.mrf.mxu0
    %v3491 = vadd.f32 %v3380, %v3490
    %v3492 = vpop.f32.mrf.mxu0
    %3493 = vdwg.mxu0
    %v3494 = vld [vmem:[%s13] sm:$0x1]
    %v3496 = vlaneseq
    %v3497 = vshrl.u32 %v3496, 7
    %v3498 = vsub.s32 0, %v3497
    %v3499 = vrot.slane %v3494, %v3498
    %v3501 = vadd.f32 %v3455, %v3499
    %v3502 = vadd.f32 %v3461, %v3499
    %v3503 = vadd.f32 %v3467, %v3499
    %v3504 = vadd.f32 %v3473, %v3499
    %v3505 = vadd.f32 %v3479, %v3499
    %v3506 = vadd.f32 %v3485, %v3499
    %v3507 = vadd.f32 %v3491, %v3499
    %3509 = vrot.lane.b32.xlu0 %v3502, 96
    %v3510 = vpop.permute.xlu0 %3509
    %3517 = vrot.lane.b32.xlu0 %v3503, 64
    %v3518 = vpop.permute.xlu0 %3517
    %3519 = vrot.lane.b32.xlu0 %v3504, 64
    %v3520 = vpop.permute.xlu0 %3519
    %3521 = vrot.lane.b32.xlu0 %v3505, 64
    %v3522 = vpop.permute.xlu0 %3521
    %3523 = vrot.lane.b32.xlu0 %v3506, 64
    %v3524 = vpop.permute.xlu0 %3523
    %3525 = vrot.lane.b32.xlu0 %v3507, 64
    %v3526 = vpop.permute.xlu0 %3525
    %v3532 = vmul.f32 %v3501, %v3501
    %v3533 = vmul.f32 %v3510, %v3510
    %v3534 = vmul.f32 %v3518, %v3518
    %v3535 = vmul.f32 %v3520, %v3520
    %v3536 = vmul.f32 %v3522, %v3522
    %v3537 = vmul.f32 %v3524, %v3524
    %v3538 = vmul.f32 %v3526, %v3526
    %v3539 = vsel %vm155, %v3532, 0.0
    %3540 = vadd.xlane.f32.xlu0 %v3539
    %v3541 = vpop.xlane.xlu0 %3540
    %v3542 = vsel %vm155, %v3533, 0.0
    %3543 = vadd.xlane.f32.xlu0 %v3542
    %v3544 = vpop.xlane.xlu0 %3543
    %v3545 = vsel %vm155, %v3534, 0.0
    %3546 = vadd.xlane.f32.xlu0 %v3545
    %v3547 = vpop.xlane.xlu0 %3546
    %v3548 = vsel %vm155, %v3535, 0.0
    %3549 = vadd.xlane.f32.xlu0 %v3548
    %v3550 = vpop.xlane.xlu0 %3549
    %v3551 = vsel %vm155, %v3536, 0.0
    %3552 = vadd.xlane.f32.xlu0 %v3551
    %v3553 = vpop.xlane.xlu0 %3552
    %v3554 = vsel %vm155, %v3537, 0.0
    %3555 = vadd.xlane.f32.xlu0 %v3554
    %v3556 = vpop.xlane.xlu0 %3555
    %v3557 = vsel %vm155, %v3538, 0.0
    %3558 = vadd.xlane.f32.xlu0 %v3557
    %v3559 = vpop.xlane.xlu0 %3558
    %v3560 = vrsqrt.pop %v3541
    %v3561 = vmul.f32 %v3541, %v3560
    %vm3562 = vcmp.eq.f32.partialorder %v3541, inf
    %v3563 = vsel %vm3562, %v3541, %v3561
    %vm3564 = vcmp.eq.f32.partialorder %v3541, 0.0
    %v3565 = vand.u32 %v3541, 2147483648
    %v3566 = vsel %vm3564, %v3565, %v3563
    %v3567 = vrsqrt.pop %v3544
    %v3568 = vmul.f32 %v3544, %v3567
    %vm3569 = vcmp.eq.f32.partialorder %v3544, inf
    %v3570 = vsel %vm3569, %v3544, %v3568
    %vm3571 = vcmp.eq.f32.partialorder %v3544, 0.0
    %v3572 = vand.u32 %v3544, 2147483648
    %v3573 = vsel %vm3571, %v3572, %v3570
    %v3574 = vrsqrt.pop %v3547
    %v3575 = vmul.f32 %v3547, %v3574
    %vm3576 = vcmp.eq.f32.partialorder %v3547, inf
    %v3577 = vsel %vm3576, %v3547, %v3575
    %vm3578 = vcmp.eq.f32.partialorder %v3547, 0.0
    %v3579 = vand.u32 %v3547, 2147483648
    %v3580 = vsel %vm3578, %v3579, %v3577
    %v3581 = vrsqrt.pop %v3550
    %v3582 = vmul.f32 %v3550, %v3581
    %vm3583 = vcmp.eq.f32.partialorder %v3550, inf
    %v3584 = vsel %vm3583, %v3550, %v3582
    %vm3585 = vcmp.eq.f32.partialorder %v3550, 0.0
    %v3586 = vand.u32 %v3550, 2147483648
    %v3587 = vsel %vm3585, %v3586, %v3584
    %v3588 = vrsqrt.pop %v3553
    %v3589 = vmul.f32 %v3553, %v3588
    %vm3590 = vcmp.eq.f32.partialorder %v3553, inf
    %v3591 = vsel %vm3590, %v3553, %v3589
    %vm3592 = vcmp.eq.f32.partialorder %v3553, 0.0
    %v3593 = vand.u32 %v3553, 2147483648
    %v3594 = vsel %vm3592, %v3593, %v3591
    %v3595 = vrsqrt.pop %v3556
    %v3596 = vmul.f32 %v3556, %v3595
    %vm3597 = vcmp.eq.f32.partialorder %v3556, inf
    %v3598 = vsel %vm3597, %v3556, %v3596
    %vm3599 = vcmp.eq.f32.partialorder %v3556, 0.0
    %v3600 = vand.u32 %v3556, 2147483648
    %v3601 = vsel %vm3599, %v3600, %v3598
    %v3602 = vrsqrt.pop %v3559
    %v3603 = vmul.f32 %v3559, %v3602
    %vm3604 = vcmp.eq.f32.partialorder %v3559, inf
    %v3605 = vsel %vm3604, %v3559, %v3603
    %vm3606 = vcmp.eq.f32.partialorder %v3559, 0.0
    %v3607 = vand.u32 %v3559, 2147483648
    %v3608 = vsel %vm3606, %v3607, %v3605
    %v3609 = vmax.f32 %v3566, 1e-12
    %v3610 = vmax.f32 %v3573, 1e-12
    %v3611 = vmax.f32 %v3580, 1e-12
    %v3612 = vmax.f32 %v3587, 1e-12
    %v3613 = vmax.f32 %v3594, 1e-12
    %v3614 = vmax.f32 %v3601, 1e-12
    %v3615 = vmax.f32 %v3608, 1e-12
    %v3616 = vrcp.pop %v3609
    %v3617 = vmul.f32 %v3501, %v3616
    %v3618 = vrcp.pop %v3610
    %v3619 = vmul.f32 %v3510, %v3618
    %v3620 = vrcp.pop %v3611
    %v3621 = vmul.f32 %v3518, %v3620
    %v3622 = vrcp.pop %v3612
    %v3623 = vmul.f32 %v3520, %v3622
    %v3624 = vrcp.pop %v3613
    %v3625 = vmul.f32 %v3522, %v3624
    %v3626 = vrcp.pop %v3614
    %v3627 = vmul.f32 %v3524, %v3626
    %v3628 = vrcp.pop %v3615
    %v3629 = vmul.f32 %v3526, %v3628
    %v3630 = vmul.f32 %v3617, %v1396
    %v3631 = vsel %vm155, %v3630, 0.0
    %3632 = vadd.xlane.f32.xlu0 %v3631
    %v3633 = vpop.xlane.xlu0 %3632
    %v3634 = vmul.f32 %v3619, %v1398
    %v3635 = vsel %vm155, %v3634, 0.0
    %3636 = vadd.xlane.f32.xlu0 %v3635
    %v3637 = vpop.xlane.xlu0 %3636
    %v3638 = vld [vmem:[#allocation10] sm:$0xff]
    %v3639 = vmul.f32 %v3621, %v1400
    %v3640 = vsel %vm155, %v3639, 0.0
    %3641 = vadd.xlane.f32.xlu0 %v3640
    %v3642 = vpop.xlane.xlu0 %3641
    %v3643 = vmul.f32 %v3638, %v3642
    %v3644 = vmul.f32 %v3623, %v1400
    %v3645 = vsel %vm155, %v3644, 0.0
    %3646 = vadd.xlane.f32.xlu0 %v3645
    %v3647 = vpop.xlane.xlu0 %3646
    %v3648 = vmul.f32 %v3638, %v3647
    %3650 = vrot.lane.b32.xlu0 %v3643, 1
    %v3651 = vpop.permute.xlu0 %3650
    %vm3653 = vcmp.gt.f32.partialorder %v3648, %v3651
    %v3654 = vsel %vm3653, %v3648, %v3651
    %v3655 = vsel %vm3653, 1.0, 0.0
    %v3656 = vmul.f32 %v3625, %v1400
    %v3657 = vsel %vm155, %v3656, 0.0
    %3658 = vadd.xlane.f32.xlu0 %v3657
    %v3659 = vpop.xlane.xlu0 %3658
    %v3660 = vmul.f32 %v3638, %v3659
    %3662 = vrot.lane.b32.xlu0 %v3654, 1
    %v3663 = vpop.permute.xlu0 %3662
    %vm3665 = vcmp.gt.f32.partialorder %v3660, %v3663
    %v3666 = vsel %vm3665, %v3660, %v3663
    %3668 = vrot.lane.b32.xlu0 %v3655, 1
    %v3669 = vpop.permute.xlu0 %3668
    %v3671 = vsel %vm3665, 2.0, %v3669
    %v3672 = vmul.f32 %v3627, %v1400
    %v3673 = vsel %vm155, %v3672, 0.0
    %3674 = vadd.xlane.f32.xlu0 %v3673
    %v3675 = vpop.xlane.xlu0 %3674
    %v3676 = vmul.f32 %v3638, %v3675
    %3678 = vrot.lane.b32.xlu0 %v3666, 1
    %v3679 = vpop.permute.xlu0 %3678
    %vm3681 = vcmp.gt.f32.partialorder %v3676, %v3679
    %v3682 = vsel %vm3681, %v3676, %v3679
    %3684 = vrot.lane.b32.xlu0 %v3671, 1
    %v3685 = vpop.permute.xlu0 %3684
    %v3687 = vsel %vm3681, 3.0, %v3685
    %v3688 = vmul.f32 %v3629, %v1400
    %v3689 = vsel %vm155, %v3688, 0.0
    %3690 = vadd.xlane.f32.xlu0 %v3689
    %v3691 = vpop.xlane.xlu0 %3690
    %v3692 = vmul.f32 %v3638, %v3691
    %3694 = vrot.lane.b32.xlu0 %v3682, 1
    %v3695 = vpop.permute.xlu0 %3694
    %vm3697 = vcmp.gt.f32.partialorder %v3692, %v3695
    %v3698 = vsel %vm3697, %v3692, %v3695
    %3700 = vrot.lane.b32.xlu0 %v3687, 1
    %v3701 = vpop.permute.xlu0 %3700
    %v3703 = vsel %vm3697, 4.0, %v3701
    %v3704 = vld [vmem:[#allocation2] sm:$0xff]
    %v3705 = vld [vmem:[%s18] sm:$0xff]
    %v3706 = vld [vmem:[%s18 + $0x8] sm:$0xff]
    %v3707 = vld [vmem:[%s18 + $0x10] sm:$0xff]
    %v3708 = vld [vmem:[%s18 + $0x18] sm:$0xff]
    %v3709 = vld [vmem:[%s19] sm:$0x1]
    %v3711 = vlaneseq
    %v3712 = vshrl.u32 %v3711, 7
    %v3713 = vsub.s32 0, %v3712
    %v3714 = vrot.slane %v3709, %v3713
    %v3717 = vsel %vm155, %v3704, 0
    %3719 = vmatprep.subr.mxu0 0.0
    %3720 = vmatpush1.msra.mxu0 0.0
    %3721 = vmatprep.subr.mxu0 0.0
    %3722 = vmatpush1.msra.mxu0 0.0
    %3723 = vmatprep.subr.mxu0 0.0
    %3724 = vmatpush1.msra.mxu0 0.0
    %3725 = vmatprep.subr.mxu0 0.0
    %3726 = vmatpush1.msra.mxu0 0.0
    %3727 = vmatprep.subr.mxu0 0.0
    %3728 = vmatpush1.msra.mxu0 0.0
    %3729 = vmatprep.subr.mxu0 0.0
    %3730 = vmatpush1.msra.mxu0 0.0
    %3731 = vmatprep.subr.mxu0 0.0
    %3732 = vmatpush1.msra.mxu0 0.0
    %3733 = vmatprep.subr.mxu0 0.0
    %3734 = vmatpush1.msra.mxu0 0.0
    %3735 = vmatprep.subr.mxu0 0.0
    %3736 = vmatpush1.msra.mxu0 0.0
    %3737 = vmatprep.subr.mxu0 0.0
    %3738 = vmatpush1.msra.mxu0 0.0
    %3739 = vmatprep.subr.mxu0 0.0
    %3740 = vmatpush1.msra.mxu0 0.0
    %3741 = vmatprep.subr.mxu0 0.0
    %3742 = vmatpush1.msra.mxu0 0.0
    %3743 = vmatprep.subr.mxu0 0.0
    %v3744 = vand.u32 %v3708, 4294901760
    %3745 = vmatpush1.msra.mxu0 %v3744
    %3746 = vmatprep.subr.mxu0 0.0
    %v3747 = vand.u32 %v3707, 4294901760
    %3748 = vmatpush1.msra.mxu0 %v3747
    %3749 = vmatprep.subr.mxu0 0.0
    %v3750 = vand.u32 %v3706, 4294901760
    %3751 = vmatpush1.msra.mxu0 %v3750
    %3752 = vmatprep.subr.mxu0 0.0
    %v3753 = vand.u32 %v3705, 4294901760
    %3754 = vmatpush1.msra.mxu0 %v3753
    %3755 = vmatprep.subr.mxu0 0.0
    %3756 = vmatpush2.msra.mxu0 0.0
    %3757 = vmatprep.subr.mxu0 0.0
    %3758 = vmatpush2.msra.mxu0 0.0
    %3759 = vmatprep.subr.mxu0 0.0
    %3760 = vmatpush2.msra.mxu0 0.0
    %3761 = vmatprep.subr.mxu0 0.0
    %3762 = vmatpush2.msra.mxu0 0.0
    %3763 = vmatprep.subr.mxu0 0.0
    %3764 = vmatpush2.msra.mxu0 0.0
    %3765 = vmatprep.subr.mxu0 0.0
    %3766 = vmatpush2.msra.mxu0 0.0
    %3767 = vmatprep.subr.mxu0 0.0
    %3768 = vmatpush2.msra.mxu0 0.0
    %3769 = vmatprep.subr.mxu0 0.0
    %3770 = vmatpush2.msra.mxu0 0.0
    %3771 = vmatprep.subr.mxu0 0.0
    %3772 = vmatpush2.msra.mxu0 0.0
    %3773 = vmatprep.subr.mxu0 0.0
    %3774 = vmatpush2.msra.mxu0 0.0
    %3775 = vmatprep.subr.mxu0 0.0
    %3776 = vmatpush2.msra.mxu0 0.0
    %3777 = vmatprep.subr.mxu0 0.0
    %3778 = vmatpush2.msra.mxu0 0.0
    %3779 = vmatprep.subr.mxu0 0.0
    %3780 = vmatpush2.msra.mxu0 0.0
    %3781 = vmatprep.subr.mxu0 0.0
    %3782 = vmatpush2.msra.mxu0 0.0
    %3783 = vmatprep.subr.mxu0 0.0
    %3784 = vmatpush2.msra.mxu0 0.0
    %3785 = vmatprep.subr.mxu0 0.0
    %3786 = vmatpush2.msra.mxu0 0.0
    %3787 = vmatprep.mubr.f32.mxu0 0.0
    %v3788 = vand.u32 %v3717, 4294901760
    %v3789 = vsub.f32 %v3717, %v3788
    %v3790 = vand.u32 %v3789, 4294901760
    %v3791 = vsub.f32 %v3789, %v3790
    %v3792 = vand.u32 %v3791, 4294901760
    %3793 = vmatmul.mubr.f32.gmra.mxu0 %v3792
    %v3794 = vpop.f32.mrf.mxu0
    %v3795 = vadd.f32 %v3714, %v3794
    %v3796 = vpop.f32.mrf.mxu0
    %3797 = vdwg.mxu0
    %3798 = vmatprep.subr.mxu0 0.0
    %3799 = vmatpush1.msra.mxu0 0.0
    %3800 = vmatprep.subr.mxu0 0.0
    %3801 = vmatpush1.msra.mxu0 0.0
    %3802 = vmatprep.subr.mxu0 0.0
    %3803 = vmatpush1.msra.mxu0 0.0
    %3804 = vmatprep.subr.mxu0 0.0
    %3805 = vmatpush1.msra.mxu0 0.0
    %3806 = vmatprep.subr.mxu0 0.0
    %3807 = vmatpush1.msra.mxu0 0.0
    %3808 = vmatprep.subr.mxu0 0.0
    %3809 = vmatpush1.msra.mxu0 0.0
    %3810 = vmatprep.subr.mxu0 0.0
    %3811 = vmatpush1.msra.mxu0 0.0
    %3812 = vmatprep.subr.mxu0 0.0
    %3813 = vmatpush1.msra.mxu0 0.0
    %3814 = vmatprep.subr.mxu0 0.0
    %3815 = vmatpush1.msra.mxu0 0.0
    %3816 = vmatprep.subr.mxu0 0.0
    %3817 = vmatpush1.msra.mxu0 0.0
    %3818 = vmatprep.subr.mxu0 0.0
    %3819 = vmatpush1.msra.mxu0 0.0
    %3820 = vmatprep.subr.mxu0 0.0
    %3821 = vmatpush1.msra.mxu0 0.0
    %3822 = vmatprep.subr.mxu0 0.0
    %v3823 = vand.u32 %v3708, 4294901760
    %v3824 = vsub.f32 %v3708, %v3823
    %v3825 = vand.u32 %v3824, 4294901760
    %v3826 = vsub.f32 %v3824, %v3825
    %v3827 = vand.u32 %v3826, 4294901760
    %3828 = vmatpush1.msra.mxu0 %v3827
    %3829 = vmatprep.subr.mxu0 0.0
    %v3830 = vand.u32 %v3707, 4294901760
    %v3831 = vsub.f32 %v3707, %v3830
    %v3832 = vand.u32 %v3831, 4294901760
    %v3833 = vsub.f32 %v3831, %v3832
    %v3834 = vand.u32 %v3833, 4294901760
    %3835 = vmatpush1.msra.mxu0 %v3834
    %3836 = vmatprep.subr.mxu0 0.0
    %v3837 = vand.u32 %v3706, 4294901760
    %v3838 = vsub.f32 %v3706, %v3837
    %v3839 = vand.u32 %v3838, 4294901760
    %v3840 = vsub.f32 %v3838, %v3839
    %v3841 = vand.u32 %v3840, 4294901760
    %3842 = vmatpush1.msra.mxu0 %v3841
    %3843 = vmatprep.subr.mxu0 0.0
    %v3844 = vand.u32 %v3705, 4294901760
    %v3845 = vsub.f32 %v3705, %v3844
    %v3846 = vand.u32 %v3845, 4294901760
    %v3847 = vsub.f32 %v3845, %v3846
    %v3848 = vand.u32 %v3847, 4294901760
    %3849 = vmatpush1.msra.mxu0 %v3848
    %3850 = vmatprep.subr.mxu0 0.0
    %3851 = vmatpush2.msra.mxu0 0.0
    %3852 = vmatprep.subr.mxu0 0.0
    %3853 = vmatpush2.msra.mxu0 0.0
    %3854 = vmatprep.subr.mxu0 0.0
    %3855 = vmatpush2.msra.mxu0 0.0
    %3856 = vmatprep.subr.mxu0 0.0
    %3857 = vmatpush2.msra.mxu0 0.0
    %3858 = vmatprep.subr.mxu0 0.0
    %3859 = vmatpush2.msra.mxu0 0.0
    %3860 = vmatprep.subr.mxu0 0.0
    %3861 = vmatpush2.msra.mxu0 0.0
    %3862 = vmatprep.subr.mxu0 0.0
    %3863 = vmatpush2.msra.mxu0 0.0
    %3864 = vmatprep.subr.mxu0 0.0
    %3865 = vmatpush2.msra.mxu0 0.0
    %3866 = vmatprep.subr.mxu0 0.0
    %3867 = vmatpush2.msra.mxu0 0.0
    %3868 = vmatprep.subr.mxu0 0.0
    %3869 = vmatpush2.msra.mxu0 0.0
    %3870 = vmatprep.subr.mxu0 0.0
    %3871 = vmatpush2.msra.mxu0 0.0
    %3872 = vmatprep.subr.mxu0 0.0
    %3873 = vmatpush2.msra.mxu0 0.0
    %3874 = vmatprep.subr.mxu0 0.0
    %3875 = vmatpush2.msra.mxu0 0.0
    %3876 = vmatprep.subr.mxu0 0.0
    %3877 = vmatpush2.msra.mxu0 0.0
    %3878 = vmatprep.subr.mxu0 0.0
    %3879 = vmatpush2.msra.mxu0 0.0
    %3880 = vmatprep.subr.mxu0 0.0
    %3881 = vmatpush2.msra.mxu0 0.0
    %3882 = vmatprep.mubr.f32.mxu0 0.0
    %v3883 = vand.u32 %v3717, 4294901760
    %3884 = vmatmul.mubr.f32.gmra.mxu0 %v3883
    %v3885 = vpop.f32.mrf.mxu0
    %v3886 = vadd.f32 %v3795, %v3885
    %v3887 = vpop.f32.mrf.mxu0
    %3888 = vdwg.mxu0
    %3889 = vmatprep.subr.mxu0 0.0
    %3890 = vmatpush1.msra.mxu0 0.0
    %3891 = vmatprep.subr.mxu0 0.0
    %3892 = vmatpush1.msra.mxu0 0.0
    %3893 = vmatprep.subr.mxu0 0.0
    %3894 = vmatpush1.msra.mxu0 0.0
    %3895 = vmatprep.subr.mxu0 0.0
    %3896 = vmatpush1.msra.mxu0 0.0
    %3897 = vmatprep.subr.mxu0 0.0
    %3898 = vmatpush1.msra.mxu0 0.0
    %3899 = vmatprep.subr.mxu0 0.0
    %3900 = vmatpush1.msra.mxu0 0.0
    %3901 = vmatprep.subr.mxu0 0.0
    %3902 = vmatpush1.msra.mxu0 0.0
    %3903 = vmatprep.subr.mxu0 0.0
    %3904 = vmatpush1.msra.mxu0 0.0
    %3905 = vmatprep.subr.mxu0 0.0
    %3906 = vmatpush1.msra.mxu0 0.0
    %3907 = vmatprep.subr.mxu0 0.0
    %3908 = vmatpush1.msra.mxu0 0.0
    %3909 = vmatprep.subr.mxu0 0.0
    %3910 = vmatpush1.msra.mxu0 0.0
    %3911 = vmatprep.subr.mxu0 0.0
    %3912 = vmatpush1.msra.mxu0 0.0
    %3913 = vmatprep.subr.mxu0 0.0
    %v3914 = vand.u32 %v3708, 4294901760
    %v3915 = vsub.f32 %v3708, %v3914
    %3916 = vmatpush1.msra.mxu0 %v3915
    %3917 = vmatprep.subr.mxu0 0.0
    %v3918 = vand.u32 %v3707, 4294901760
    %v3919 = vsub.f32 %v3707, %v3918
    %3920 = vmatpush1.msra.mxu0 %v3919
    %3921 = vmatprep.subr.mxu0 0.0
    %v3922 = vand.u32 %v3706, 4294901760
    %v3923 = vsub.f32 %v3706, %v3922
    %3924 = vmatpush1.msra.mxu0 %v3923
    %3925 = vmatprep.subr.mxu0 0.0
    %v3926 = vand.u32 %v3705, 4294901760
    %v3927 = vsub.f32 %v3705, %v3926
    %3928 = vmatpush1.msra.mxu0 %v3927
    %3929 = vmatprep.subr.mxu0 0.0
    %3930 = vmatpush2.msra.mxu0 0.0
    %3931 = vmatprep.subr.mxu0 0.0
    %3932 = vmatpush2.msra.mxu0 0.0
    %3933 = vmatprep.subr.mxu0 0.0
    %3934 = vmatpush2.msra.mxu0 0.0
    %3935 = vmatprep.subr.mxu0 0.0
    %3936 = vmatpush2.msra.mxu0 0.0
    %3937 = vmatprep.subr.mxu0 0.0
    %3938 = vmatpush2.msra.mxu0 0.0
    %3939 = vmatprep.subr.mxu0 0.0
    %3940 = vmatpush2.msra.mxu0 0.0
    %3941 = vmatprep.subr.mxu0 0.0
    %3942 = vmatpush2.msra.mxu0 0.0
    %3943 = vmatprep.subr.mxu0 0.0
    %3944 = vmatpush2.msra.mxu0 0.0
    %3945 = vmatprep.subr.mxu0 0.0
    %3946 = vmatpush2.msra.mxu0 0.0
    %3947 = vmatprep.subr.mxu0 0.0
    %3948 = vmatpush2.msra.mxu0 0.0
    %3949 = vmatprep.subr.mxu0 0.0
    %3950 = vmatpush2.msra.mxu0 0.0
    %3951 = vmatprep.subr.mxu0 0.0
    %3952 = vmatpush2.msra.mxu0 0.0
    %3953 = vmatprep.subr.mxu0 0.0
    %3954 = vmatpush2.msra.mxu0 0.0
    %3955 = vmatprep.subr.mxu0 0.0
    %3956 = vmatpush2.msra.mxu0 0.0
    %3957 = vmatprep.subr.mxu0 0.0
    %3958 = vmatpush2.msra.mxu0 0.0
    %3959 = vmatprep.subr.mxu0 0.0
    %3960 = vmatpush2.msra.mxu0 0.0
    %3961 = vmatprep.mubr.f32.mxu0 0.0
    %v3962 = vand.u32 %v3717, 4294901760
    %v3963 = vsub.f32 %v3717, %v3962
    %3964 = vmatmul.mubr.f32.gmra.mxu0 %v3963
    %v3965 = vpop.f32.mrf.mxu0
    %v3966 = vadd.f32 %v3886, %v3965
    %v3967 = vpop.f32.mrf.mxu0
    %3968 = vdwg.mxu0
    %3969 = vmatprep.subr.mxu0 0.0
    %3970 = vmatpush1.msra.mxu0 0.0
    %3971 = vmatprep.subr.mxu0 0.0
    %3972 = vmatpush1.msra.mxu0 0.0
    %3973 = vmatprep.subr.mxu0 0.0
    %3974 = vmatpush1.msra.mxu0 0.0
    %3975 = vmatprep.subr.mxu0 0.0
    %3976 = vmatpush1.msra.mxu0 0.0
    %3977 = vmatprep.subr.mxu0 0.0
    %3978 = vmatpush1.msra.mxu0 0.0
    %3979 = vmatprep.subr.mxu0 0.0
    %3980 = vmatpush1.msra.mxu0 0.0
    %3981 = vmatprep.subr.mxu0 0.0
    %3982 = vmatpush1.msra.mxu0 0.0
    %3983 = vmatprep.subr.mxu0 0.0
    %3984 = vmatpush1.msra.mxu0 0.0
    %3985 = vmatprep.subr.mxu0 0.0
    %3986 = vmatpush1.msra.mxu0 0.0
    %3987 = vmatprep.subr.mxu0 0.0
    %3988 = vmatpush1.msra.mxu0 0.0
    %3989 = vmatprep.subr.mxu0 0.0
    %3990 = vmatpush1.msra.mxu0 0.0
    %3991 = vmatprep.subr.mxu0 0.0
    %3992 = vmatpush1.msra.mxu0 0.0
    %3993 = vmatprep.subr.mxu0 0.0
    %v3994 = vand.u32 %v3708, 4294901760
    %3995 = vmatpush1.msra.mxu0 %v3994
    %3996 = vmatprep.subr.mxu0 0.0
    %v3997 = vand.u32 %v3707, 4294901760
    %3998 = vmatpush1.msra.mxu0 %v3997
    %3999 = vmatprep.subr.mxu0 0.0
    %v4000 = vand.u32 %v3706, 4294901760
    %4001 = vmatpush1.msra.mxu0 %v4000
    %4002 = vmatprep.subr.mxu0 0.0
    %v4003 = vand.u32 %v3705, 4294901760
    %4004 = vmatpush1.msra.mxu0 %v4003
    %4005 = vmatprep.subr.mxu0 0.0
    %4006 = vmatpush2.msra.mxu0 0.0
    %4007 = vmatprep.subr.mxu0 0.0
    %4008 = vmatpush2.msra.mxu0 0.0
    %4009 = vmatprep.subr.mxu0 0.0
    %4010 = vmatpush2.msra.mxu0 0.0
    %4011 = vmatprep.subr.mxu0 0.0
    %4012 = vmatpush2.msra.mxu0 0.0
    %4013 = vmatprep.subr.mxu0 0.0
    %4014 = vmatpush2.msra.mxu0 0.0
    %4015 = vmatprep.subr.mxu0 0.0
    %4016 = vmatpush2.msra.mxu0 0.0
    %4017 = vmatprep.subr.mxu0 0.0
    %4018 = vmatpush2.msra.mxu0 0.0
    %4019 = vmatprep.subr.mxu0 0.0
    %4020 = vmatpush2.msra.mxu0 0.0
    %4021 = vmatprep.subr.mxu0 0.0
    %4022 = vmatpush2.msra.mxu0 0.0
    %4023 = vmatprep.subr.mxu0 0.0
    %4024 = vmatpush2.msra.mxu0 0.0
    %4025 = vmatprep.subr.mxu0 0.0
    %4026 = vmatpush2.msra.mxu0 0.0
    %4027 = vmatprep.subr.mxu0 0.0
    %4028 = vmatpush2.msra.mxu0 0.0
    %4029 = vmatprep.subr.mxu0 0.0
    %4030 = vmatpush2.msra.mxu0 0.0
    %4031 = vmatprep.subr.mxu0 0.0
    %4032 = vmatpush2.msra.mxu0 0.0
    %4033 = vmatprep.subr.mxu0 0.0
    %4034 = vmatpush2.msra.mxu0 0.0
    %4035 = vmatprep.subr.mxu0 0.0
    %4036 = vmatpush2.msra.mxu0 0.0
    %4037 = vmatprep.mubr.f32.mxu0 0.0
    %v4038 = vand.u32 %v3717, 4294901760
    %v4039 = vsub.f32 %v3717, %v4038
    %v4040 = vand.u32 %v4039, 4294901760
    %4041 = vmatmul.mubr.f32.gmra.mxu0 %v4040
    %v4042 = vpop.f32.mrf.mxu0
    %v4043 = vadd.f32 %v3966, %v4042
    %v4044 = vpop.f32.mrf.mxu0
    %4045 = vdwg.mxu0
    %4046 = vmatprep.subr.mxu0 0.0
    %4047 = vmatpush1.msra.mxu0 0.0
    %4048 = vmatprep.subr.mxu0 0.0
    %4049 = vmatpush1.msra.mxu0 0.0
    %4050 = vmatprep.subr.mxu0 0.0
    %4051 = vmatpush1.msra.mxu0 0.0
    %4052 = vmatprep.subr.mxu0 0.0
    %4053 = vmatpush1.msra.mxu0 0.0
    %4054 = vmatprep.subr.mxu0 0.0
    %4055 = vmatpush1.msra.mxu0 0.0
    %4056 = vmatprep.subr.mxu0 0.0
    %4057 = vmatpush1.msra.mxu0 0.0
    %4058 = vmatprep.subr.mxu0 0.0
    %4059 = vmatpush1.msra.mxu0 0.0
    %4060 = vmatprep.subr.mxu0 0.0
    %4061 = vmatpush1.msra.mxu0 0.0
    %4062 = vmatprep.subr.mxu0 0.0
    %4063 = vmatpush1.msra.mxu0 0.0
    %4064 = vmatprep.subr.mxu0 0.0
    %4065 = vmatpush1.msra.mxu0 0.0
    %4066 = vmatprep.subr.mxu0 0.0
    %4067 = vmatpush1.msra.mxu0 0.0
    %4068 = vmatprep.subr.mxu0 0.0
    %4069 = vmatpush1.msra.mxu0 0.0
    %4070 = vmatprep.subr.mxu0 0.0
    %v4071 = vand.u32 %v3708, 4294901760
    %v4072 = vsub.f32 %v3708, %v4071
    %v4073 = vand.u32 %v4072, 4294901760
    %4074 = vmatpush1.msra.mxu0 %v4073
    %4075 = vmatprep.subr.mxu0 0.0
    %v4076 = vand.u32 %v3707, 4294901760
    %v4077 = vsub.f32 %v3707, %v4076
    %v4078 = vand.u32 %v4077, 4294901760
    %4079 = vmatpush1.msra.mxu0 %v4078
    %4080 = vmatprep.subr.mxu0 0.0
    %v4081 = vand.u32 %v3706, 4294901760
    %v4082 = vsub.f32 %v3706, %v4081
    %v4083 = vand.u32 %v4082, 4294901760
    %4084 = vmatpush1.msra.mxu0 %v4083
    %4085 = vmatprep.subr.mxu0 0.0
    %v4086 = vand.u32 %v3705, 4294901760
    %v4087 = vsub.f32 %v3705, %v4086
    %v4088 = vand.u32 %v4087, 4294901760
    %4089 = vmatpush1.msra.mxu0 %v4088
    %4090 = vmatprep.subr.mxu0 0.0
    %4091 = vmatpush2.msra.mxu0 0.0
    %4092 = vmatprep.subr.mxu0 0.0
    %4093 = vmatpush2.msra.mxu0 0.0
    %4094 = vmatprep.subr.mxu0 0.0
    %4095 = vmatpush2.msra.mxu0 0.0
    %4096 = vmatprep.subr.mxu0 0.0
    %4097 = vmatpush2.msra.mxu0 0.0
    %4098 = vmatprep.subr.mxu0 0.0
    %4099 = vmatpush2.msra.mxu0 0.0
    %4100 = vmatprep.subr.mxu0 0.0
    %4101 = vmatpush2.msra.mxu0 0.0
    %4102 = vmatprep.subr.mxu0 0.0
    %4103 = vmatpush2.msra.mxu0 0.0
    %4104 = vmatprep.subr.mxu0 0.0
    %4105 = vmatpush2.msra.mxu0 0.0
    %4106 = vmatprep.subr.mxu0 0.0
    %4107 = vmatpush2.msra.mxu0 0.0
    %4108 = vmatprep.subr.mxu0 0.0
    %4109 = vmatpush2.msra.mxu0 0.0
    %4110 = vmatprep.subr.mxu0 0.0
    %4111 = vmatpush2.msra.mxu0 0.0
    %4112 = vmatprep.subr.mxu0 0.0
    %4113 = vmatpush2.msra.mxu0 0.0
    %4114 = vmatprep.subr.mxu0 0.0
    %4115 = vmatpush2.msra.mxu0 0.0
    %4116 = vmatprep.subr.mxu0 0.0
    %4117 = vmatpush2.msra.mxu0 0.0
    %4118 = vmatprep.subr.mxu0 0.0
    %4119 = vmatpush2.msra.mxu0 0.0
    %4120 = vmatprep.subr.mxu0 0.0
    %4121 = vmatpush2.msra.mxu0 0.0
    %4122 = vmatprep.mubr.f32.mxu0 0.0
    %v4123 = vand.u32 %v3717, 4294901760
    %4124 = vmatmul.mubr.f32.gmra.mxu0 %v4123
    %v4125 = vpop.f32.mrf.mxu0
    %v4126 = vadd.f32 %v4043, %v4125
    %v4127 = vpop.f32.mrf.mxu0
    %4128 = vdwg.mxu0
    %4129 = vmatprep.subr.mxu0 0.0
    %4130 = vmatpush1.msra.mxu0 0.0
    %4131 = vmatprep.subr.mxu0 0.0
    %4132 = vmatpush1.msra.mxu0 0.0
    %4133 = vmatprep.subr.mxu0 0.0
    %4134 = vmatpush1.msra.mxu0 0.0
    %4135 = vmatprep.subr.mxu0 0.0
    %4136 = vmatpush1.msra.mxu0 0.0
    %4137 = vmatprep.subr.mxu0 0.0
    %4138 = vmatpush1.msra.mxu0 0.0
    %4139 = vmatprep.subr.mxu0 0.0
    %4140 = vmatpush1.msra.mxu0 0.0
    %4141 = vmatprep.subr.mxu0 0.0
    %4142 = vmatpush1.msra.mxu0 0.0
    %4143 = vmatprep.subr.mxu0 0.0
    %4144 = vmatpush1.msra.mxu0 0.0
    %4145 = vmatprep.subr.mxu0 0.0
    %4146 = vmatpush1.msra.mxu0 0.0
    %4147 = vmatprep.subr.mxu0 0.0
    %4148 = vmatpush1.msra.mxu0 0.0
    %4149 = vmatprep.subr.mxu0 0.0
    %4150 = vmatpush1.msra.mxu0 0.0
    %4151 = vmatprep.subr.mxu0 0.0
    %4152 = vmatpush1.msra.mxu0 0.0
    %4153 = vmatprep.subr.mxu0 0.0
    %v4154 = vand.u32 %v3708, 4294901760
    %4155 = vmatpush1.msra.mxu0 %v4154
    %4156 = vmatprep.subr.mxu0 0.0
    %v4157 = vand.u32 %v3707, 4294901760
    %4158 = vmatpush1.msra.mxu0 %v4157
    %4159 = vmatprep.subr.mxu0 0.0
    %v4160 = vand.u32 %v3706, 4294901760
    %4161 = vmatpush1.msra.mxu0 %v4160
    %4162 = vmatprep.subr.mxu0 0.0
    %v4163 = vand.u32 %v3705, 4294901760
    %4164 = vmatpush1.msra.mxu0 %v4163
    %4165 = vmatprep.subr.mxu0 0.0
    %4166 = vmatpush2.msra.mxu0 0.0
    %4167 = vmatprep.subr.mxu0 0.0
    %4168 = vmatpush2.msra.mxu0 0.0
    %4169 = vmatprep.subr.mxu0 0.0
    %4170 = vmatpush2.msra.mxu0 0.0
    %4171 = vmatprep.subr.mxu0 0.0
    %4172 = vmatpush2.msra.mxu0 0.0
    %4173 = vmatprep.subr.mxu0 0.0
    %4174 = vmatpush2.msra.mxu0 0.0
    %4175 = vmatprep.subr.mxu0 0.0
    %4176 = vmatpush2.msra.mxu0 0.0
    %4177 = vmatprep.subr.mxu0 0.0
    %4178 = vmatpush2.msra.mxu0 0.0
    %4179 = vmatprep.subr.mxu0 0.0
    %4180 = vmatpush2.msra.mxu0 0.0
    %4181 = vmatprep.subr.mxu0 0.0
    %4182 = vmatpush2.msra.mxu0 0.0
    %4183 = vmatprep.subr.mxu0 0.0
    %4184 = vmatpush2.msra.mxu0 0.0
    %4185 = vmatprep.subr.mxu0 0.0
    %4186 = vmatpush2.msra.mxu0 0.0
    %4187 = vmatprep.subr.mxu0 0.0
    %4188 = vmatpush2.msra.mxu0 0.0
    %4189 = vmatprep.subr.mxu0 0.0
    %4190 = vmatpush2.msra.mxu0 0.0
    %4191 = vmatprep.subr.mxu0 0.0
    %4192 = vmatpush2.msra.mxu0 0.0
    %4193 = vmatprep.subr.mxu0 0.0
    %4194 = vmatpush2.msra.mxu0 0.0
    %4195 = vmatprep.subr.mxu0 0.0
    %4196 = vmatpush2.msra.mxu0 0.0
    %4197 = vmatprep.mubr.f32.mxu0 0.0
    %v4198 = vand.u32 %v3717, 4294901760
    %4199 = vmatmul.mubr.f32.gmra.mxu0 %v4198
    %v4200 = vpop.f32.mrf.mxu0
    %v4201 = vadd.f32 %v4126, %v4200
    %v4202 = vpop.f32.mrf.mxu0
    %4203 = vdwg.mxu0
    %vm4204 = vcmask 23552
    %v4205 = vsel %vm4204, %v4201, -inf
    %4206 = vmax.xlane.f32.xlu0 %v4205
    %v4207 = vpop.xlane.xlu0 %4206
    %v4208 = vsub.f32 %v4201, %v4207
    %v4209 = vmul.f32 %v4208, 1.442695
    %v4210 = vpow.pop %v4209
    %v4211 = vsel %vm4204, %v4210, 0.0
    %4212 = vadd.xlane.f32.xlu0 %v4211
    %v4213 = vpop.xlane.xlu0 %4212
    %v4214 = vrcp.pop %v4213
    %v4215 = vmul.f32 %v4210, %v4214
    %v4216 = vmul.f32 %v4215, %v3633
    %v4217 = vmul.f32 %v4215, %v3637
    %4219 = vrot.lane.b32.xlu0 %v4217, 127
    %v4220 = vpop.permute.xlu0 %4219
    %v4222 = vadd.f32 %v4216, %v4220
    %4224 = vrot.lane.b32.xlu0 %v3698, 126
    %v4225 = vpop.permute.xlu0 %4224
    %v4227 = vmul.f32 %v4215, %v4225
    %4229 = vrot.lane.b32.xlu0 %v4227, 126
    %v4230 = vpop.permute.xlu0 %4229
    %v4232 = vadd.f32 %v4222, %v4230
    %v4233 = vlaneseq
    %v4234 = vand.u32 %v4233, 127
    %vm4235 = vcmp.eq.s32.totalorder %v4234, 0
    %4237 = vset.pattern.permute.xlu0 0
    %4238 = vperm.xlu0 %4237, %v4232
    %v4239 = vpop.permute.xlu0 %4238
    %v4241 = vsel %vm4235, %v4239, 0.0
    %vm4242 = vcmp.eq.s32.totalorder %v4234, 1
    %v4243 = vsel %vm4242, %v3633, %v4241
    %vm4244 = vcmp.eq.s32.totalorder %v4234, 2
    %v4245 = vsel %vm4244, %v3637, %v4243
    %vm4246 = vcmp.eq.s32.totalorder %v4234, 3
    %4247 = vset.pattern.permute.xlu0 4
    %4248 = vperm.xlu0 %4247, %v3698
    %v4249 = vpop.permute.xlu0 %4248
    %v4251 = vsel %vm4246, %v4249, %v4245
    %vm4252 = vcmp.eq.s32.totalorder %v4234, 4
    %4254 = vset.pattern.permute.xlu0 4
    %4255 = vperm.xlu0 %4254, %v3703
    %v4256 = vpop.permute.xlu0 %4255
    %v4258 = vsel %vm4252, %v4256, %v4251
    %vm4259 = vcmp.eq.s32.totalorder %v4234, 5
    %4261 = vset.pattern.permute.xlu0 0
    %4262 = vperm.xlu0 %4261, %v4215
    %v4263 = vpop.permute.xlu0 %4262
    %v4265 = vsel %vm4259, %v4263, %v4258
    %vm4266 = vcmp.eq.s32.totalorder %v4234, 6
    %4267 = vset.pattern.permute.xlu0 1
    %4268 = vperm.xlu0 %4267, %v4215
    %v4269 = vpop.permute.xlu0 %4268
    %v4271 = vsel %vm4266, %v4269, %v4265
    %vm4272 = vcmp.eq.s32.totalorder %v4234, 7
    %4273 = vset.pattern.permute.xlu0 2
    %4274 = vperm.xlu0 %4273, %v4215
    %v4275 = vpop.permute.xlu0 %4274
    %v4277 = vsel %vm4272, %v4275, %v4271
    %4278 = vst [vmem:[%s20] sm:$0xff] %v4277
    // Predicated region
    $region110: #{joint_matching_forward.1} parent=1 // pred_check
      _
    $region111: #{joint_matching_forward.1} parent=1 // pred_check_branch
      %4280 = sbr.rel (0) target = $region113
    $region112: #{joint_matching_forward.1} parent=1 // pred_region
      _
    $region113: #{joint_matching_forward.1} parent=1 // pred_fallthru
      _
    // Predicated region
    $region114: #{joint_matching_forward.1} parent=1 // pred_check
      _
    $region115: #{joint_matching_forward.1} parent=1 // pred_check_branch
      %4282 = sbr.rel (0) target = $region117
    $region116: #{joint_matching_forward.1} parent=1 // pred_region
      _
    $region117: #{joint_matching_forward.1} parent=1 // pred_fallthru
      _
    %4283 = vsyncpa [#allocation3], 1
    %4284 = vsyncpa [#allocation5], 1
    %4285 = vsyncpa [#allocation8], 1
    %4286 = vsyncpa [#allocation11], 1

</llo_original>
